<compile_context>
chip_gen: v7x
topology: tpu7x:2x2x1
jax: 0.10.0
libtpu: 0.0.40
codegen_flags: <defaults>
</compile_context>

<pallas_src>
import jax
import jax.numpy as jnp
from jax.experimental import pallas as pl
from jax.experimental.pallas import tpu as pltpu


# --------------------------------------------------------------------------- math


def _gelu_exact(x):
    # PyTorch nn.GELU() default = exact erf-based GELU.
    inv_sqrt2 = jnp.float32(0.7071067811865476)
    return 0.5 * x * (1.0 + jax.lax.erf(x * inv_sqrt2))


def _layernorm_noaffine(x, eps=1e-5):
    # PyTorch LayerNorm(elementwise_affine=False): biased variance, eps=1e-5.
    mu = jnp.mean(x, axis=-1, keepdims=True)
    var = jnp.mean((x - mu) ** 2, axis=-1, keepdims=True)
    return (x - mu) * jax.lax.rsqrt(var + eps)


# --------------------------------------------------------------------------- kernel


def _fused_kernel(idx_id_ref, idx_ct_ref, idx_nm_ref,
                  t1_ref, b1_ref, w2_ref, b2_ref, w3_ref, b3_ref,
                  out_ref):
    f32 = jnp.float32
    v = t1_ref.shape[0]                     # padded total vocab (static)

    # In-kernel gather of the W1-folded embedding rows via a one-hot MXU matmul.
    # The three index columns carry disjoint row offsets, so OR-ing the three
    # comparisons gives a row with exactly three hot lanes; the dot then computes
    #   t1[id] + t1[v1+cty] + t1[v1+v2+name]  ==  cat(emb_id,emb_cty,emb_nm) @ W1.
    iota = jax.lax.broadcasted_iota(jnp.int32, (1, v), 1)
    hot = ((idx_id_ref[...] == iota) |
           (idx_ct_ref[...] == iota) |
           (idx_nm_ref[...] == iota))
    h = jnp.dot(hot.astype(f32), t1_ref[...], preferred_element_type=f32) + b1_ref[...]
    h = _gelu_exact(_layernorm_noaffine(h))

    h = jnp.dot(h, w2_ref[...], preferred_element_type=f32) + b2_ref[...]
    h = _gelu_exact(_layernorm_noaffine(h))

    h = jnp.dot(h, w3_ref[...], preferred_element_type=f32) + b3_ref[...]
    out_ref[...] = _gelu_exact(h).astype(out_ref.dtype)   # final self.act(...)


# --------------------------------------------------------------------------- wrapper


def _round_up(x, m):
    return (x + m - 1) // m * m


def track_sparsenn_user_model(user_ids, user_countries, user_names,
                              id_tbl, cty_tbl, nam_tbl,
                              w1, b1, w2, b2, w3, b3,
                              *, block_b=1024):
    """Forward pass.  Weights stored as (in, out) == torch W^T."""
    E = id_tbl.shape[1]
    O = w3.shape[1]
    H1 = w1.shape[1]
    v1, v2, v3 = id_tbl.shape[0], cty_tbl.shape[0], nam_tbl.shape[0]

    hp = jax.lax.Precision.HIGHEST
    # Fold the first Linear into the (small) embedding tables (tiny XLA matmuls).
    t1 = jnp.concatenate([
        jnp.dot(id_tbl.astype(jnp.float32), w1[:E], precision=hp),
        jnp.dot(cty_tbl.astype(jnp.float32), w1[E:2 * E], precision=hp),
        jnp.dot(nam_tbl.astype(jnp.float32), w1[2 * E:], precision=hp),
    ], axis=0)                                              # (v1+v2+v3, H1)
    vtot = v1 + v2 + v3
    vpad = _round_up(vtot, 8)
    if vpad != vtot:
        t1 = jnp.pad(t1, ((0, vpad - vtot), (0, 0)))        # padded rows never selected
    # TODO(synk): large vocabularies need a per-row DMA gather instead (see header).
    assert vpad * H1 * 4 <= 4 * 1024 * 1024, "embedding tables too large for VMEM-resident gather"

    B = int(user_ids.shape[0])
    tb = block_b if B > block_b else _round_up(max(B, 1), 8)   # single step for small B
    b_pad = _round_up(B, tb)

    def _col(idx, off):
        col = (idx.astype(jnp.int32) + off).reshape(-1, 1)
        if b_pad != B:
            col = jnp.pad(col, ((0, b_pad - B), (0, 0)))       # pads with 0 -> valid row
        return col

    idx_id = _col(user_ids, 0)
    idx_ct = _col(user_countries, v1)
    idx_nm = _col(user_names, v1 + v2)

    b1r = b1.reshape(1, -1).astype(jnp.float32)
    b2r = b2.reshape(1, -1).astype(jnp.float32)
    b3r = b3.reshape(1, -1).astype(jnp.float32)
    w2f = w2.astype(jnp.float32)
    w3f = w3.astype(jnp.float32)

    def _const(a):
        return pl.BlockSpec(a.shape, lambda i: (0, 0))   # VMEM-resident parameter block

    grid = (b_pad // tb,)

    out = pl.pallas_call(
        _fused_kernel,
        out_shape=jax.ShapeDtypeStruct((b_pad, O), jnp.float32),
        grid=grid,
        in_specs=[
            pl.BlockSpec((tb, 1), lambda i: (i, 0)),     # id indices      (streamed)
            pl.BlockSpec((tb, 1), lambda i: (i, 0)),     # country indices (streamed)
            pl.BlockSpec((tb, 1), lambda i: (i, 0)),     # name indices    (streamed)
            _const(t1), _const(b1r),
            _const(w2f), _const(b2r),
            _const(w3f), _const(b3r),
        ],
        out_specs=pl.BlockSpec((tb, O), lambda i: (i, 0)),   # lane-dense (O=128)
        compiler_params=pltpu.CompilerParams(
            dimension_semantics=("parallel",),               # megacore on v7x
            vmem_limit_bytes=32 * 1024 * 1024),
    )(idx_id, idx_ct, idx_nm, t1, b1r, w2f, b2r, w3f, b3r)

    return out[:B]


# --------------------------------------------------------------------------- reference


def _reference_forward(user_ids, user_countries, user_names,
                       id_tbl, cty_tbl, nam_tbl, w1, b1, w2, b2, w3, b3):
    hp = jax.lax.Precision.HIGHEST
    x = jnp.concatenate(
        [id_tbl[user_ids], cty_tbl[user_countries], nam_tbl[user_names]], axis=1)
    h = _gelu_exact(_layernorm_noaffine(jnp.dot(x, w1, precision=hp) + b1))
    h = _gelu_exact(_layernorm_noaffine(jnp.dot(h, w2, precision=hp) + b2))
    h = jnp.dot(h, w3, precision=hp) + b3
    return _gelu_exact(h)


# --------------------------------------------------------------------------- main


if __name__ == "__main__":
    # Small, module-consistent shapes (defaults: feat_embed_dim=64, output_embed_dim=128).
    B = 256
    E = 64                  # feat_embed_dim
    O = 128                 # output_embed_dim
    H1, H2 = 128, 64        # MLP hidden widths (fixed by the module)
    num_user_ids, num_user_countries, num_user_names = 100, 20, 50

    key = jax.random.PRNGKey(0)
    ks = jax.random.split(key, 12)

    user_ids = jax.random.randint(ks[0], (B,), 0, num_user_ids, dtype=jnp.int32)
    user_countries = jax.random.randint(ks[1], (B,), 0, num_user_countries, dtype=jnp.int32)
    user_names = jax.random.randint(ks[2], (B,), 0, num_user_names, dtype=jnp.int32)

    # Embedding tables (torch default init ~ N(0,1)).
    id_tbl = jax.random.normal(ks[3], (num_user_ids, E), jnp.float32)
    cty_tbl = jax.random.normal(ks[4], (num_user_countries, E), jnp.float32)
    nam_tbl = jax.random.normal(ks[5], (num_user_names, E), jnp.float32)

    # MLP parameters, stored as (in, out) == torch W^T.
    def _lin(k, fan_in, fan_out):
        kw, kb = jax.random.split(k)
        bound = (1.0 / fan_in) ** 0.5
        w = jax.random.uniform(kw, (fan_in, fan_out), jnp.float32, -bound, bound)
        b = jax.random.uniform(kb, (fan_out,), jnp.float32, -bound, bound)
        return w, b

    w1, b1 = _lin(ks[6], 3 * E, H1)
    w2, b2 = _lin(ks[7], H1, H2)
    w3, b3 = _lin(ks[8], H2, O)

    out = track_sparsenn_user_model(
        user_ids, user_countries, user_names,
        id_tbl, cty_tbl, nam_tbl, w1, b1, w2, b2, w3, b3)   # single grid step at B=256
    out = jax.block_until_ready(out)

    assert out.shape == (B, O) and out.dtype == jnp.float32

    ref = _reference_forward(user_ids, user_countries, user_names,
                             id_tbl, cty_tbl, nam_tbl, w1, b1, w2, b2, w3, b3)
    ref = jax.block_until_ready(ref)
    assert bool(jnp.allclose(out, ref, rtol=1e-2, atol=1e-2)), "mismatch vs JAX reference"

    print("KERNEL_OK")
</pallas_src>

<mosaic_0001>
module attributes {stable_mosaic.version = 11 : i64} {
  func.func @_fused_kernel(%arg0: i32, %arg1: memref<256x1xi32, #tpu.memory_space<vmem>>, %arg2: memref<256x1xi32, #tpu.memory_space<vmem>>, %arg3: memref<256x1xi32, #tpu.memory_space<vmem>>, %arg4: memref<176x128xf32, #tpu.memory_space<vmem>>, %arg5: memref<1x128xf32, #tpu.memory_space<vmem>>, %arg6: memref<128x64xf32, #tpu.memory_space<vmem>>, %arg7: memref<1x64xf32, #tpu.memory_space<vmem>>, %arg8: memref<64x128xf32, #tpu.memory_space<vmem>>, %arg9: memref<1x128xf32, #tpu.memory_space<vmem>>, %arg10: memref<256x128xf32, #tpu.memory_space<vmem>>) attributes {dimension_semantics = [#tpu.dimension_semantics<parallel>], iteration_bounds = array<i64: 1>, scalar_prefetch = 0 : i64, scratch_operands = 0 : i64, tpu.core_type = #tpu.core_type<tc>, window_params = [{transform_indices = @transform_0, window_bounds = array<i64: 256, 1>}, {transform_indices = @transform_1, window_bounds = array<i64: 256, 1>}, {transform_indices = @transform_2, window_bounds = array<i64: 256, 1>}, {pipeline_mode = #tpu.pipeline_mode<synchronous>, transform_indices = @transform_3, window_bounds = array<i64: 176, 128>}, {pipeline_mode = #tpu.pipeline_mode<synchronous>, transform_indices = @transform_4, window_bounds = array<i64: 1, 128>}, {pipeline_mode = #tpu.pipeline_mode<synchronous>, transform_indices = @transform_5, window_bounds = array<i64: 128, 64>}, {pipeline_mode = #tpu.pipeline_mode<synchronous>, transform_indices = @transform_6, window_bounds = array<i64: 1, 64>}, {pipeline_mode = #tpu.pipeline_mode<synchronous>, transform_indices = @transform_7, window_bounds = array<i64: 64, 128>}, {pipeline_mode = #tpu.pipeline_mode<synchronous>, transform_indices = @transform_8, window_bounds = array<i64: 1, 128>}, {transform_indices = @transform_9, window_bounds = array<i64: 256, 128>}]} {
    %0 = tpu.iota {dimensions = array<i32: 1>} : vector<1x176xi32>
    %c0 = arith.constant 0 : index
    %c0_0 = arith.constant 0 : index
    %1 = vector.load %arg1[%c0, %c0_0] : memref<256x1xi32, #tpu.memory_space<vmem>>, vector<256x1xi32>
    %2 = vector.broadcast %1 : vector<256x1xi32> to vector<256x176xi32>
    %3 = vector.broadcast %0 : vector<1x176xi32> to vector<256x176xi32>
    %4 = arith.cmpi eq, %2, %3 : vector<256x176xi32>
    %c0_1 = arith.constant 0 : index
    %c0_2 = arith.constant 0 : index
    %5 = vector.load %arg2[%c0_1, %c0_2] : memref<256x1xi32, #tpu.memory_space<vmem>>, vector<256x1xi32>
    %6 = vector.broadcast %5 : vector<256x1xi32> to vector<256x176xi32>
    %7 = vector.broadcast %0 : vector<1x176xi32> to vector<256x176xi32>
    %8 = arith.cmpi eq, %6, %7 : vector<256x176xi32>
    %9 = arith.ori %4, %8 : vector<256x176xi1>
    %c0_3 = arith.constant 0 : index
    %c0_4 = arith.constant 0 : index
    %10 = vector.load %arg3[%c0_3, %c0_4] : memref<256x1xi32, #tpu.memory_space<vmem>>, vector<256x1xi32>
    %11 = vector.broadcast %10 : vector<256x1xi32> to vector<256x176xi32>
    %12 = vector.broadcast %0 : vector<1x176xi32> to vector<256x176xi32>
    %13 = arith.cmpi eq, %11, %12 : vector<256x176xi32>
    %14 = arith.ori %9, %13 : vector<256x176xi1>
    %15 = arith.extui %14 : vector<256x176xi1> to vector<256x176xi32>
    %16 = arith.sitofp %15 : vector<256x176xi32> to vector<256x176xf32>
    %c0_5 = arith.constant 0 : index
    %c0_6 = arith.constant 0 : index
    %17 = vector.load %arg4[%c0_5, %c0_6] : memref<176x128xf32, #tpu.memory_space<vmem>>, vector<176x128xf32>
    %cst = arith.constant dense<0.000000e+00> : vector<256x128xf32>
    %18 = tpu.matmul %16, %17, %cst {dimension_numbers = #tpu.dot_dimension_numbers<[1], [0], [0], [1], [0, 0, 1, 1], [], []>} : vector<256x176xf32>, vector<176x128xf32>, vector<256x128xf32> -> vector<256x128xf32>
    %c0_7 = arith.constant 0 : index
    %c0_8 = arith.constant 0 : index
    %19 = vector.load %arg5[%c0_7, %c0_8] : memref<1x128xf32, #tpu.memory_space<vmem>>, vector<1x128xf32>
    %20 = vector.broadcast %19 : vector<1x128xf32> to vector<256x128xf32>
    %21 = arith.addf %18, %20 : vector<256x128xf32>
    %cst_9 = arith.constant dense<0.000000e+00> : vector<256xf32>
    %22 = vector.multi_reduction <add>, %21, %cst_9 [1] : vector<256x128xf32> to vector<256xf32>
    %23 = vector.shape_cast %22 : vector<256xf32> to vector<256x1xf32>
    %cst_10 = arith.constant 1.280000e+02 : f32
    %24 = vector.broadcast %cst_10 : f32 to vector<256x1xf32>
    %25 = arith.divf %23, %24 : vector<256x1xf32>
    %26 = vector.broadcast %25 : vector<256x1xf32> to vector<256x128xf32>
    %27 = arith.subf %21, %26 : vector<256x128xf32>
    %28 = arith.mulf %27, %27 : vector<256x128xf32>
    %cst_11 = arith.constant dense<0.000000e+00> : vector<256xf32>
    %29 = vector.multi_reduction <add>, %28, %cst_11 [1] : vector<256x128xf32> to vector<256xf32>
    %30 = vector.shape_cast %29 : vector<256xf32> to vector<256x1xf32>
    %cst_12 = arith.constant 1.280000e+02 : f32
    %31 = vector.broadcast %cst_12 : f32 to vector<256x1xf32>
    %32 = arith.divf %30, %31 : vector<256x1xf32>
    %33 = vector.broadcast %25 : vector<256x1xf32> to vector<256x128xf32>
    %34 = arith.subf %21, %33 : vector<256x128xf32>
    %cst_13 = arith.constant 9.99999974E-6 : f32
    %35 = vector.broadcast %cst_13 : f32 to vector<256x1xf32>
    %36 = arith.addf %32, %35 : vector<256x1xf32>
    %37 = math.rsqrt %36 : vector<256x1xf32>
    %38 = vector.broadcast %37 : vector<256x1xf32> to vector<256x128xf32>
    %39 = arith.mulf %34, %38 : vector<256x128xf32>
    %cst_14 = arith.constant 5.000000e-01 : f32
    %40 = vector.broadcast %cst_14 : f32 to vector<256x128xf32>
    %41 = arith.mulf %40, %39 : vector<256x128xf32>
    %cst_15 = arith.constant 0.707106769 : f32
    %42 = vector.broadcast %cst_15 : f32 to vector<256x128xf32>
    %43 = arith.mulf %39, %42 : vector<256x128xf32>
    %44 = math.erf %43 : vector<256x128xf32>
    %cst_16 = arith.constant 1.000000e+00 : f32
    %45 = vector.broadcast %cst_16 : f32 to vector<256x128xf32>
    %46 = arith.addf %45, %44 : vector<256x128xf32>
    %47 = arith.mulf %41, %46 : vector<256x128xf32>
    %c0_17 = arith.constant 0 : index
    %c0_18 = arith.constant 0 : index
    %48 = vector.load %arg6[%c0_17, %c0_18] : memref<128x64xf32, #tpu.memory_space<vmem>>, vector<128x64xf32>
    %cst_19 = arith.constant dense<0.000000e+00> : vector<256x64xf32>
    %49 = tpu.matmul %47, %48, %cst_19 {dimension_numbers = #tpu.dot_dimension_numbers<[1], [0], [0], [1], [0, 0, 1, 1], [], []>} : vector<256x128xf32>, vector<128x64xf32>, vector<256x64xf32> -> vector<256x64xf32>
    %c0_20 = arith.constant 0 : index
    %c0_21 = arith.constant 0 : index
    %50 = vector.load %arg7[%c0_20, %c0_21] : memref<1x64xf32, #tpu.memory_space<vmem>>, vector<1x64xf32>
    %51 = vector.broadcast %50 : vector<1x64xf32> to vector<256x64xf32>
    %52 = arith.addf %49, %51 : vector<256x64xf32>
    %cst_22 = arith.constant dense<0.000000e+00> : vector<256xf32>
    %53 = vector.multi_reduction <add>, %52, %cst_22 [1] : vector<256x64xf32> to vector<256xf32>
    %54 = vector.shape_cast %53 : vector<256xf32> to vector<256x1xf32>
    %cst_23 = arith.constant 6.400000e+01 : f32
    %55 = vector.broadcast %cst_23 : f32 to vector<256x1xf32>
    %56 = arith.divf %54, %55 : vector<256x1xf32>
    %57 = vector.broadcast %56 : vector<256x1xf32> to vector<256x64xf32>
    %58 = arith.subf %52, %57 : vector<256x64xf32>
    %59 = arith.mulf %58, %58 : vector<256x64xf32>
    %cst_24 = arith.constant dense<0.000000e+00> : vector<256xf32>
    %60 = vector.multi_reduction <add>, %59, %cst_24 [1] : vector<256x64xf32> to vector<256xf32>
    %61 = vector.shape_cast %60 : vector<256xf32> to vector<256x1xf32>
    %cst_25 = arith.constant 6.400000e+01 : f32
    %62 = vector.broadcast %cst_25 : f32 to vector<256x1xf32>
    %63 = arith.divf %61, %62 : vector<256x1xf32>
    %64 = vector.broadcast %56 : vector<256x1xf32> to vector<256x64xf32>
    %65 = arith.subf %52, %64 : vector<256x64xf32>
    %cst_26 = arith.constant 9.99999974E-6 : f32
    %66 = vector.broadcast %cst_26 : f32 to vector<256x1xf32>
    %67 = arith.addf %63, %66 : vector<256x1xf32>
    %68 = math.rsqrt %67 : vector<256x1xf32>
    %69 = vector.broadcast %68 : vector<256x1xf32> to vector<256x64xf32>
    %70 = arith.mulf %65, %69 : vector<256x64xf32>
    %cst_27 = arith.constant 5.000000e-01 : f32
    %71 = vector.broadcast %cst_27 : f32 to vector<256x64xf32>
    %72 = arith.mulf %71, %70 : vector<256x64xf32>
    %cst_28 = arith.constant 0.707106769 : f32
    %73 = vector.broadcast %cst_28 : f32 to vector<256x64xf32>
    %74 = arith.mulf %70, %73 : vector<256x64xf32>
    %75 = math.erf %74 : vector<256x64xf32>
    %cst_29 = arith.constant 1.000000e+00 : f32
    %76 = vector.broadcast %cst_29 : f32 to vector<256x64xf32>
    %77 = arith.addf %76, %75 : vector<256x64xf32>
    %78 = arith.mulf %72, %77 : vector<256x64xf32>
    %c0_30 = arith.constant 0 : index
    %c0_31 = arith.constant 0 : index
    %79 = vector.load %arg8[%c0_30, %c0_31] : memref<64x128xf32, #tpu.memory_space<vmem>>, vector<64x128xf32>
    %cst_32 = arith.constant dense<0.000000e+00> : vector<256x128xf32>
    %80 = tpu.matmul %78, %79, %cst_32 {dimension_numbers = #tpu.dot_dimension_numbers<[1], [0], [0], [1], [0, 0, 1, 1], [], []>} : vector<256x64xf32>, vector<64x128xf32>, vector<256x128xf32> -> vector<256x128xf32>
    %c0_33 = arith.constant 0 : index
    %c0_34 = arith.constant 0 : index
    %81 = vector.load %arg9[%c0_33, %c0_34] : memref<1x128xf32, #tpu.memory_space<vmem>>, vector<1x128xf32>
    %82 = vector.broadcast %81 : vector<1x128xf32> to vector<256x128xf32>
    %83 = arith.addf %80, %82 : vector<256x128xf32>
    %cst_35 = arith.constant 5.000000e-01 : f32
    %84 = vector.broadcast %cst_35 : f32 to vector<256x128xf32>
    %85 = arith.mulf %84, %83 : vector<256x128xf32>
    %cst_36 = arith.constant 0.707106769 : f32
    %86 = vector.broadcast %cst_36 : f32 to vector<256x128xf32>
    %87 = arith.mulf %83, %86 : vector<256x128xf32>
    %88 = math.erf %87 : vector<256x128xf32>
    %cst_37 = arith.constant 1.000000e+00 : f32
    %89 = vector.broadcast %cst_37 : f32 to vector<256x128xf32>
    %90 = arith.addf %89, %88 : vector<256x128xf32>
    %91 = arith.mulf %85, %90 : vector<256x128xf32>
    %c0_38 = arith.constant 0 : index
    %c0_39 = arith.constant 0 : index
    %92 = vector.load %arg10[%c0_38, %c0_39] : memref<256x128xf32, #tpu.memory_space<vmem>>, vector<256x128xf32>
    tpu.vector_store %arg10[%c0_38, %c0_39], %91 {strides = array<i32>} : memref<256x128xf32, #tpu.memory_space<vmem>>, vector<256x128xf32>,
    return
  }
  func.func @transform_0(%arg0: i32) -> (i32, i32) {
    %c0_i32 = arith.constant 0 : i32
    %c0_i32_0 = arith.constant 0 : i32
    return %arg0, %c0_i32 : i32, i32
  }
  func.func @transform_1(%arg0: i32) -> (i32, i32) {
    %c0_i32 = arith.constant 0 : i32
    %c0_i32_0 = arith.constant 0 : i32
    return %arg0, %c0_i32 : i32, i32
  }
  func.func @transform_2(%arg0: i32) -> (i32, i32) {
    %c0_i32 = arith.constant 0 : i32
    %c0_i32_0 = arith.constant 0 : i32
    return %arg0, %c0_i32 : i32, i32
  }
  func.func @transform_3(%arg0: i32) -> (i32, i32) {
    %c0_i32 = arith.constant 0 : i32
    %c0_i32_0 = arith.constant 0 : i32
    %c0_i32_1 = arith.constant 0 : i32
    return %c0_i32, %c0_i32_0 : i32, i32
  }
  func.func @transform_4(%arg0: i32) -> (i32, i32) {
    %c0_i32 = arith.constant 0 : i32
    %c0_i32_0 = arith.constant 0 : i32
    %c0_i32_1 = arith.constant 0 : i32
    return %c0_i32, %c0_i32_0 : i32, i32
  }
  func.func @transform_5(%arg0: i32) -> (i32, i32) {
    %c0_i32 = arith.constant 0 : i32
    %c0_i32_0 = arith.constant 0 : i32
    %c0_i32_1 = arith.constant 0 : i32
    return %c0_i32, %c0_i32_0 : i32, i32
  }
  func.func @transform_6(%arg0: i32) -> (i32, i32) {
    %c0_i32 = arith.constant 0 : i32
    %c0_i32_0 = arith.constant 0 : i32
    %c0_i32_1 = arith.constant 0 : i32
    return %c0_i32, %c0_i32_0 : i32, i32
  }
  func.func @transform_7(%arg0: i32) -> (i32, i32) {
    %c0_i32 = arith.constant 0 : i32
    %c0_i32_0 = arith.constant 0 : i32
    %c0_i32_1 = arith.constant 0 : i32
    return %c0_i32, %c0_i32_0 : i32, i32
  }
  func.func @transform_8(%arg0: i32) -> (i32, i32) {
    %c0_i32 = arith.constant 0 : i32
    %c0_i32_0 = arith.constant 0 : i32
    %c0_i32_1 = arith.constant 0 : i32
    return %c0_i32, %c0_i32_0 : i32, i32
  }
  func.func @transform_9(%arg0: i32) -> (i32, i32) {
    %c0_i32 = arith.constant 0 : i32
    %c0_i32_0 = arith.constant 0 : i32
    return %arg0, %c0_i32 : i32, i32
  }
}

</mosaic_0001>

<llo_original>
// kernel: tpu_custom_call.1
$region0: #{tpu_custom_call.1}
  #allocation0 [shape = 'u32[]', space=smem, size = 0x4, offset = 0x4, fixed_abs, tag = 'smem constant byte address 0x4 - core index']
  #allocation1 [shape = 'u32[144,128]{1,0:T(1,128)}', space=vmem, size = 0x12000, scoped, tag = 'internal scratch']
  %s0 = inlined_call_operand.vmem [shape: s32[256,1], index: 0, kind: input, shape index: {}]
  %s1 = inlined_call_operand.vmem [shape: s32[256,1], index: 1, kind: input, shape index: {}]
  %s2 = inlined_call_operand.vmem [shape: s32[256,1], index: 2, kind: input, shape index: {}]
  %s3 = inlined_call_operand.vmem [shape: f32[176,128], index: 3, kind: input, shape index: {}]
  %s4 = inlined_call_operand.vmem [shape: f32[1,128], index: 4, kind: input, shape index: {}]
  %s5 = inlined_call_operand.vmem [shape: f32[128,64], index: 5, kind: input, shape index: {}]
  %s6 = inlined_call_operand.vmem [shape: f32[1,64], index: 6, kind: input, shape index: {}]
  %s7 = inlined_call_operand.vmem [shape: f32[64,128], index: 7, kind: input, shape index: {}]
  %s8 = inlined_call_operand.vmem [shape: f32[1,128], index: 8, kind: input, shape index: {}]
  %s9 = inlined_call_operand.hbm [shape: f32[256,128], index: 9, kind: output, shape index: {}]
  %s10 = sld [smem:[#allocation0]]
  $region46: #{tpu_custom_call.1} parent=0
    _
  %s12 = ssub.s32 1, %s10
  %s13 = scalar_select 0, %s12, %s10
  $region1: #{tpu_custom_call.1} parent=0
    #allocation2 [shape = 'u8[131072]{0}', space=vmem, size = 0x20000, scoped, tag = 'output window, operand 0, single buffered']
    #allocation3 [shape = 's32[1]{0}', space=sflag, size = 0x4, scoped, tag = 'scoped memory for tpu_custom_call.1']
    %14 = vsyncpa [#allocation3], 0
    // Predicated region
    $region2: #{tpu_custom_call.1} parent=1 // pred_check
      _
    $region3: #{tpu_custom_call.1} parent=1 // pred_check_branch
      %16 = sbr.rel (0) target = $region5
    $region4: #{tpu_custom_call.1} parent=1 // pred_region
      _
    $region5: #{tpu_custom_call.1} parent=1 // pred_fallthru
      _
    // Predicated region
    $region6: #{tpu_custom_call.1} parent=1 // pred_check
      _
    $region7: #{tpu_custom_call.1} parent=1 // pred_check_branch
      %18 = sbr.rel (0) target = $region9
    $region8: #{tpu_custom_call.1} parent=1 // pred_region
      _
    $region9: #{tpu_custom_call.1} parent=1 // pred_fallthru
      _
    // Predicated region
    $region10: #{tpu_custom_call.1} parent=1 // pred_check
      _
    $region11: #{tpu_custom_call.1} parent=1 // pred_check_branch
      %20 = sbr.rel (0) target = $region13
    $region12: #{tpu_custom_call.1} parent=1 // pred_region
      _
    $region13: #{tpu_custom_call.1} parent=1 // pred_fallthru
      _
    // Predicated region
    $region14: #{tpu_custom_call.1} parent=1 // pred_check
      _
    $region15: #{tpu_custom_call.1} parent=1 // pred_check_branch
      %22 = sbr.rel (0) target = $region17
    $region16: #{tpu_custom_call.1} parent=1 // pred_region
      _
    $region17: #{tpu_custom_call.1} parent=1 // pred_fallthru
      _
    // Predicated region
    $region18: #{tpu_custom_call.1} parent=1 // pred_check
      _
    $region19: #{tpu_custom_call.1} parent=1 // pred_check_branch
      %24 = sbr.rel (0) target = $region21
    $region20: #{tpu_custom_call.1} parent=1 // pred_region
      _
    $region21: #{tpu_custom_call.1} parent=1 // pred_fallthru
      _
    // Predicated region
    $region22: #{tpu_custom_call.1} parent=1 // pred_check
      _
    $region23: #{tpu_custom_call.1} parent=1 // pred_check_branch
      %26 = sbr.rel (0) target = $region25
    $region24: #{tpu_custom_call.1} parent=1 // pred_region
      _
    $region25: #{tpu_custom_call.1} parent=1 // pred_fallthru
      _
    // Predicated region
    $region26: #{tpu_custom_call.1} parent=1 // pred_check
      _
    $region27: #{tpu_custom_call.1} parent=1 // pred_check_branch
      %28 = sbr.rel (0) target = $region29
    $region28: #{tpu_custom_call.1} parent=1 // pred_region
      _
    $region29: #{tpu_custom_call.1} parent=1 // pred_fallthru
      _
    // Predicated region
    $region30: #{tpu_custom_call.1} parent=1 // pred_check
      _
    $region31: #{tpu_custom_call.1} parent=1 // pred_check_branch
      %30 = sbr.rel (0) target = $region33
    $region32: #{tpu_custom_call.1} parent=1 // pred_region
      _
    $region33: #{tpu_custom_call.1} parent=1 // pred_fallthru
      _
    // Predicated region
    $region34: #{tpu_custom_call.1} parent=1 // pred_check
      _
    $region35: #{tpu_custom_call.1} parent=1 // pred_check_branch
      %32 = sbr.rel (0) target = $region37
    $region36: #{tpu_custom_call.1} parent=1 // pred_region
      _
    $region37: #{tpu_custom_call.1} parent=1 // pred_fallthru
      _
    %v33 = vlaneseq
    %v34 = vand.u32 %v33, 127
    %v35 = vadd.s32 %v34, 128
    %v36 = vld [vmem:[%s0] sm:$0xff]
    %v37 = vld [vmem:[%s0 + $0x8] sm:$0xff]
    %v38 = vld [vmem:[%s0 + $0x10] sm:$0xff]
    %v39 = vld [vmem:[%s0 + $0x18] sm:$0xff]
    %v40 = vld [vmem:[%s0 + $0x20] sm:$0xff]
    %v41 = vld [vmem:[%s0 + $0x28] sm:$0xff]
    %v42 = vld [vmem:[%s0 + $0x30] sm:$0xff]
    %v43 = vld [vmem:[%s0 + $0x38] sm:$0xff]
    %v44 = vld [vmem:[%s0 + $0x40] sm:$0xff]
    %v45 = vld [vmem:[%s0 + $0x48] sm:$0xff]
    %v46 = vld [vmem:[%s0 + $0x50] sm:$0xff]
    %v47 = vld [vmem:[%s0 + $0x58] sm:$0xff]
    %v48 = vld [vmem:[%s0 + $0x60] sm:$0xff]
    %v49 = vld [vmem:[%s0 + $0x68] sm:$0xff]
    %v50 = vld [vmem:[%s0 + $0x70] sm:$0xff]
    %v51 = vld [vmem:[%s0 + $0x78] sm:$0xff]
    %v52 = vld [vmem:[%s0 + $0x80] sm:$0xff]
    %v53 = vld [vmem:[%s0 + $0x88] sm:$0xff]
    %v54 = vld [vmem:[%s0 + $0x90] sm:$0xff]
    %v55 = vld [vmem:[%s0 + $0x98] sm:$0xff]
    %v56 = vld [vmem:[%s0 + $0xa0] sm:$0xff]
    %v57 = vld [vmem:[%s0 + $0xa8] sm:$0xff]
    %v58 = vld [vmem:[%s0 + $0xb0] sm:$0xff]
    %v59 = vld [vmem:[%s0 + $0xb8] sm:$0xff]
    %v60 = vld [vmem:[%s0 + $0xc0] sm:$0xff]
    %v61 = vld [vmem:[%s0 + $0xc8] sm:$0xff]
    %v62 = vld [vmem:[%s0 + $0xd0] sm:$0xff]
    %v63 = vld [vmem:[%s0 + $0xd8] sm:$0xff]
    %v64 = vld [vmem:[%s0 + $0xe0] sm:$0xff]
    %v65 = vld [vmem:[%s0 + $0xe8] sm:$0xff]
    %v66 = vld [vmem:[%s0 + $0xf0] sm:$0xff]
    %v67 = vld [vmem:[%s0 + $0xf8] sm:$0xff]
    %68 = vset.pattern.permute.xlu0 0
    %69 = vperm.xlu0 %68, %v36
    %v70 = vpop.permute.xlu0 %69
    %71 = vset.pattern.permute.xlu0 0
    %72 = vperm.xlu0 %71, %v37
    %v73 = vpop.permute.xlu0 %72
    %74 = vset.pattern.permute.xlu0 0
    %75 = vperm.xlu0 %74, %v38
    %v76 = vpop.permute.xlu0 %75
    %77 = vset.pattern.permute.xlu0 0
    %78 = vperm.xlu0 %77, %v39
    %v79 = vpop.permute.xlu0 %78
    %80 = vset.pattern.permute.xlu0 0
    %81 = vperm.xlu0 %80, %v40
    %v82 = vpop.permute.xlu0 %81
    %83 = vset.pattern.permute.xlu0 0
    %84 = vperm.xlu0 %83, %v41
    %v85 = vpop.permute.xlu0 %84
    %86 = vset.pattern.permute.xlu0 0
    %87 = vperm.xlu0 %86, %v42
    %v88 = vpop.permute.xlu0 %87
    %89 = vset.pattern.permute.xlu0 0
    %90 = vperm.xlu0 %89, %v43
    %v91 = vpop.permute.xlu0 %90
    %92 = vset.pattern.permute.xlu0 0
    %93 = vperm.xlu0 %92, %v44
    %v94 = vpop.permute.xlu0 %93
    %95 = vset.pattern.permute.xlu0 0
    %96 = vperm.xlu0 %95, %v45
    %v97 = vpop.permute.xlu0 %96
    %98 = vset.pattern.permute.xlu0 0
    %99 = vperm.xlu0 %98, %v46
    %v100 = vpop.permute.xlu0 %99
    %101 = vset.pattern.permute.xlu0 0
    %102 = vperm.xlu0 %101, %v47
    %v103 = vpop.permute.xlu0 %102
    %104 = vset.pattern.permute.xlu0 0
    %105 = vperm.xlu0 %104, %v48
    %v106 = vpop.permute.xlu0 %105
    %107 = vset.pattern.permute.xlu0 0
    %108 = vperm.xlu0 %107, %v49
    %v109 = vpop.permute.xlu0 %108
    %110 = vset.pattern.permute.xlu0 0
    %111 = vperm.xlu0 %110, %v50
    %v112 = vpop.permute.xlu0 %111
    %113 = vset.pattern.permute.xlu0 0
    %114 = vperm.xlu0 %113, %v51
    %v115 = vpop.permute.xlu0 %114
    %116 = vset.pattern.permute.xlu0 0
    %117 = vperm.xlu0 %116, %v52
    %v118 = vpop.permute.xlu0 %117
    %119 = vset.pattern.permute.xlu0 0
    %120 = vperm.xlu0 %119, %v53
    %v121 = vpop.permute.xlu0 %120
    %122 = vset.pattern.permute.xlu0 0
    %123 = vperm.xlu0 %122, %v54
    %v124 = vpop.permute.xlu0 %123
    %125 = vset.pattern.permute.xlu0 0
    %126 = vperm.xlu0 %125, %v55
    %v127 = vpop.permute.xlu0 %126
    %128 = vset.pattern.permute.xlu0 0
    %129 = vperm.xlu0 %128, %v56
    %v130 = vpop.permute.xlu0 %129
    %131 = vset.pattern.permute.xlu0 0
    %132 = vperm.xlu0 %131, %v57
    %v133 = vpop.permute.xlu0 %132
    %134 = vset.pattern.permute.xlu0 0
    %135 = vperm.xlu0 %134, %v58
    %v136 = vpop.permute.xlu0 %135
    %137 = vset.pattern.permute.xlu0 0
    %138 = vperm.xlu0 %137, %v59
    %v139 = vpop.permute.xlu0 %138
    %140 = vset.pattern.permute.xlu0 0
    %141 = vperm.xlu0 %140, %v60
    %v142 = vpop.permute.xlu0 %141
    %143 = vset.pattern.permute.xlu0 0
    %144 = vperm.xlu0 %143, %v61
    %v145 = vpop.permute.xlu0 %144
    %146 = vset.pattern.permute.xlu0 0
    %147 = vperm.xlu0 %146, %v62
    %v148 = vpop.permute.xlu0 %147
    %149 = vset.pattern.permute.xlu0 0
    %150 = vperm.xlu0 %149, %v63
    %v151 = vpop.permute.xlu0 %150
    %152 = vset.pattern.permute.xlu0 0
    %153 = vperm.xlu0 %152, %v64
    %v154 = vpop.permute.xlu0 %153
    %155 = vset.pattern.permute.xlu0 0
    %156 = vperm.xlu0 %155, %v65
    %v157 = vpop.permute.xlu0 %156
    %158 = vset.pattern.permute.xlu0 0
    %159 = vperm.xlu0 %158, %v66
    %v160 = vpop.permute.xlu0 %159
    %161 = vset.pattern.permute.xlu0 0
    %162 = vperm.xlu0 %161, %v67
    %v163 = vpop.permute.xlu0 %162
    %vm164 = vcmp.eq.s32.totalorder %v70, %v34
    %vm165 = vcmp.eq.s32.totalorder %v70, %v35
    %vm166 = vcmp.eq.s32.totalorder %v73, %v34
    %vm167 = vcmp.eq.s32.totalorder %v73, %v35
    %vm168 = vcmp.eq.s32.totalorder %v76, %v34
    %vm169 = vcmp.eq.s32.totalorder %v76, %v35
    %vm170 = vcmp.eq.s32.totalorder %v79, %v34
    %vm171 = vcmp.eq.s32.totalorder %v79, %v35
    %vm172 = vcmp.eq.s32.totalorder %v82, %v34
    %vm173 = vcmp.eq.s32.totalorder %v82, %v35
    %vm174 = vcmp.eq.s32.totalorder %v85, %v34
    %vm175 = vcmp.eq.s32.totalorder %v85, %v35
    %vm176 = vcmp.eq.s32.totalorder %v88, %v34
    %vm177 = vcmp.eq.s32.totalorder %v88, %v35
    %vm178 = vcmp.eq.s32.totalorder %v91, %v34
    %vm179 = vcmp.eq.s32.totalorder %v91, %v35
    %vm180 = vcmp.eq.s32.totalorder %v94, %v34
    %vm181 = vcmp.eq.s32.totalorder %v94, %v35
    %vm182 = vcmp.eq.s32.totalorder %v97, %v34
    %vm183 = vcmp.eq.s32.totalorder %v97, %v35
    %vm184 = vcmp.eq.s32.totalorder %v100, %v34
    %vm185 = vcmp.eq.s32.totalorder %v100, %v35
    %vm186 = vcmp.eq.s32.totalorder %v103, %v34
    %vm187 = vcmp.eq.s32.totalorder %v103, %v35
    %vm188 = vcmp.eq.s32.totalorder %v106, %v34
    %vm189 = vcmp.eq.s32.totalorder %v106, %v35
    %vm190 = vcmp.eq.s32.totalorder %v109, %v34
    %vm191 = vcmp.eq.s32.totalorder %v109, %v35
    %vm192 = vcmp.eq.s32.totalorder %v112, %v34
    %vm193 = vcmp.eq.s32.totalorder %v112, %v35
    %vm194 = vcmp.eq.s32.totalorder %v115, %v34
    %vm195 = vcmp.eq.s32.totalorder %v115, %v35
    %vm196 = vcmp.eq.s32.totalorder %v118, %v34
    %vm197 = vcmp.eq.s32.totalorder %v118, %v35
    %vm198 = vcmp.eq.s32.totalorder %v121, %v34
    %vm199 = vcmp.eq.s32.totalorder %v121, %v35
    %vm200 = vcmp.eq.s32.totalorder %v124, %v34
    %vm201 = vcmp.eq.s32.totalorder %v124, %v35
    %vm202 = vcmp.eq.s32.totalorder %v127, %v34
    %vm203 = vcmp.eq.s32.totalorder %v127, %v35
    %vm204 = vcmp.eq.s32.totalorder %v130, %v34
    %vm205 = vcmp.eq.s32.totalorder %v130, %v35
    %vm206 = vcmp.eq.s32.totalorder %v133, %v34
    %vm207 = vcmp.eq.s32.totalorder %v133, %v35
    %vm208 = vcmp.eq.s32.totalorder %v136, %v34
    %vm209 = vcmp.eq.s32.totalorder %v136, %v35
    %vm210 = vcmp.eq.s32.totalorder %v139, %v34
    %vm211 = vcmp.eq.s32.totalorder %v139, %v35
    %vm212 = vcmp.eq.s32.totalorder %v142, %v34
    %vm213 = vcmp.eq.s32.totalorder %v142, %v35
    %vm214 = vcmp.eq.s32.totalorder %v145, %v34
    %vm215 = vcmp.eq.s32.totalorder %v145, %v35
    %vm216 = vcmp.eq.s32.totalorder %v148, %v34
    %vm217 = vcmp.eq.s32.totalorder %v148, %v35
    %vm218 = vcmp.eq.s32.totalorder %v151, %v34
    %vm219 = vcmp.eq.s32.totalorder %v151, %v35
    %vm220 = vcmp.eq.s32.totalorder %v154, %v34
    %vm221 = vcmp.eq.s32.totalorder %v154, %v35
    %vm222 = vcmp.eq.s32.totalorder %v157, %v34
    %vm223 = vcmp.eq.s32.totalorder %v157, %v35
    %vm224 = vcmp.eq.s32.totalorder %v160, %v34
    %vm225 = vcmp.eq.s32.totalorder %v160, %v35
    %vm226 = vcmp.eq.s32.totalorder %v163, %v34
    %vm227 = vcmp.eq.s32.totalorder %v163, %v35
    %v228 = vld [vmem:[%s1] sm:$0xff]
    %v229 = vld [vmem:[%s1 + $0x8] sm:$0xff]
    %v230 = vld [vmem:[%s1 + $0x10] sm:$0xff]
    %v231 = vld [vmem:[%s1 + $0x18] sm:$0xff]
    %v232 = vld [vmem:[%s1 + $0x20] sm:$0xff]
    %v233 = vld [vmem:[%s1 + $0x28] sm:$0xff]
    %v234 = vld [vmem:[%s1 + $0x30] sm:$0xff]
    %v235 = vld [vmem:[%s1 + $0x38] sm:$0xff]
    %v236 = vld [vmem:[%s1 + $0x40] sm:$0xff]
    %v237 = vld [vmem:[%s1 + $0x48] sm:$0xff]
    %v238 = vld [vmem:[%s1 + $0x50] sm:$0xff]
    %v239 = vld [vmem:[%s1 + $0x58] sm:$0xff]
    %v240 = vld [vmem:[%s1 + $0x60] sm:$0xff]
    %v241 = vld [vmem:[%s1 + $0x68] sm:$0xff]
    %v242 = vld [vmem:[%s1 + $0x70] sm:$0xff]
    %v243 = vld [vmem:[%s1 + $0x78] sm:$0xff]
    %v244 = vld [vmem:[%s1 + $0x80] sm:$0xff]
    %v245 = vld [vmem:[%s1 + $0x88] sm:$0xff]
    %v246 = vld [vmem:[%s1 + $0x90] sm:$0xff]
    %v247 = vld [vmem:[%s1 + $0x98] sm:$0xff]
    %v248 = vld [vmem:[%s1 + $0xa0] sm:$0xff]
    %v249 = vld [vmem:[%s1 + $0xa8] sm:$0xff]
    %v250 = vld [vmem:[%s1 + $0xb0] sm:$0xff]
    %v251 = vld [vmem:[%s1 + $0xb8] sm:$0xff]
    %v252 = vld [vmem:[%s1 + $0xc0] sm:$0xff]
    %v253 = vld [vmem:[%s1 + $0xc8] sm:$0xff]
    %v254 = vld [vmem:[%s1 + $0xd0] sm:$0xff]
    %v255 = vld [vmem:[%s1 + $0xd8] sm:$0xff]
    %v256 = vld [vmem:[%s1 + $0xe0] sm:$0xff]
    %v257 = vld [vmem:[%s1 + $0xe8] sm:$0xff]
    %v258 = vld [vmem:[%s1 + $0xf0] sm:$0xff]
    %v259 = vld [vmem:[%s1 + $0xf8] sm:$0xff]
    %260 = vset.pattern.permute.xlu0 0
    %261 = vperm.xlu0 %260, %v228
    %v262 = vpop.permute.xlu0 %261
    %263 = vset.pattern.permute.xlu0 0
    %264 = vperm.xlu0 %263, %v229
    %v265 = vpop.permute.xlu0 %264
    %266 = vset.pattern.permute.xlu0 0
    %267 = vperm.xlu0 %266, %v230
    %v268 = vpop.permute.xlu0 %267
    %269 = vset.pattern.permute.xlu0 0
    %270 = vperm.xlu0 %269, %v231
    %v271 = vpop.permute.xlu0 %270
    %272 = vset.pattern.permute.xlu0 0
    %273 = vperm.xlu0 %272, %v232
    %v274 = vpop.permute.xlu0 %273
    %275 = vset.pattern.permute.xlu0 0
    %276 = vperm.xlu0 %275, %v233
    %v277 = vpop.permute.xlu0 %276
    %278 = vset.pattern.permute.xlu0 0
    %279 = vperm.xlu0 %278, %v234
    %v280 = vpop.permute.xlu0 %279
    %281 = vset.pattern.permute.xlu0 0
    %282 = vperm.xlu0 %281, %v235
    %v283 = vpop.permute.xlu0 %282
    %284 = vset.pattern.permute.xlu0 0
    %285 = vperm.xlu0 %284, %v236
    %v286 = vpop.permute.xlu0 %285
    %287 = vset.pattern.permute.xlu0 0
    %288 = vperm.xlu0 %287, %v237
    %v289 = vpop.permute.xlu0 %288
    %290 = vset.pattern.permute.xlu0 0
    %291 = vperm.xlu0 %290, %v238
    %v292 = vpop.permute.xlu0 %291
    %293 = vset.pattern.permute.xlu0 0
    %294 = vperm.xlu0 %293, %v239
    %v295 = vpop.permute.xlu0 %294
    %296 = vset.pattern.permute.xlu0 0
    %297 = vperm.xlu0 %296, %v240
    %v298 = vpop.permute.xlu0 %297
    %299 = vset.pattern.permute.xlu0 0
    %300 = vperm.xlu0 %299, %v241
    %v301 = vpop.permute.xlu0 %300
    %302 = vset.pattern.permute.xlu0 0
    %303 = vperm.xlu0 %302, %v242
    %v304 = vpop.permute.xlu0 %303
    %305 = vset.pattern.permute.xlu0 0
    %306 = vperm.xlu0 %305, %v243
    %v307 = vpop.permute.xlu0 %306
    %308 = vset.pattern.permute.xlu0 0
    %309 = vperm.xlu0 %308, %v244
    %v310 = vpop.permute.xlu0 %309
    %311 = vset.pattern.permute.xlu0 0
    %312 = vperm.xlu0 %311, %v245
    %v313 = vpop.permute.xlu0 %312
    %314 = vset.pattern.permute.xlu0 0
    %315 = vperm.xlu0 %314, %v246
    %v316 = vpop.permute.xlu0 %315
    %317 = vset.pattern.permute.xlu0 0
    %318 = vperm.xlu0 %317, %v247
    %v319 = vpop.permute.xlu0 %318
    %320 = vset.pattern.permute.xlu0 0
    %321 = vperm.xlu0 %320, %v248
    %v322 = vpop.permute.xlu0 %321
    %323 = vset.pattern.permute.xlu0 0
    %324 = vperm.xlu0 %323, %v249
    %v325 = vpop.permute.xlu0 %324
    %326 = vset.pattern.permute.xlu0 0
    %327 = vperm.xlu0 %326, %v250
    %v328 = vpop.permute.xlu0 %327
    %329 = vset.pattern.permute.xlu0 0
    %330 = vperm.xlu0 %329, %v251
    %v331 = vpop.permute.xlu0 %330
    %332 = vset.pattern.permute.xlu0 0
    %333 = vperm.xlu0 %332, %v252
    %v334 = vpop.permute.xlu0 %333
    %335 = vset.pattern.permute.xlu0 0
    %336 = vperm.xlu0 %335, %v253
    %v337 = vpop.permute.xlu0 %336
    %338 = vset.pattern.permute.xlu0 0
    %339 = vperm.xlu0 %338, %v254
    %v340 = vpop.permute.xlu0 %339
    %341 = vset.pattern.permute.xlu0 0
    %342 = vperm.xlu0 %341, %v255
    %v343 = vpop.permute.xlu0 %342
    %344 = vset.pattern.permute.xlu0 0
    %345 = vperm.xlu0 %344, %v256
    %v346 = vpop.permute.xlu0 %345
    %347 = vset.pattern.permute.xlu0 0
    %348 = vperm.xlu0 %347, %v257
    %v349 = vpop.permute.xlu0 %348
    %350 = vset.pattern.permute.xlu0 0
    %351 = vperm.xlu0 %350, %v258
    %v352 = vpop.permute.xlu0 %351
    %353 = vset.pattern.permute.xlu0 0
    %354 = vperm.xlu0 %353, %v259
    %v355 = vpop.permute.xlu0 %354
    %vm356 = vcmp.eq.s32.totalorder %v262, %v34
    %vm357 = vcmp.eq.s32.totalorder %v262, %v35
    %vm358 = vcmp.eq.s32.totalorder %v265, %v34
    %vm359 = vcmp.eq.s32.totalorder %v265, %v35
    %vm360 = vcmp.eq.s32.totalorder %v268, %v34
    %vm361 = vcmp.eq.s32.totalorder %v268, %v35
    %vm362 = vcmp.eq.s32.totalorder %v271, %v34
    %vm363 = vcmp.eq.s32.totalorder %v271, %v35
    %vm364 = vcmp.eq.s32.totalorder %v274, %v34
    %vm365 = vcmp.eq.s32.totalorder %v274, %v35
    %vm366 = vcmp.eq.s32.totalorder %v277, %v34
    %vm367 = vcmp.eq.s32.totalorder %v277, %v35
    %vm368 = vcmp.eq.s32.totalorder %v280, %v34
    %vm369 = vcmp.eq.s32.totalorder %v280, %v35
    %vm370 = vcmp.eq.s32.totalorder %v283, %v34
    %vm371 = vcmp.eq.s32.totalorder %v283, %v35
    %vm372 = vcmp.eq.s32.totalorder %v286, %v34
    %vm373 = vcmp.eq.s32.totalorder %v286, %v35
    %vm374 = vcmp.eq.s32.totalorder %v289, %v34
    %vm375 = vcmp.eq.s32.totalorder %v289, %v35
    %vm376 = vcmp.eq.s32.totalorder %v292, %v34
    %vm377 = vcmp.eq.s32.totalorder %v292, %v35
    %vm378 = vcmp.eq.s32.totalorder %v295, %v34
    %vm379 = vcmp.eq.s32.totalorder %v295, %v35
    %vm380 = vcmp.eq.s32.totalorder %v298, %v34
    %vm381 = vcmp.eq.s32.totalorder %v298, %v35
    %vm382 = vcmp.eq.s32.totalorder %v301, %v34
    %vm383 = vcmp.eq.s32.totalorder %v301, %v35
    %vm384 = vcmp.eq.s32.totalorder %v304, %v34
    %vm385 = vcmp.eq.s32.totalorder %v304, %v35
    %vm386 = vcmp.eq.s32.totalorder %v307, %v34
    %vm387 = vcmp.eq.s32.totalorder %v307, %v35
    %vm388 = vcmp.eq.s32.totalorder %v310, %v34
    %vm389 = vcmp.eq.s32.totalorder %v310, %v35
    %vm390 = vcmp.eq.s32.totalorder %v313, %v34
    %vm391 = vcmp.eq.s32.totalorder %v313, %v35
    %vm392 = vcmp.eq.s32.totalorder %v316, %v34
    %vm393 = vcmp.eq.s32.totalorder %v316, %v35
    %vm394 = vcmp.eq.s32.totalorder %v319, %v34
    %vm395 = vcmp.eq.s32.totalorder %v319, %v35
    %vm396 = vcmp.eq.s32.totalorder %v322, %v34
    %vm397 = vcmp.eq.s32.totalorder %v322, %v35
    %vm398 = vcmp.eq.s32.totalorder %v325, %v34
    %vm399 = vcmp.eq.s32.totalorder %v325, %v35
    %vm400 = vcmp.eq.s32.totalorder %v328, %v34
    %vm401 = vcmp.eq.s32.totalorder %v328, %v35
    %vm402 = vcmp.eq.s32.totalorder %v331, %v34
    %vm403 = vcmp.eq.s32.totalorder %v331, %v35
    %vm404 = vcmp.eq.s32.totalorder %v334, %v34
    %vm405 = vcmp.eq.s32.totalorder %v334, %v35
    %vm406 = vcmp.eq.s32.totalorder %v337, %v34
    %vm407 = vcmp.eq.s32.totalorder %v337, %v35
    %vm408 = vcmp.eq.s32.totalorder %v340, %v34
    %vm409 = vcmp.eq.s32.totalorder %v340, %v35
    %vm410 = vcmp.eq.s32.totalorder %v343, %v34
    %vm411 = vcmp.eq.s32.totalorder %v343, %v35
    %vm412 = vcmp.eq.s32.totalorder %v346, %v34
    %vm413 = vcmp.eq.s32.totalorder %v346, %v35
    %vm414 = vcmp.eq.s32.totalorder %v349, %v34
    %vm415 = vcmp.eq.s32.totalorder %v349, %v35
    %vm416 = vcmp.eq.s32.totalorder %v352, %v34
    %vm417 = vcmp.eq.s32.totalorder %v352, %v35
    %vm418 = vcmp.eq.s32.totalorder %v355, %v34
    %vm419 = vcmp.eq.s32.totalorder %v355, %v35
    %vm420 = vmor %vm164, %vm356
    %vm421 = vmor %vm165, %vm357
    %vm422 = vmor %vm166, %vm358
    %vm423 = vmor %vm167, %vm359
    %vm424 = vmor %vm168, %vm360
    %vm425 = vmor %vm169, %vm361
    %vm426 = vmor %vm170, %vm362
    %vm427 = vmor %vm171, %vm363
    %vm428 = vmor %vm172, %vm364
    %vm429 = vmor %vm173, %vm365
    %vm430 = vmor %vm174, %vm366
    %vm431 = vmor %vm175, %vm367
    %vm432 = vmor %vm176, %vm368
    %vm433 = vmor %vm177, %vm369
    %vm434 = vmor %vm178, %vm370
    %vm435 = vmor %vm179, %vm371
    %vm436 = vmor %vm180, %vm372
    %vm437 = vmor %vm181, %vm373
    %vm438 = vmor %vm182, %vm374
    %vm439 = vmor %vm183, %vm375
    %vm440 = vmor %vm184, %vm376
    %vm441 = vmor %vm185, %vm377
    %vm442 = vmor %vm186, %vm378
    %vm443 = vmor %vm187, %vm379
    %vm444 = vmor %vm188, %vm380
    %vm445 = vmor %vm189, %vm381
    %vm446 = vmor %vm190, %vm382
    %vm447 = vmor %vm191, %vm383
    %vm448 = vmor %vm192, %vm384
    %vm449 = vmor %vm193, %vm385
    %vm450 = vmor %vm194, %vm386
    %vm451 = vmor %vm195, %vm387
    %vm452 = vmor %vm196, %vm388
    %vm453 = vmor %vm197, %vm389
    %vm454 = vmor %vm198, %vm390
    %vm455 = vmor %vm199, %vm391
    %vm456 = vmor %vm200, %vm392
    %vm457 = vmor %vm201, %vm393
    %vm458 = vmor %vm202, %vm394
    %vm459 = vmor %vm203, %vm395
    %vm460 = vmor %vm204, %vm396
    %vm461 = vmor %vm205, %vm397
    %vm462 = vmor %vm206, %vm398
    %vm463 = vmor %vm207, %vm399
    %vm464 = vmor %vm208, %vm400
    %vm465 = vmor %vm209, %vm401
    %vm466 = vmor %vm210, %vm402
    %vm467 = vmor %vm211, %vm403
    %vm468 = vmor %vm212, %vm404
    %vm469 = vmor %vm213, %vm405
    %vm470 = vmor %vm214, %vm406
    %vm471 = vmor %vm215, %vm407
    %vm472 = vmor %vm216, %vm408
    %vm473 = vmor %vm217, %vm409
    %vm474 = vmor %vm218, %vm410
    %vm475 = vmor %vm219, %vm411
    %vm476 = vmor %vm220, %vm412
    %vm477 = vmor %vm221, %vm413
    %vm478 = vmor %vm222, %vm414
    %vm479 = vmor %vm223, %vm415
    %vm480 = vmor %vm224, %vm416
    %vm481 = vmor %vm225, %vm417
    %vm482 = vmor %vm226, %vm418
    %vm483 = vmor %vm227, %vm419
    %v484 = vld [vmem:[%s2] sm:$0xff]
    %v485 = vld [vmem:[%s2 + $0x8] sm:$0xff]
    %v486 = vld [vmem:[%s2 + $0x10] sm:$0xff]
    %v487 = vld [vmem:[%s2 + $0x18] sm:$0xff]
    %v488 = vld [vmem:[%s2 + $0x20] sm:$0xff]
    %v489 = vld [vmem:[%s2 + $0x28] sm:$0xff]
    %v490 = vld [vmem:[%s2 + $0x30] sm:$0xff]
    %v491 = vld [vmem:[%s2 + $0x38] sm:$0xff]
    %v492 = vld [vmem:[%s2 + $0x40] sm:$0xff]
    %v493 = vld [vmem:[%s2 + $0x48] sm:$0xff]
    %v494 = vld [vmem:[%s2 + $0x50] sm:$0xff]
    %v495 = vld [vmem:[%s2 + $0x58] sm:$0xff]
    %v496 = vld [vmem:[%s2 + $0x60] sm:$0xff]
    %v497 = vld [vmem:[%s2 + $0x68] sm:$0xff]
    %v498 = vld [vmem:[%s2 + $0x70] sm:$0xff]
    %v499 = vld [vmem:[%s2 + $0x78] sm:$0xff]
    %v500 = vld [vmem:[%s2 + $0x80] sm:$0xff]
    %v501 = vld [vmem:[%s2 + $0x88] sm:$0xff]
    %v502 = vld [vmem:[%s2 + $0x90] sm:$0xff]
    %v503 = vld [vmem:[%s2 + $0x98] sm:$0xff]
    %v504 = vld [vmem:[%s2 + $0xa0] sm:$0xff]
    %v505 = vld [vmem:[%s2 + $0xa8] sm:$0xff]
    %v506 = vld [vmem:[%s2 + $0xb0] sm:$0xff]
    %v507 = vld [vmem:[%s2 + $0xb8] sm:$0xff]
    %v508 = vld [vmem:[%s2 + $0xc0] sm:$0xff]
    %v509 = vld [vmem:[%s2 + $0xc8] sm:$0xff]
    %v510 = vld [vmem:[%s2 + $0xd0] sm:$0xff]
    %v511 = vld [vmem:[%s2 + $0xd8] sm:$0xff]
    %v512 = vld [vmem:[%s2 + $0xe0] sm:$0xff]
    %v513 = vld [vmem:[%s2 + $0xe8] sm:$0xff]
    %v514 = vld [vmem:[%s2 + $0xf0] sm:$0xff]
    %v515 = vld [vmem:[%s2 + $0xf8] sm:$0xff]
    %516 = vset.pattern.permute.xlu0 0
    %517 = vperm.xlu0 %516, %v484
    %v518 = vpop.permute.xlu0 %517
    %519 = vset.pattern.permute.xlu0 0
    %520 = vperm.xlu0 %519, %v485
    %v521 = vpop.permute.xlu0 %520
    %522 = vset.pattern.permute.xlu0 0
    %523 = vperm.xlu0 %522, %v486
    %v524 = vpop.permute.xlu0 %523
    %525 = vset.pattern.permute.xlu0 0
    %526 = vperm.xlu0 %525, %v487
    %v527 = vpop.permute.xlu0 %526
    %528 = vset.pattern.permute.xlu0 0
    %529 = vperm.xlu0 %528, %v488
    %v530 = vpop.permute.xlu0 %529
    %531 = vset.pattern.permute.xlu0 0
    %532 = vperm.xlu0 %531, %v489
    %v533 = vpop.permute.xlu0 %532
    %534 = vset.pattern.permute.xlu0 0
    %535 = vperm.xlu0 %534, %v490
    %v536 = vpop.permute.xlu0 %535
    %537 = vset.pattern.permute.xlu0 0
    %538 = vperm.xlu0 %537, %v491
    %v539 = vpop.permute.xlu0 %538
    %540 = vset.pattern.permute.xlu0 0
    %541 = vperm.xlu0 %540, %v492
    %v542 = vpop.permute.xlu0 %541
    %543 = vset.pattern.permute.xlu0 0
    %544 = vperm.xlu0 %543, %v493
    %v545 = vpop.permute.xlu0 %544
    %546 = vset.pattern.permute.xlu0 0
    %547 = vperm.xlu0 %546, %v494
    %v548 = vpop.permute.xlu0 %547
    %549 = vset.pattern.permute.xlu0 0
    %550 = vperm.xlu0 %549, %v495
    %v551 = vpop.permute.xlu0 %550
    %552 = vset.pattern.permute.xlu0 0
    %553 = vperm.xlu0 %552, %v496
    %v554 = vpop.permute.xlu0 %553
    %555 = vset.pattern.permute.xlu0 0
    %556 = vperm.xlu0 %555, %v497
    %v557 = vpop.permute.xlu0 %556
    %558 = vset.pattern.permute.xlu0 0
    %559 = vperm.xlu0 %558, %v498
    %v560 = vpop.permute.xlu0 %559
    %561 = vset.pattern.permute.xlu0 0
    %562 = vperm.xlu0 %561, %v499
    %v563 = vpop.permute.xlu0 %562
    %564 = vset.pattern.permute.xlu0 0
    %565 = vperm.xlu0 %564, %v500
    %v566 = vpop.permute.xlu0 %565
    %567 = vset.pattern.permute.xlu0 0
    %568 = vperm.xlu0 %567, %v501
    %v569 = vpop.permute.xlu0 %568
    %570 = vset.pattern.permute.xlu0 0
    %571 = vperm.xlu0 %570, %v502
    %v572 = vpop.permute.xlu0 %571
    %573 = vset.pattern.permute.xlu0 0
    %574 = vperm.xlu0 %573, %v503
    %v575 = vpop.permute.xlu0 %574
    %576 = vset.pattern.permute.xlu0 0
    %577 = vperm.xlu0 %576, %v504
    %v578 = vpop.permute.xlu0 %577
    %579 = vset.pattern.permute.xlu0 0
    %580 = vperm.xlu0 %579, %v505
    %v581 = vpop.permute.xlu0 %580
    %582 = vset.pattern.permute.xlu0 0
    %583 = vperm.xlu0 %582, %v506
    %v584 = vpop.permute.xlu0 %583
    %585 = vset.pattern.permute.xlu0 0
    %586 = vperm.xlu0 %585, %v507
    %v587 = vpop.permute.xlu0 %586
    %588 = vset.pattern.permute.xlu0 0
    %589 = vperm.xlu0 %588, %v508
    %v590 = vpop.permute.xlu0 %589
    %591 = vset.pattern.permute.xlu0 0
    %592 = vperm.xlu0 %591, %v509
    %v593 = vpop.permute.xlu0 %592
    %594 = vset.pattern.permute.xlu0 0
    %595 = vperm.xlu0 %594, %v510
    %v596 = vpop.permute.xlu0 %595
    %597 = vset.pattern.permute.xlu0 0
    %598 = vperm.xlu0 %597, %v511
    %v599 = vpop.permute.xlu0 %598
    %600 = vset.pattern.permute.xlu0 0
    %601 = vperm.xlu0 %600, %v512
    %v602 = vpop.permute.xlu0 %601
    %603 = vset.pattern.permute.xlu0 0
    %604 = vperm.xlu0 %603, %v513
    %v605 = vpop.permute.xlu0 %604
    %606 = vset.pattern.permute.xlu0 0
    %607 = vperm.xlu0 %606, %v514
    %v608 = vpop.permute.xlu0 %607
    %609 = vset.pattern.permute.xlu0 0
    %610 = vperm.xlu0 %609, %v515
    %v611 = vpop.permute.xlu0 %610
    %vm612 = vcmp.eq.s32.totalorder %v518, %v34
    %vm613 = vcmp.eq.s32.totalorder %v518, %v35
    %vm614 = vcmp.eq.s32.totalorder %v521, %v34
    %vm615 = vcmp.eq.s32.totalorder %v521, %v35
    %vm616 = vcmp.eq.s32.totalorder %v524, %v34
    %vm617 = vcmp.eq.s32.totalorder %v524, %v35
    %vm618 = vcmp.eq.s32.totalorder %v527, %v34
    %vm619 = vcmp.eq.s32.totalorder %v527, %v35
    %vm620 = vcmp.eq.s32.totalorder %v530, %v34
    %vm621 = vcmp.eq.s32.totalorder %v530, %v35
    %vm622 = vcmp.eq.s32.totalorder %v533, %v34
    %vm623 = vcmp.eq.s32.totalorder %v533, %v35
    %vm624 = vcmp.eq.s32.totalorder %v536, %v34
    %vm625 = vcmp.eq.s32.totalorder %v536, %v35
    %vm626 = vcmp.eq.s32.totalorder %v539, %v34
    %vm627 = vcmp.eq.s32.totalorder %v539, %v35
    %vm628 = vcmp.eq.s32.totalorder %v542, %v34
    %vm629 = vcmp.eq.s32.totalorder %v542, %v35
    %vm630 = vcmp.eq.s32.totalorder %v545, %v34
    %vm631 = vcmp.eq.s32.totalorder %v545, %v35
    %vm632 = vcmp.eq.s32.totalorder %v548, %v34
    %vm633 = vcmp.eq.s32.totalorder %v548, %v35
    %vm634 = vcmp.eq.s32.totalorder %v551, %v34
    %vm635 = vcmp.eq.s32.totalorder %v551, %v35
    %vm636 = vcmp.eq.s32.totalorder %v554, %v34
    %vm637 = vcmp.eq.s32.totalorder %v554, %v35
    %vm638 = vcmp.eq.s32.totalorder %v557, %v34
    %vm639 = vcmp.eq.s32.totalorder %v557, %v35
    %vm640 = vcmp.eq.s32.totalorder %v560, %v34
    %vm641 = vcmp.eq.s32.totalorder %v560, %v35
    %vm642 = vcmp.eq.s32.totalorder %v563, %v34
    %vm643 = vcmp.eq.s32.totalorder %v563, %v35
    %vm644 = vcmp.eq.s32.totalorder %v566, %v34
    %vm645 = vcmp.eq.s32.totalorder %v566, %v35
    %vm646 = vcmp.eq.s32.totalorder %v569, %v34
    %vm647 = vcmp.eq.s32.totalorder %v569, %v35
    %vm648 = vcmp.eq.s32.totalorder %v572, %v34
    %vm649 = vcmp.eq.s32.totalorder %v572, %v35
    %vm650 = vcmp.eq.s32.totalorder %v575, %v34
    %vm651 = vcmp.eq.s32.totalorder %v575, %v35
    %vm652 = vcmp.eq.s32.totalorder %v578, %v34
    %vm653 = vcmp.eq.s32.totalorder %v578, %v35
    %vm654 = vcmp.eq.s32.totalorder %v581, %v34
    %vm655 = vcmp.eq.s32.totalorder %v581, %v35
    %vm656 = vcmp.eq.s32.totalorder %v584, %v34
    %vm657 = vcmp.eq.s32.totalorder %v584, %v35
    %vm658 = vcmp.eq.s32.totalorder %v587, %v34
    %vm659 = vcmp.eq.s32.totalorder %v587, %v35
    %vm660 = vcmp.eq.s32.totalorder %v590, %v34
    %vm661 = vcmp.eq.s32.totalorder %v590, %v35
    %vm662 = vcmp.eq.s32.totalorder %v593, %v34
    %vm663 = vcmp.eq.s32.totalorder %v593, %v35
    %vm664 = vcmp.eq.s32.totalorder %v596, %v34
    %vm665 = vcmp.eq.s32.totalorder %v596, %v35
    %vm666 = vcmp.eq.s32.totalorder %v599, %v34
    %vm667 = vcmp.eq.s32.totalorder %v599, %v35
    %vm668 = vcmp.eq.s32.totalorder %v602, %v34
    %vm669 = vcmp.eq.s32.totalorder %v602, %v35
    %vm670 = vcmp.eq.s32.totalorder %v605, %v34
    %vm671 = vcmp.eq.s32.totalorder %v605, %v35
    %vm672 = vcmp.eq.s32.totalorder %v608, %v34
    %vm673 = vcmp.eq.s32.totalorder %v608, %v35
    %vm674 = vcmp.eq.s32.totalorder %v611, %v34
    %vm675 = vcmp.eq.s32.totalorder %v611, %v35
    %vm676 = vmor %vm420, %vm612
    %vm677 = vmor %vm421, %vm613
    %vm678 = vmor %vm422, %vm614
    %vm679 = vmor %vm423, %vm615
    %vm680 = vmor %vm424, %vm616
    %vm681 = vmor %vm425, %vm617
    %vm682 = vmor %vm426, %vm618
    %vm683 = vmor %vm427, %vm619
    %vm684 = vmor %vm428, %vm620
    %vm685 = vmor %vm429, %vm621
    %vm686 = vmor %vm430, %vm622
    %vm687 = vmor %vm431, %vm623
    %vm688 = vmor %vm432, %vm624
    %vm689 = vmor %vm433, %vm625
    %vm690 = vmor %vm434, %vm626
    %vm691 = vmor %vm435, %vm627
    %vm692 = vmor %vm436, %vm628
    %vm693 = vmor %vm437, %vm629
    %vm694 = vmor %vm438, %vm630
    %vm695 = vmor %vm439, %vm631
    %vm696 = vmor %vm440, %vm632
    %vm697 = vmor %vm441, %vm633
    %vm698 = vmor %vm442, %vm634
    %vm699 = vmor %vm443, %vm635
    %vm700 = vmor %vm444, %vm636
    %vm701 = vmor %vm445, %vm637
    %vm702 = vmor %vm446, %vm638
    %vm703 = vmor %vm447, %vm639
    %vm704 = vmor %vm448, %vm640
    %vm705 = vmor %vm449, %vm641
    %vm706 = vmor %vm450, %vm642
    %vm707 = vmor %vm451, %vm643
    %vm708 = vmor %vm452, %vm644
    %vm709 = vmor %vm453, %vm645
    %vm710 = vmor %vm454, %vm646
    %vm711 = vmor %vm455, %vm647
    %vm712 = vmor %vm456, %vm648
    %vm713 = vmor %vm457, %vm649
    %vm714 = vmor %vm458, %vm650
    %vm715 = vmor %vm459, %vm651
    %vm716 = vmor %vm460, %vm652
    %vm717 = vmor %vm461, %vm653
    %vm718 = vmor %vm462, %vm654
    %vm719 = vmor %vm463, %vm655
    %vm720 = vmor %vm464, %vm656
    %vm721 = vmor %vm465, %vm657
    %vm722 = vmor %vm466, %vm658
    %vm723 = vmor %vm467, %vm659
    %vm724 = vmor %vm468, %vm660
    %vm725 = vmor %vm469, %vm661
    %vm726 = vmor %vm470, %vm662
    %vm727 = vmor %vm471, %vm663
    %vm728 = vmor %vm472, %vm664
    %vm729 = vmor %vm473, %vm665
    %vm730 = vmor %vm474, %vm666
    %vm731 = vmor %vm475, %vm667
    %vm732 = vmor %vm476, %vm668
    %vm733 = vmor %vm477, %vm669
    %vm734 = vmor %vm478, %vm670
    %vm735 = vmor %vm479, %vm671
    %vm736 = vmor %vm480, %vm672
    %vm737 = vmor %vm481, %vm673
    %vm738 = vmor %vm482, %vm674
    %vm739 = vmor %vm483, %vm675
    %v740 = vsel %vm676, 1, 0
    %v741 = vsel %vm677, 1, 0
    %v742 = vsel %vm678, 1, 0
    %v743 = vsel %vm679, 1, 0
    %v744 = vsel %vm680, 1, 0
    %v745 = vsel %vm681, 1, 0
    %v746 = vsel %vm682, 1, 0
    %v747 = vsel %vm683, 1, 0
    %v748 = vsel %vm684, 1, 0
    %v749 = vsel %vm685, 1, 0
    %v750 = vsel %vm686, 1, 0
    %v751 = vsel %vm687, 1, 0
    %v752 = vsel %vm688, 1, 0
    %v753 = vsel %vm689, 1, 0
    %v754 = vsel %vm690, 1, 0
    %v755 = vsel %vm691, 1, 0
    %v756 = vsel %vm692, 1, 0
    %v757 = vsel %vm693, 1, 0
    %v758 = vsel %vm694, 1, 0
    %v759 = vsel %vm695, 1, 0
    %v760 = vsel %vm696, 1, 0
    %v761 = vsel %vm697, 1, 0
    %v762 = vsel %vm698, 1, 0
    %v763 = vsel %vm699, 1, 0
    %v764 = vsel %vm700, 1, 0
    %v765 = vsel %vm701, 1, 0
    %v766 = vsel %vm702, 1, 0
    %v767 = vsel %vm703, 1, 0
    %v768 = vsel %vm704, 1, 0
    %v769 = vsel %vm705, 1, 0
    %v770 = vsel %vm706, 1, 0
    %v771 = vsel %vm707, 1, 0
    %v772 = vsel %vm708, 1, 0
    %v773 = vsel %vm709, 1, 0
    %v774 = vsel %vm710, 1, 0
    %v775 = vsel %vm711, 1, 0
    %v776 = vsel %vm712, 1, 0
    %v777 = vsel %vm713, 1, 0
    %v778 = vsel %vm714, 1, 0
    %v779 = vsel %vm715, 1, 0
    %v780 = vsel %vm716, 1, 0
    %v781 = vsel %vm717, 1, 0
    %v782 = vsel %vm718, 1, 0
    %v783 = vsel %vm719, 1, 0
    %v784 = vsel %vm720, 1, 0
    %v785 = vsel %vm721, 1, 0
    %v786 = vsel %vm722, 1, 0
    %v787 = vsel %vm723, 1, 0
    %v788 = vsel %vm724, 1, 0
    %v789 = vsel %vm725, 1, 0
    %v790 = vsel %vm726, 1, 0
    %v791 = vsel %vm727, 1, 0
    %v792 = vsel %vm728, 1, 0
    %v793 = vsel %vm729, 1, 0
    %v794 = vsel %vm730, 1, 0
    %v795 = vsel %vm731, 1, 0
    %v796 = vsel %vm732, 1, 0
    %v797 = vsel %vm733, 1, 0
    %v798 = vsel %vm734, 1, 0
    %v799 = vsel %vm735, 1, 0
    %v800 = vsel %vm736, 1, 0
    %v801 = vsel %vm737, 1, 0
    %v802 = vsel %vm738, 1, 0
    %v803 = vsel %vm739, 1, 0
    %v804 = vcvt.s32.f32 %v740
    %v805 = vcvt.s32.f32 %v741
    %v806 = vcvt.s32.f32 %v742
    %v807 = vcvt.s32.f32 %v743
    %v808 = vcvt.s32.f32 %v744
    %v809 = vcvt.s32.f32 %v745
    %v810 = vcvt.s32.f32 %v746
    %v811 = vcvt.s32.f32 %v747
    %v812 = vcvt.s32.f32 %v748
    %v813 = vcvt.s32.f32 %v749
    %v814 = vcvt.s32.f32 %v750
    %v815 = vcvt.s32.f32 %v751
    %v816 = vcvt.s32.f32 %v752
    %v817 = vcvt.s32.f32 %v753
    %v818 = vcvt.s32.f32 %v754
    %v819 = vcvt.s32.f32 %v755
    %v820 = vcvt.s32.f32 %v756
    %v821 = vcvt.s32.f32 %v757
    %v822 = vcvt.s32.f32 %v758
    %v823 = vcvt.s32.f32 %v759
    %v824 = vcvt.s32.f32 %v760
    %v825 = vcvt.s32.f32 %v761
    %v826 = vcvt.s32.f32 %v762
    %v827 = vcvt.s32.f32 %v763
    %v828 = vcvt.s32.f32 %v764
    %v829 = vcvt.s32.f32 %v765
    %v830 = vcvt.s32.f32 %v766
    %v831 = vcvt.s32.f32 %v767
    %v832 = vcvt.s32.f32 %v768
    %v833 = vcvt.s32.f32 %v769
    %v834 = vcvt.s32.f32 %v770
    %v835 = vcvt.s32.f32 %v771
    %v836 = vcvt.s32.f32 %v772
    %v837 = vcvt.s32.f32 %v773
    %v838 = vcvt.s32.f32 %v774
    %v839 = vcvt.s32.f32 %v775
    %v840 = vcvt.s32.f32 %v776
    %v841 = vcvt.s32.f32 %v777
    %v842 = vcvt.s32.f32 %v778
    %v843 = vcvt.s32.f32 %v779
    %v844 = vcvt.s32.f32 %v780
    %v845 = vcvt.s32.f32 %v781
    %v846 = vcvt.s32.f32 %v782
    %v847 = vcvt.s32.f32 %v783
    %v848 = vcvt.s32.f32 %v784
    %v849 = vcvt.s32.f32 %v785
    %v850 = vcvt.s32.f32 %v786
    %v851 = vcvt.s32.f32 %v787
    %v852 = vcvt.s32.f32 %v788
    %v853 = vcvt.s32.f32 %v789
    %v854 = vcvt.s32.f32 %v790
    %v855 = vcvt.s32.f32 %v791
    %v856 = vcvt.s32.f32 %v792
    %v857 = vcvt.s32.f32 %v793
    %v858 = vcvt.s32.f32 %v794
    %v859 = vcvt.s32.f32 %v795
    %v860 = vcvt.s32.f32 %v796
    %v861 = vcvt.s32.f32 %v797
    %v862 = vcvt.s32.f32 %v798
    %v863 = vcvt.s32.f32 %v799
    %v864 = vcvt.s32.f32 %v800
    %v865 = vcvt.s32.f32 %v801
    %v866 = vcvt.s32.f32 %v802
    %v867 = vcvt.s32.f32 %v803
    %v868 = vld [vmem:[%s3] sm:$0xff]
    %v869 = vld [vmem:[%s3 + $0x8] sm:$0xff]
    %v870 = vld [vmem:[%s3 + $0x10] sm:$0xff]
    %v871 = vld [vmem:[%s3 + $0x18] sm:$0xff]
    %v872 = vld [vmem:[%s3 + $0x20] sm:$0xff]
    %v873 = vld [vmem:[%s3 + $0x28] sm:$0xff]
    %v874 = vld [vmem:[%s3 + $0x30] sm:$0xff]
    %v875 = vld [vmem:[%s3 + $0x38] sm:$0xff]
    %v876 = vld [vmem:[%s3 + $0x40] sm:$0xff]
    %v877 = vld [vmem:[%s3 + $0x48] sm:$0xff]
    %v878 = vld [vmem:[%s3 + $0x50] sm:$0xff]
    %v879 = vld [vmem:[%s3 + $0x58] sm:$0xff]
    %v880 = vld [vmem:[%s3 + $0x60] sm:$0xff]
    %v881 = vld [vmem:[%s3 + $0x68] sm:$0xff]
    %v882 = vld [vmem:[%s3 + $0x70] sm:$0xff]
    %v883 = vld [vmem:[%s3 + $0x78] sm:$0xff]
    %v884 = vld [vmem:[%s3 + $0x80] sm:$0xff]
    %v885 = vld [vmem:[%s3 + $0x88] sm:$0xff]
    %v886 = vld [vmem:[%s3 + $0x90] sm:$0xff]
    %v887 = vld [vmem:[%s3 + $0x98] sm:$0xff]
    %v888 = vld [vmem:[%s3 + $0xa0] sm:$0xff]
    %v889 = vld [vmem:[%s3 + $0xa8] sm:$0xff]
    %v890 = vld [vmem:[%s4] sm:$0x1]
    %v892 = vlaneseq
    %v893 = vshrl.u32 %v892, 7
    %v894 = vsub.s32 0, %v893
    %v895 = vrot.slane %v890, %v894
    %vm897 = vcmask 392192
    %v899 = vsel %vm897, %v805, 0
    %v902 = vsel %vm897, %v807, 0
    %v905 = vsel %vm897, %v809, 0
    %v908 = vsel %vm897, %v811, 0
    %v911 = vsel %vm897, %v813, 0
    %v914 = vsel %vm897, %v815, 0
    %v917 = vsel %vm897, %v817, 0
    %v920 = vsel %vm897, %v819, 0
    %v923 = vsel %vm897, %v821, 0
    %v926 = vsel %vm897, %v823, 0
    %v929 = vsel %vm897, %v825, 0
    %v932 = vsel %vm897, %v827, 0
    %v935 = vsel %vm897, %v829, 0
    %v938 = vsel %vm897, %v831, 0
    %v941 = vsel %vm897, %v833, 0
    %v944 = vsel %vm897, %v835, 0
    %v947 = vsel %vm897, %v837, 0
    %v950 = vsel %vm897, %v839, 0
    %v953 = vsel %vm897, %v841, 0
    %v956 = vsel %vm897, %v843, 0
    %v959 = vsel %vm897, %v845, 0
    %v962 = vsel %vm897, %v847, 0
    %v965 = vsel %vm897, %v849, 0
    %v968 = vsel %vm897, %v851, 0
    %v971 = vsel %vm897, %v853, 0
    %v974 = vsel %vm897, %v855, 0
    %v977 = vsel %vm897, %v857, 0
    %v980 = vsel %vm897, %v859, 0
    %v983 = vsel %vm897, %v861, 0
    %v986 = vsel %vm897, %v863, 0
    %v989 = vsel %vm897, %v865, 0
    %v992 = vsel %vm897, %v867, 0
    %994 = vmatprep.subr.mxu0 0.0
    %995 = vmatpush1.msra.mxu0 %v868
    %996 = vmatprep.subr.mxu0 0.0
    %997 = vmatpush1.msra.mxu0 %v869
    %998 = vmatprep.subr.mxu0 0.0
    %999 = vmatpush1.msra.mxu0 %v870
    %1000 = vmatprep.subr.mxu0 0.0
    %1001 = vmatpush1.msra.mxu0 %v871
    %1002 = vmatprep.subr.mxu0 0.0
    %1003 = vmatpush1.msra.mxu0 %v872
    %1004 = vmatprep.subr.mxu0 0.0
    %1005 = vmatpush1.msra.mxu0 %v873
    %1006 = vmatprep.subr.mxu0 0.0
    %1007 = vmatpush1.msra.mxu0 %v874
    %1008 = vmatprep.subr.mxu0 0.0
    %1009 = vmatpush1.msra.mxu0 %v875
    %1010 = vmatprep.subr.mxu0 0.0
    %1011 = vmatpush1.msra.mxu0 %v876
    %1012 = vmatprep.subr.mxu0 0.0
    %1013 = vmatpush1.msra.mxu0 %v877
    %1014 = vmatprep.subr.mxu0 0.0
    %1015 = vmatpush1.msra.mxu0 %v878
    %1016 = vmatprep.subr.mxu0 0.0
    %1017 = vmatpush1.msra.mxu0 %v879
    %1018 = vmatprep.subr.mxu0 0.0
    %1019 = vmatpush1.msra.mxu0 %v880
    %1020 = vmatprep.subr.mxu0 0.0
    %1021 = vmatpush1.msra.mxu0 %v881
    %1022 = vmatprep.subr.mxu0 0.0
    %1023 = vmatpush1.msra.mxu0 %v882
    %1024 = vmatprep.subr.mxu0 0.0
    %1025 = vmatpush1.msra.mxu0 %v883
    %1026 = vmatprep.subr.mxu0 0.0
    %1027 = vmatpush1.msra.mxu0 %v884
    %1028 = vmatprep.subr.mxu0 0.0
    %1029 = vmatpush1.msra.mxu0 %v885
    %1030 = vmatprep.subr.mxu0 0.0
    %1031 = vmatpush1.msra.mxu0 %v886
    %1032 = vmatprep.subr.mxu0 0.0
    %1033 = vmatpush1.msra.mxu0 %v887
    %1034 = vmatprep.subr.mxu0 0.0
    %1035 = vmatpush1.msra.mxu0 %v888
    %1036 = vmatprep.subr.mxu0 0.0
    %1037 = vmatpush1.msra.mxu0 %v889
    %1038 = vmatprep.subr.mxu0 0.0
    %1039 = vmatpush1.msra.mxu0 0.0
    %1040 = vmatprep.subr.mxu0 0.0
    %1041 = vmatpush1.msra.mxu0 0.0
    %1042 = vmatprep.subr.mxu0 0.0
    %1043 = vmatpush1.msra.mxu0 0.0
    %1044 = vmatprep.subr.mxu0 0.0
    %1045 = vmatpush1.msra.mxu0 0.0
    %1046 = vmatprep.subr.mxu0 0.0
    %1047 = vmatpush1.msra.mxu0 0.0
    %1048 = vmatprep.subr.mxu0 0.0
    %1049 = vmatpush1.msra.mxu0 0.0
    %1050 = vmatprep.subr.mxu0 0.0
    %1051 = vmatpush1.msra.mxu0 0.0
    %1052 = vmatprep.subr.mxu0 0.0
    %1053 = vmatpush1.msra.mxu0 0.0
    %1054 = vmatprep.subr.mxu0 0.0
    %1055 = vmatpush1.msra.mxu0 0.0
    %1056 = vmatprep.subr.mxu0 0.0
    %1057 = vmatpush1.msra.mxu0 0.0
    %1058 = vmatprep.mubr.f32.mxu0 %v899
    %1059 = vmatmul.mubr.f32.gmra.mrb[0].mxu0 %v804
    %v1060 = vpop.f32.mrb[0].mxu0
    %v1061 = vadd.f32 %v895, %v1060
    %v1062 = vpop.f32.mrb[0].mxu0
    %1063 = vmatprep.mubr.f32.mxu0 %v902
    %1064 = vmatmul.mubr.f32.gmra.mrb[0].mxu0 %v806
    %v1065 = vpop.f32.mrb[0].mxu0
    %v1066 = vadd.f32 %v895, %v1065
    %v1067 = vpop.f32.mrb[0].mxu0
    %1068 = vmatprep.mubr.f32.mxu0 %v905
    %1069 = vmatmul.mubr.f32.gmra.mrb[0].mxu0 %v808
    %v1070 = vpop.f32.mrb[0].mxu0
    %v1071 = vadd.f32 %v895, %v1070
    %v1072 = vpop.f32.mrb[0].mxu0
    %1073 = vmatprep.mubr.f32.mxu0 %v908
    %1074 = vmatmul.mubr.f32.gmra.mrb[0].mxu0 %v810
    %v1075 = vpop.f32.mrb[0].mxu0
    %v1076 = vadd.f32 %v895, %v1075
    %v1077 = vpop.f32.mrb[0].mxu0
    %1078 = vmatprep.mubr.f32.mxu0 %v911
    %1079 = vmatmul.mubr.f32.gmra.mrb[0].mxu0 %v812
    %v1080 = vpop.f32.mrb[0].mxu0
    %v1081 = vadd.f32 %v895, %v1080
    %v1082 = vpop.f32.mrb[0].mxu0
    %1083 = vmatprep.mubr.f32.mxu0 %v914
    %1084 = vmatmul.mubr.f32.gmra.mrb[0].mxu0 %v814
    %v1085 = vpop.f32.mrb[0].mxu0
    %v1086 = vadd.f32 %v895, %v1085
    %v1087 = vpop.f32.mrb[0].mxu0
    %1088 = vmatprep.mubr.f32.mxu0 %v917
    %1089 = vmatmul.mubr.f32.gmra.mrb[0].mxu0 %v816
    %v1090 = vpop.f32.mrb[0].mxu0
    %v1091 = vadd.f32 %v895, %v1090
    %v1092 = vpop.f32.mrb[0].mxu0
    %1093 = vmatprep.mubr.f32.mxu0 %v920
    %1094 = vmatmul.mubr.f32.gmra.mrb[0].mxu0 %v818
    %v1095 = vpop.f32.mrb[0].mxu0
    %v1096 = vadd.f32 %v895, %v1095
    %v1097 = vpop.f32.mrb[0].mxu0
    %1098 = vmatprep.mubr.f32.mxu0 %v923
    %1099 = vmatmul.mubr.f32.gmra.mrb[0].mxu0 %v820
    %v1100 = vpop.f32.mrb[0].mxu0
    %v1101 = vadd.f32 %v895, %v1100
    %v1102 = vpop.f32.mrb[0].mxu0
    %1103 = vmatprep.mubr.f32.mxu0 %v926
    %1104 = vmatmul.mubr.f32.gmra.mrb[0].mxu0 %v822
    %v1105 = vpop.f32.mrb[0].mxu0
    %v1106 = vadd.f32 %v895, %v1105
    %v1107 = vpop.f32.mrb[0].mxu0
    %1108 = vmatprep.mubr.f32.mxu0 %v929
    %1109 = vmatmul.mubr.f32.gmra.mrb[0].mxu0 %v824
    %v1110 = vpop.f32.mrb[0].mxu0
    %v1111 = vadd.f32 %v895, %v1110
    %v1112 = vpop.f32.mrb[0].mxu0
    %1113 = vmatprep.mubr.f32.mxu0 %v932
    %1114 = vmatmul.mubr.f32.gmra.mrb[0].mxu0 %v826
    %v1115 = vpop.f32.mrb[0].mxu0
    %v1116 = vadd.f32 %v895, %v1115
    %v1117 = vpop.f32.mrb[0].mxu0
    %1118 = vmatprep.mubr.f32.mxu0 %v935
    %1119 = vmatmul.mubr.f32.gmra.mrb[0].mxu0 %v828
    %v1120 = vpop.f32.mrb[0].mxu0
    %v1121 = vadd.f32 %v895, %v1120
    %v1122 = vpop.f32.mrb[0].mxu0
    %1123 = vmatprep.mubr.f32.mxu0 %v938
    %1124 = vmatmul.mubr.f32.gmra.mrb[0].mxu0 %v830
    %v1125 = vpop.f32.mrb[0].mxu0
    %v1126 = vadd.f32 %v895, %v1125
    %v1127 = vpop.f32.mrb[0].mxu0
    %1128 = vmatprep.mubr.f32.mxu0 %v941
    %1129 = vmatmul.mubr.f32.gmra.mrb[0].mxu0 %v832
    %v1130 = vpop.f32.mrb[0].mxu0
    %v1131 = vadd.f32 %v895, %v1130
    %v1132 = vpop.f32.mrb[0].mxu0
    %1133 = vmatprep.mubr.f32.mxu0 %v944
    %1134 = vmatmul.mubr.f32.gmra.mrb[0].mxu0 %v834
    %v1135 = vpop.f32.mrb[0].mxu0
    %v1136 = vadd.f32 %v895, %v1135
    %v1137 = vpop.f32.mrb[0].mxu0
    %1138 = vmatprep.mubr.f32.mxu0 %v947
    %1139 = vmatmul.mubr.f32.gmra.mrb[0].mxu0 %v836
    %v1140 = vpop.f32.mrb[0].mxu0
    %v1141 = vadd.f32 %v895, %v1140
    %v1142 = vpop.f32.mrb[0].mxu0
    %1143 = vmatprep.mubr.f32.mxu0 %v950
    %1144 = vmatmul.mubr.f32.gmra.mrb[0].mxu0 %v838
    %v1145 = vpop.f32.mrb[0].mxu0
    %v1146 = vadd.f32 %v895, %v1145
    %v1147 = vpop.f32.mrb[0].mxu0
    %1148 = vmatprep.mubr.f32.mxu0 %v953
    %1149 = vmatmul.mubr.f32.gmra.mrb[0].mxu0 %v840
    %v1150 = vpop.f32.mrb[0].mxu0
    %v1151 = vadd.f32 %v895, %v1150
    %v1152 = vpop.f32.mrb[0].mxu0
    %1153 = vmatprep.mubr.f32.mxu0 %v956
    %1154 = vmatmul.mubr.f32.gmra.mrb[0].mxu0 %v842
    %v1155 = vpop.f32.mrb[0].mxu0
    %v1156 = vadd.f32 %v895, %v1155
    %v1157 = vpop.f32.mrb[0].mxu0
    %1158 = vmatprep.mubr.f32.mxu0 %v959
    %1159 = vmatmul.mubr.f32.gmra.mrb[0].mxu0 %v844
    %v1160 = vpop.f32.mrb[0].mxu0
    %v1161 = vadd.f32 %v895, %v1160
    %v1162 = vpop.f32.mrb[0].mxu0
    %1163 = vmatprep.mubr.f32.mxu0 %v962
    %1164 = vmatmul.mubr.f32.gmra.mrb[0].mxu0 %v846
    %v1165 = vpop.f32.mrb[0].mxu0
    %v1166 = vadd.f32 %v895, %v1165
    %v1167 = vpop.f32.mrb[0].mxu0
    %1168 = vmatprep.mubr.f32.mxu0 %v965
    %1169 = vmatmul.mubr.f32.gmra.mrb[0].mxu0 %v848
    %v1170 = vpop.f32.mrb[0].mxu0
    %v1171 = vadd.f32 %v895, %v1170
    %v1172 = vpop.f32.mrb[0].mxu0
    %1173 = vmatprep.mubr.f32.mxu0 %v968
    %1174 = vmatmul.mubr.f32.gmra.mrb[0].mxu0 %v850
    %v1175 = vpop.f32.mrb[0].mxu0
    %v1176 = vadd.f32 %v895, %v1175
    %v1177 = vpop.f32.mrb[0].mxu0
    %1178 = vmatprep.mubr.f32.mxu0 %v971
    %1179 = vmatmul.mubr.f32.gmra.mrb[0].mxu0 %v852
    %v1180 = vpop.f32.mrb[0].mxu0
    %v1181 = vadd.f32 %v895, %v1180
    %v1182 = vpop.f32.mrb[0].mxu0
    %1183 = vmatprep.mubr.f32.mxu0 %v974
    %1184 = vmatmul.mubr.f32.gmra.mrb[0].mxu0 %v854
    %v1185 = vpop.f32.mrb[0].mxu0
    %v1186 = vadd.f32 %v895, %v1185
    %v1187 = vpop.f32.mrb[0].mxu0
    %1188 = vmatprep.mubr.f32.mxu0 %v977
    %1189 = vmatmul.mubr.f32.gmra.mrb[0].mxu0 %v856
    %v1190 = vpop.f32.mrb[0].mxu0
    %v1191 = vadd.f32 %v895, %v1190
    %v1192 = vpop.f32.mrb[0].mxu0
    %1193 = vmatprep.mubr.f32.mxu0 %v980
    %1194 = vmatmul.mubr.f32.gmra.mrb[0].mxu0 %v858
    %v1195 = vpop.f32.mrb[0].mxu0
    %v1196 = vadd.f32 %v895, %v1195
    %v1197 = vpop.f32.mrb[0].mxu0
    %1198 = vmatprep.mubr.f32.mxu0 %v983
    %1199 = vmatmul.mubr.f32.gmra.mrb[0].mxu0 %v860
    %v1200 = vpop.f32.mrb[0].mxu0
    %v1201 = vadd.f32 %v895, %v1200
    %v1202 = vpop.f32.mrb[0].mxu0
    %1203 = vmatprep.mubr.f32.mxu0 %v986
    %1204 = vmatmul.mubr.f32.gmra.mrb[0].mxu0 %v862
    %v1205 = vpop.f32.mrb[0].mxu0
    %v1206 = vadd.f32 %v895, %v1205
    %v1207 = vpop.f32.mrb[0].mxu0
    %1208 = vmatprep.mubr.f32.mxu0 %v989
    %1209 = vmatmul.mubr.f32.gmra.mrb[0].mxu0 %v864
    %v1210 = vpop.f32.mrb[0].mxu0
    %v1211 = vadd.f32 %v895, %v1210
    %v1212 = vpop.f32.mrb[0].mxu0
    %1213 = vmatprep.mubr.f32.mxu0 %v992
    %1214 = vmatmul.mubr.f32.gmra.mrb[0].mxu0 %v866
    %v1215 = vpop.f32.mrb[0].mxu0
    %v1216 = vadd.f32 %v895, %v1215
    %v1217 = vpop.f32.mrb[0].mxu0
    %1218 = vdwg.mxu0
    %1219 = vadd.xlane.f32.xlu0 %v1061
    %v1220 = vpop.xlane.xlu0 %1219
    %1221 = vadd.xlane.f32.xlu0 %v1066
    %v1222 = vpop.xlane.xlu0 %1221
    %1223 = vadd.xlane.f32.xlu0 %v1071
    %v1224 = vpop.xlane.xlu0 %1223
    %1225 = vadd.xlane.f32.xlu0 %v1076
    %v1226 = vpop.xlane.xlu0 %1225
    %1227 = vadd.xlane.f32.xlu0 %v1081
    %v1228 = vpop.xlane.xlu0 %1227
    %1229 = vadd.xlane.f32.xlu0 %v1086
    %v1230 = vpop.xlane.xlu0 %1229
    %1231 = vadd.xlane.f32.xlu0 %v1091
    %v1232 = vpop.xlane.xlu0 %1231
    %1233 = vadd.xlane.f32.xlu0 %v1096
    %v1234 = vpop.xlane.xlu0 %1233
    %1235 = vadd.xlane.f32.xlu0 %v1101
    %v1236 = vpop.xlane.xlu0 %1235
    %1237 = vadd.xlane.f32.xlu0 %v1106
    %v1238 = vpop.xlane.xlu0 %1237
    %1239 = vadd.xlane.f32.xlu0 %v1111
    %v1240 = vpop.xlane.xlu0 %1239
    %1241 = vadd.xlane.f32.xlu0 %v1116
    %v1242 = vpop.xlane.xlu0 %1241
    %1243 = vadd.xlane.f32.xlu0 %v1121
    %v1244 = vpop.xlane.xlu0 %1243
    %1245 = vadd.xlane.f32.xlu0 %v1126
    %v1246 = vpop.xlane.xlu0 %1245
    %1247 = vadd.xlane.f32.xlu0 %v1131
    %v1248 = vpop.xlane.xlu0 %1247
    %1249 = vadd.xlane.f32.xlu0 %v1136
    %v1250 = vpop.xlane.xlu0 %1249
    %1251 = vadd.xlane.f32.xlu0 %v1141
    %v1252 = vpop.xlane.xlu0 %1251
    %1253 = vadd.xlane.f32.xlu0 %v1146
    %v1254 = vpop.xlane.xlu0 %1253
    %1255 = vadd.xlane.f32.xlu0 %v1151
    %v1256 = vpop.xlane.xlu0 %1255
    %1257 = vadd.xlane.f32.xlu0 %v1156
    %v1258 = vpop.xlane.xlu0 %1257
    %1259 = vadd.xlane.f32.xlu0 %v1161
    %v1260 = vpop.xlane.xlu0 %1259
    %1261 = vadd.xlane.f32.xlu0 %v1166
    %v1262 = vpop.xlane.xlu0 %1261
    %1263 = vadd.xlane.f32.xlu0 %v1171
    %v1264 = vpop.xlane.xlu0 %1263
    %1265 = vadd.xlane.f32.xlu0 %v1176
    %v1266 = vpop.xlane.xlu0 %1265
    %1267 = vadd.xlane.f32.xlu0 %v1181
    %v1268 = vpop.xlane.xlu0 %1267
    %1269 = vadd.xlane.f32.xlu0 %v1186
    %v1270 = vpop.xlane.xlu0 %1269
    %1271 = vadd.xlane.f32.xlu0 %v1191
    %v1272 = vpop.xlane.xlu0 %1271
    %1273 = vadd.xlane.f32.xlu0 %v1196
    %v1274 = vpop.xlane.xlu0 %1273
    %1275 = vadd.xlane.f32.xlu0 %v1201
    %v1276 = vpop.xlane.xlu0 %1275
    %1277 = vadd.xlane.f32.xlu0 %v1206
    %v1278 = vpop.xlane.xlu0 %1277
    %1279 = vadd.xlane.f32.xlu0 %v1211
    %v1280 = vpop.xlane.xlu0 %1279
    %1281 = vadd.xlane.f32.xlu0 %v1216
    %v1282 = vpop.xlane.xlu0 %1281
    %v1283 = vrcp.pop 128.0
    %v1284 = vmul.f32 %v1220, %v1283
    %v1285 = vmul.f32 %v1222, %v1283
    %v1286 = vmul.f32 %v1224, %v1283
    %v1287 = vmul.f32 %v1226, %v1283
    %v1288 = vmul.f32 %v1228, %v1283
    %v1289 = vmul.f32 %v1230, %v1283
    %v1290 = vmul.f32 %v1232, %v1283
    %v1291 = vmul.f32 %v1234, %v1283
    %v1292 = vmul.f32 %v1236, %v1283
    %v1293 = vmul.f32 %v1238, %v1283
    %v1294 = vmul.f32 %v1240, %v1283
    %v1295 = vmul.f32 %v1242, %v1283
    %v1296 = vmul.f32 %v1244, %v1283
    %v1297 = vmul.f32 %v1246, %v1283
    %v1298 = vmul.f32 %v1248, %v1283
    %v1299 = vmul.f32 %v1250, %v1283
    %v1300 = vmul.f32 %v1252, %v1283
    %v1301 = vmul.f32 %v1254, %v1283
    %v1302 = vmul.f32 %v1256, %v1283
    %v1303 = vmul.f32 %v1258, %v1283
    %v1304 = vmul.f32 %v1260, %v1283
    %v1305 = vmul.f32 %v1262, %v1283
    %v1306 = vmul.f32 %v1264, %v1283
    %v1307 = vmul.f32 %v1266, %v1283
    %v1308 = vmul.f32 %v1268, %v1283
    %v1309 = vmul.f32 %v1270, %v1283
    %v1310 = vmul.f32 %v1272, %v1283
    %v1311 = vmul.f32 %v1274, %v1283
    %v1312 = vmul.f32 %v1276, %v1283
    %v1313 = vmul.f32 %v1278, %v1283
    %v1314 = vmul.f32 %v1280, %v1283
    %v1315 = vmul.f32 %v1282, %v1283
    %v1316 = vsub.f32 %v1061, %v1284
    %v1317 = vsub.f32 %v1066, %v1285
    %v1318 = vsub.f32 %v1071, %v1286
    %v1319 = vsub.f32 %v1076, %v1287
    %v1320 = vsub.f32 %v1081, %v1288
    %v1321 = vsub.f32 %v1086, %v1289
    %v1322 = vsub.f32 %v1091, %v1290
    %v1323 = vsub.f32 %v1096, %v1291
    %v1324 = vsub.f32 %v1101, %v1292
    %v1325 = vsub.f32 %v1106, %v1293
    %v1326 = vsub.f32 %v1111, %v1294
    %v1327 = vsub.f32 %v1116, %v1295
    %v1328 = vsub.f32 %v1121, %v1296
    %v1329 = vsub.f32 %v1126, %v1297
    %v1330 = vsub.f32 %v1131, %v1298
    %v1331 = vsub.f32 %v1136, %v1299
    %v1332 = vsub.f32 %v1141, %v1300
    %v1333 = vsub.f32 %v1146, %v1301
    %v1334 = vsub.f32 %v1151, %v1302
    %v1335 = vsub.f32 %v1156, %v1303
    %v1336 = vsub.f32 %v1161, %v1304
    %v1337 = vsub.f32 %v1166, %v1305
    %v1338 = vsub.f32 %v1171, %v1306
    %v1339 = vsub.f32 %v1176, %v1307
    %v1340 = vsub.f32 %v1181, %v1308
    %v1341 = vsub.f32 %v1186, %v1309
    %v1342 = vsub.f32 %v1191, %v1310
    %v1343 = vsub.f32 %v1196, %v1311
    %v1344 = vsub.f32 %v1201, %v1312
    %v1345 = vsub.f32 %v1206, %v1313
    %v1346 = vsub.f32 %v1211, %v1314
    %v1347 = vsub.f32 %v1216, %v1315
    %v1348 = vmul.f32 %v1316, %v1316
    %v1349 = vmul.f32 %v1317, %v1317
    %v1350 = vmul.f32 %v1318, %v1318
    %v1351 = vmul.f32 %v1319, %v1319
    %v1352 = vmul.f32 %v1320, %v1320
    %v1353 = vmul.f32 %v1321, %v1321
    %v1354 = vmul.f32 %v1322, %v1322
    %v1355 = vmul.f32 %v1323, %v1323
    %v1356 = vmul.f32 %v1324, %v1324
    %v1357 = vmul.f32 %v1325, %v1325
    %v1358 = vmul.f32 %v1326, %v1326
    %v1359 = vmul.f32 %v1327, %v1327
    %v1360 = vmul.f32 %v1328, %v1328
    %v1361 = vmul.f32 %v1329, %v1329
    %v1362 = vmul.f32 %v1330, %v1330
    %v1363 = vmul.f32 %v1331, %v1331
    %v1364 = vmul.f32 %v1332, %v1332
    %v1365 = vmul.f32 %v1333, %v1333
    %v1366 = vmul.f32 %v1334, %v1334
    %v1367 = vmul.f32 %v1335, %v1335
    %v1368 = vmul.f32 %v1336, %v1336
    %v1369 = vmul.f32 %v1337, %v1337
    %v1370 = vmul.f32 %v1338, %v1338
    %v1371 = vmul.f32 %v1339, %v1339
    %v1372 = vmul.f32 %v1340, %v1340
    %v1373 = vmul.f32 %v1341, %v1341
    %v1374 = vmul.f32 %v1342, %v1342
    %v1375 = vmul.f32 %v1343, %v1343
    %v1376 = vmul.f32 %v1344, %v1344
    %v1377 = vmul.f32 %v1345, %v1345
    %v1378 = vmul.f32 %v1346, %v1346
    %v1379 = vmul.f32 %v1347, %v1347
    %1380 = vadd.xlane.f32.xlu0 %v1348
    %v1381 = vpop.xlane.xlu0 %1380
    %1382 = vadd.xlane.f32.xlu0 %v1349
    %v1383 = vpop.xlane.xlu0 %1382
    %1384 = vadd.xlane.f32.xlu0 %v1350
    %v1385 = vpop.xlane.xlu0 %1384
    %1386 = vadd.xlane.f32.xlu0 %v1351
    %v1387 = vpop.xlane.xlu0 %1386
    %1388 = vadd.xlane.f32.xlu0 %v1352
    %v1389 = vpop.xlane.xlu0 %1388
    %1390 = vadd.xlane.f32.xlu0 %v1353
    %v1391 = vpop.xlane.xlu0 %1390
    %1392 = vadd.xlane.f32.xlu0 %v1354
    %v1393 = vpop.xlane.xlu0 %1392
    %1394 = vadd.xlane.f32.xlu0 %v1355
    %v1395 = vpop.xlane.xlu0 %1394
    %1396 = vadd.xlane.f32.xlu0 %v1356
    %v1397 = vpop.xlane.xlu0 %1396
    %1398 = vadd.xlane.f32.xlu0 %v1357
    %v1399 = vpop.xlane.xlu0 %1398
    %1400 = vadd.xlane.f32.xlu0 %v1358
    %v1401 = vpop.xlane.xlu0 %1400
    %1402 = vadd.xlane.f32.xlu0 %v1359
    %v1403 = vpop.xlane.xlu0 %1402
    %1404 = vadd.xlane.f32.xlu0 %v1360
    %v1405 = vpop.xlane.xlu0 %1404
    %1406 = vadd.xlane.f32.xlu0 %v1361
    %v1407 = vpop.xlane.xlu0 %1406
    %1408 = vadd.xlane.f32.xlu0 %v1362
    %v1409 = vpop.xlane.xlu0 %1408
    %1410 = vadd.xlane.f32.xlu0 %v1363
    %v1411 = vpop.xlane.xlu0 %1410
    %1412 = vadd.xlane.f32.xlu0 %v1364
    %v1413 = vpop.xlane.xlu0 %1412
    %1414 = vadd.xlane.f32.xlu0 %v1365
    %v1415 = vpop.xlane.xlu0 %1414
    %1416 = vadd.xlane.f32.xlu0 %v1366
    %v1417 = vpop.xlane.xlu0 %1416
    %1418 = vadd.xlane.f32.xlu0 %v1367
    %v1419 = vpop.xlane.xlu0 %1418
    %1420 = vadd.xlane.f32.xlu0 %v1368
    %v1421 = vpop.xlane.xlu0 %1420
    %1422 = vadd.xlane.f32.xlu0 %v1369
    %v1423 = vpop.xlane.xlu0 %1422
    %1424 = vadd.xlane.f32.xlu0 %v1370
    %v1425 = vpop.xlane.xlu0 %1424
    %1426 = vadd.xlane.f32.xlu0 %v1371
    %v1427 = vpop.xlane.xlu0 %1426
    %1428 = vadd.xlane.f32.xlu0 %v1372
    %v1429 = vpop.xlane.xlu0 %1428
    %1430 = vadd.xlane.f32.xlu0 %v1373
    %v1431 = vpop.xlane.xlu0 %1430
    %1432 = vadd.xlane.f32.xlu0 %v1374
    %v1433 = vpop.xlane.xlu0 %1432
    %1434 = vadd.xlane.f32.xlu0 %v1375
    %v1435 = vpop.xlane.xlu0 %1434
    %1436 = vadd.xlane.f32.xlu0 %v1376
    %v1437 = vpop.xlane.xlu0 %1436
    %1438 = vadd.xlane.f32.xlu0 %v1377
    %v1439 = vpop.xlane.xlu0 %1438
    %1440 = vadd.xlane.f32.xlu0 %v1378
    %v1441 = vpop.xlane.xlu0 %1440
    %1442 = vadd.xlane.f32.xlu0 %v1379
    %v1443 = vpop.xlane.xlu0 %1442
    %v1444 = vmul.f32 %v1381, %v1283
    %v1445 = vmul.f32 %v1383, %v1283
    %v1446 = vmul.f32 %v1385, %v1283
    %v1447 = vmul.f32 %v1387, %v1283
    %v1448 = vmul.f32 %v1389, %v1283
    %v1449 = vmul.f32 %v1391, %v1283
    %v1450 = vmul.f32 %v1393, %v1283
    %v1451 = vmul.f32 %v1395, %v1283
    %v1452 = vmul.f32 %v1397, %v1283
    %v1453 = vmul.f32 %v1399, %v1283
    %v1454 = vmul.f32 %v1401, %v1283
    %v1455 = vmul.f32 %v1403, %v1283
    %v1456 = vmul.f32 %v1405, %v1283
    %v1457 = vmul.f32 %v1407, %v1283
    %v1458 = vmul.f32 %v1409, %v1283
    %v1459 = vmul.f32 %v1411, %v1283
    %v1460 = vmul.f32 %v1413, %v1283
    %v1461 = vmul.f32 %v1415, %v1283
    %v1462 = vmul.f32 %v1417, %v1283
    %v1463 = vmul.f32 %v1419, %v1283
    %v1464 = vmul.f32 %v1421, %v1283
    %v1465 = vmul.f32 %v1423, %v1283
    %v1466 = vmul.f32 %v1425, %v1283
    %v1467 = vmul.f32 %v1427, %v1283
    %v1468 = vmul.f32 %v1429, %v1283
    %v1469 = vmul.f32 %v1431, %v1283
    %v1470 = vmul.f32 %v1433, %v1283
    %v1471 = vmul.f32 %v1435, %v1283
    %v1472 = vmul.f32 %v1437, %v1283
    %v1473 = vmul.f32 %v1439, %v1283
    %v1474 = vmul.f32 %v1441, %v1283
    %v1475 = vmul.f32 %v1443, %v1283
    %v1476 = vadd.f32 %v1444, 1e-05
    %v1477 = vadd.f32 %v1445, 1e-05
    %v1478 = vadd.f32 %v1446, 1e-05
    %v1479 = vadd.f32 %v1447, 1e-05
    %v1480 = vadd.f32 %v1448, 1e-05
    %v1481 = vadd.f32 %v1449, 1e-05
    %v1482 = vadd.f32 %v1450, 1e-05
    %v1483 = vadd.f32 %v1451, 1e-05
    %v1484 = vadd.f32 %v1452, 1e-05
    %v1485 = vadd.f32 %v1453, 1e-05
    %v1486 = vadd.f32 %v1454, 1e-05
    %v1487 = vadd.f32 %v1455, 1e-05
    %v1488 = vadd.f32 %v1456, 1e-05
    %v1489 = vadd.f32 %v1457, 1e-05
    %v1490 = vadd.f32 %v1458, 1e-05
    %v1491 = vadd.f32 %v1459, 1e-05
    %v1492 = vadd.f32 %v1460, 1e-05
    %v1493 = vadd.f32 %v1461, 1e-05
    %v1494 = vadd.f32 %v1462, 1e-05
    %v1495 = vadd.f32 %v1463, 1e-05
    %v1496 = vadd.f32 %v1464, 1e-05
    %v1497 = vadd.f32 %v1465, 1e-05
    %v1498 = vadd.f32 %v1466, 1e-05
    %v1499 = vadd.f32 %v1467, 1e-05
    %v1500 = vadd.f32 %v1468, 1e-05
    %v1501 = vadd.f32 %v1469, 1e-05
    %v1502 = vadd.f32 %v1470, 1e-05
    %v1503 = vadd.f32 %v1471, 1e-05
    %v1504 = vadd.f32 %v1472, 1e-05
    %v1505 = vadd.f32 %v1473, 1e-05
    %v1506 = vadd.f32 %v1474, 1e-05
    %v1507 = vadd.f32 %v1475, 1e-05
    %v1508 = vrsqrt.pop %v1476
    %v1509 = vrsqrt.pop %v1477
    %v1510 = vrsqrt.pop %v1478
    %v1511 = vrsqrt.pop %v1479
    %v1512 = vrsqrt.pop %v1480
    %v1513 = vrsqrt.pop %v1481
    %v1514 = vrsqrt.pop %v1482
    %v1515 = vrsqrt.pop %v1483
    %v1516 = vrsqrt.pop %v1484
    %v1517 = vrsqrt.pop %v1485
    %v1518 = vrsqrt.pop %v1486
    %v1519 = vrsqrt.pop %v1487
    %v1520 = vrsqrt.pop %v1488
    %v1521 = vrsqrt.pop %v1489
    %v1522 = vrsqrt.pop %v1490
    %v1523 = vrsqrt.pop %v1491
    %v1524 = vrsqrt.pop %v1492
    %v1525 = vrsqrt.pop %v1493
    %v1526 = vrsqrt.pop %v1494
    %v1527 = vrsqrt.pop %v1495
    %v1528 = vrsqrt.pop %v1496
    %v1529 = vrsqrt.pop %v1497
    %v1530 = vrsqrt.pop %v1498
    %v1531 = vrsqrt.pop %v1499
    %v1532 = vrsqrt.pop %v1500
    %v1533 = vrsqrt.pop %v1501
    %v1534 = vrsqrt.pop %v1502
    %v1535 = vrsqrt.pop %v1503
    %v1536 = vrsqrt.pop %v1504
    %v1537 = vrsqrt.pop %v1505
    %v1538 = vrsqrt.pop %v1506
    %v1539 = vrsqrt.pop %v1507
    %v1540 = vmul.f32 %v1316, %v1508
    %v1541 = vmul.f32 %v1317, %v1509
    %v1542 = vmul.f32 %v1318, %v1510
    %v1543 = vmul.f32 %v1319, %v1511
    %v1544 = vmul.f32 %v1320, %v1512
    %v1545 = vmul.f32 %v1321, %v1513
    %v1546 = vmul.f32 %v1322, %v1514
    %v1547 = vmul.f32 %v1323, %v1515
    %v1548 = vmul.f32 %v1324, %v1516
    %v1549 = vmul.f32 %v1325, %v1517
    %v1550 = vmul.f32 %v1326, %v1518
    %v1551 = vmul.f32 %v1327, %v1519
    %v1552 = vmul.f32 %v1328, %v1520
    %v1553 = vmul.f32 %v1329, %v1521
    %v1554 = vmul.f32 %v1330, %v1522
    %v1555 = vmul.f32 %v1331, %v1523
    %v1556 = vmul.f32 %v1332, %v1524
    %v1557 = vmul.f32 %v1333, %v1525
    %v1558 = vmul.f32 %v1334, %v1526
    %v1559 = vmul.f32 %v1335, %v1527
    %v1560 = vmul.f32 %v1336, %v1528
    %v1561 = vmul.f32 %v1337, %v1529
    %v1562 = vmul.f32 %v1338, %v1530
    %v1563 = vmul.f32 %v1339, %v1531
    %v1564 = vmul.f32 %v1340, %v1532
    %v1565 = vmul.f32 %v1341, %v1533
    %v1566 = vmul.f32 %v1342, %v1534
    %v1567 = vmul.f32 %v1343, %v1535
    %v1568 = vmul.f32 %v1344, %v1536
    %v1569 = vmul.f32 %v1345, %v1537
    %v1570 = vmul.f32 %v1346, %v1538
    %v1571 = vmul.f32 %v1347, %v1539
    %v1572 = vmul.f32 %v1540, 0.5
    %v1573 = vmul.f32 %v1541, 0.5
    %v1574 = vmul.f32 %v1542, 0.5
    %v1575 = vmul.f32 %v1543, 0.5
    %v1576 = vmul.f32 %v1544, 0.5
    %v1577 = vmul.f32 %v1545, 0.5
    %v1578 = vmul.f32 %v1546, 0.5
    %v1579 = vmul.f32 %v1547, 0.5
    %v1580 = vmul.f32 %v1548, 0.5
    %v1581 = vmul.f32 %v1549, 0.5
    %v1582 = vmul.f32 %v1550, 0.5
    %v1583 = vmul.f32 %v1551, 0.5
    %v1584 = vmul.f32 %v1552, 0.5
    %v1585 = vmul.f32 %v1553, 0.5
    %v1586 = vmul.f32 %v1554, 0.5
    %v1587 = vmul.f32 %v1555, 0.5
    %v1588 = vmul.f32 %v1556, 0.5
    %v1589 = vmul.f32 %v1557, 0.5
    %v1590 = vmul.f32 %v1558, 0.5
    %v1591 = vmul.f32 %v1559, 0.5
    %v1592 = vmul.f32 %v1560, 0.5
    %v1593 = vmul.f32 %v1561, 0.5
    %v1594 = vmul.f32 %v1562, 0.5
    %v1595 = vmul.f32 %v1563, 0.5
    %v1596 = vmul.f32 %v1564, 0.5
    %v1597 = vmul.f32 %v1565, 0.5
    %v1598 = vmul.f32 %v1566, 0.5
    %v1599 = vmul.f32 %v1567, 0.5
    %v1600 = vmul.f32 %v1568, 0.5
    %v1601 = vmul.f32 %v1569, 0.5
    %v1602 = vmul.f32 %v1570, 0.5
    %v1603 = vmul.f32 %v1571, 0.5
    %v1604 = vmul.f32 %v1540, 0.70710677
    %v1605 = vmul.f32 %v1541, 0.70710677
    %v1606 = vmul.f32 %v1542, 0.70710677
    %v1607 = vmul.f32 %v1543, 0.70710677
    %v1608 = vmul.f32 %v1544, 0.70710677
    %v1609 = vmul.f32 %v1545, 0.70710677
    %v1610 = vmul.f32 %v1546, 0.70710677
    %v1611 = vmul.f32 %v1547, 0.70710677
    %v1612 = vmul.f32 %v1548, 0.70710677
    %v1613 = vmul.f32 %v1549, 0.70710677
    %v1614 = vmul.f32 %v1550, 0.70710677
    %v1615 = vmul.f32 %v1551, 0.70710677
    %v1616 = vmul.f32 %v1552, 0.70710677
    %v1617 = vmul.f32 %v1553, 0.70710677
    %v1618 = vmul.f32 %v1554, 0.70710677
    %v1619 = vmul.f32 %v1555, 0.70710677
    %v1620 = vmul.f32 %v1556, 0.70710677
    %v1621 = vmul.f32 %v1557, 0.70710677
    %v1622 = vmul.f32 %v1558, 0.70710677
    %v1623 = vmul.f32 %v1559, 0.70710677
    %v1624 = vmul.f32 %v1560, 0.70710677
    %v1625 = vmul.f32 %v1561, 0.70710677
    %v1626 = vmul.f32 %v1562, 0.70710677
    %v1627 = vmul.f32 %v1563, 0.70710677
    %v1628 = vmul.f32 %v1564, 0.70710677
    %v1629 = vmul.f32 %v1565, 0.70710677
    %v1630 = vmul.f32 %v1566, 0.70710677
    %v1631 = vmul.f32 %v1567, 0.70710677
    %v1632 = vmul.f32 %v1568, 0.70710677
    %v1633 = vmul.f32 %v1569, 0.70710677
    %v1634 = vmul.f32 %v1570, 0.70710677
    %v1635 = vmul.f32 %v1571, 0.70710677
    %v1636 = verf.f32.pop %v1604
    %v1637 = verf.f32.pop %v1605
    %v1638 = verf.f32.pop %v1606
    %v1639 = verf.f32.pop %v1607
    %v1640 = verf.f32.pop %v1608
    %v1641 = verf.f32.pop %v1609
    %v1642 = verf.f32.pop %v1610
    %v1643 = verf.f32.pop %v1611
    %v1644 = verf.f32.pop %v1612
    %v1645 = verf.f32.pop %v1613
    %v1646 = verf.f32.pop %v1614
    %v1647 = verf.f32.pop %v1615
    %v1648 = verf.f32.pop %v1616
    %v1649 = verf.f32.pop %v1617
    %v1650 = verf.f32.pop %v1618
    %v1651 = verf.f32.pop %v1619
    %v1652 = verf.f32.pop %v1620
    %v1653 = verf.f32.pop %v1621
    %v1654 = verf.f32.pop %v1622
    %v1655 = verf.f32.pop %v1623
    %v1656 = verf.f32.pop %v1624
    %v1657 = verf.f32.pop %v1625
    %v1658 = verf.f32.pop %v1626
    %v1659 = verf.f32.pop %v1627
    %v1660 = verf.f32.pop %v1628
    %v1661 = verf.f32.pop %v1629
    %v1662 = verf.f32.pop %v1630
    %v1663 = verf.f32.pop %v1631
    %v1664 = verf.f32.pop %v1632
    %v1665 = verf.f32.pop %v1633
    %v1666 = verf.f32.pop %v1634
    %v1667 = verf.f32.pop %v1635
    %v1668 = vadd.f32 %v1636, 1.0
    %v1669 = vadd.f32 %v1637, 1.0
    %v1670 = vadd.f32 %v1638, 1.0
    %v1671 = vadd.f32 %v1639, 1.0
    %v1672 = vadd.f32 %v1640, 1.0
    %v1673 = vadd.f32 %v1641, 1.0
    %v1674 = vadd.f32 %v1642, 1.0
    %v1675 = vadd.f32 %v1643, 1.0
    %v1676 = vadd.f32 %v1644, 1.0
    %v1677 = vadd.f32 %v1645, 1.0
    %v1678 = vadd.f32 %v1646, 1.0
    %v1679 = vadd.f32 %v1647, 1.0
    %v1680 = vadd.f32 %v1648, 1.0
    %v1681 = vadd.f32 %v1649, 1.0
    %v1682 = vadd.f32 %v1650, 1.0
    %v1683 = vadd.f32 %v1651, 1.0
    %v1684 = vadd.f32 %v1652, 1.0
    %v1685 = vadd.f32 %v1653, 1.0
    %v1686 = vadd.f32 %v1654, 1.0
    %v1687 = vadd.f32 %v1655, 1.0
    %v1688 = vadd.f32 %v1656, 1.0
    %v1689 = vadd.f32 %v1657, 1.0
    %v1690 = vadd.f32 %v1658, 1.0
    %v1691 = vadd.f32 %v1659, 1.0
    %v1692 = vadd.f32 %v1660, 1.0
    %v1693 = vadd.f32 %v1661, 1.0
    %v1694 = vadd.f32 %v1662, 1.0
    %v1695 = vadd.f32 %v1663, 1.0
    %v1696 = vadd.f32 %v1664, 1.0
    %v1697 = vadd.f32 %v1665, 1.0
    %v1698 = vadd.f32 %v1666, 1.0
    %v1699 = vadd.f32 %v1667, 1.0
    %v1700 = vmul.f32 %v1572, %v1668
    %v1701 = vmul.f32 %v1573, %v1669
    %v1702 = vmul.f32 %v1574, %v1670
    %v1703 = vmul.f32 %v1575, %v1671
    %v1704 = vmul.f32 %v1576, %v1672
    %v1705 = vmul.f32 %v1577, %v1673
    %v1706 = vmul.f32 %v1578, %v1674
    %v1707 = vmul.f32 %v1579, %v1675
    %v1708 = vmul.f32 %v1580, %v1676
    %v1709 = vmul.f32 %v1581, %v1677
    %v1710 = vmul.f32 %v1582, %v1678
    %v1711 = vmul.f32 %v1583, %v1679
    %v1712 = vmul.f32 %v1584, %v1680
    %v1713 = vmul.f32 %v1585, %v1681
    %v1714 = vmul.f32 %v1586, %v1682
    %v1715 = vmul.f32 %v1587, %v1683
    %v1716 = vmul.f32 %v1588, %v1684
    %v1717 = vmul.f32 %v1589, %v1685
    %v1718 = vmul.f32 %v1590, %v1686
    %v1719 = vmul.f32 %v1591, %v1687
    %v1720 = vmul.f32 %v1592, %v1688
    %v1721 = vmul.f32 %v1593, %v1689
    %v1722 = vmul.f32 %v1594, %v1690
    %v1723 = vmul.f32 %v1595, %v1691
    %v1724 = vmul.f32 %v1596, %v1692
    %v1725 = vmul.f32 %v1597, %v1693
    %v1726 = vmul.f32 %v1598, %v1694
    %v1727 = vmul.f32 %v1599, %v1695
    %v1728 = vmul.f32 %v1600, %v1696
    %v1729 = vmul.f32 %v1601, %v1697
    %v1730 = vmul.f32 %v1602, %v1698
    %v1731 = vmul.f32 %v1603, %v1699
    %v1732 = vld [vmem:[%s5] sm:$0xff]
    %v1733 = vld [vmem:[%s5 + $0x8] sm:$0xff]
    %v1734 = vld [vmem:[%s5 + $0x10] sm:$0xff]
    %v1735 = vld [vmem:[%s5 + $0x18] sm:$0xff]
    %v1736 = vld [vmem:[%s5 + $0x20] sm:$0xff]
    %v1737 = vld [vmem:[%s5 + $0x28] sm:$0xff]
    %v1738 = vld [vmem:[%s5 + $0x30] sm:$0xff]
    %v1739 = vld [vmem:[%s5 + $0x38] sm:$0xff]
    %v1740 = vld [vmem:[%s5 + $0x40] sm:$0xff]
    %v1741 = vld [vmem:[%s5 + $0x48] sm:$0xff]
    %v1742 = vld [vmem:[%s5 + $0x50] sm:$0xff]
    %v1743 = vld [vmem:[%s5 + $0x58] sm:$0xff]
    %v1744 = vld [vmem:[%s5 + $0x60] sm:$0xff]
    %v1745 = vld [vmem:[%s5 + $0x68] sm:$0xff]
    %v1746 = vld [vmem:[%s5 + $0x70] sm:$0xff]
    %v1747 = vld [vmem:[%s5 + $0x78] sm:$0xff]
    %v1748 = vld [vmem:[%s6] sm:$0x1]
    %v1750 = vlaneseq
    %v1751 = vshrl.u32 %v1750, 7
    %v1752 = vsub.s32 0, %v1751
    %v1753 = vrot.slane %v1748, %v1752
    %1755 = vmatprep.subr.mxu0 0.0
    %1756 = vmatpush1.msra.mxu0 %v1732
    %1757 = vmatprep.subr.mxu0 0.0
    %1758 = vmatpush1.msra.mxu0 %v1733
    %1759 = vmatprep.subr.mxu0 0.0
    %1760 = vmatpush1.msra.mxu0 %v1734
    %1761 = vmatprep.subr.mxu0 0.0
    %1762 = vmatpush1.msra.mxu0 %v1735
    %1763 = vmatprep.subr.mxu0 0.0
    %1764 = vmatpush1.msra.mxu0 %v1736
    %1765 = vmatprep.subr.mxu0 0.0
    %1766 = vmatpush1.msra.mxu0 %v1737
    %1767 = vmatprep.subr.mxu0 0.0
    %1768 = vmatpush1.msra.mxu0 %v1738
    %1769 = vmatprep.subr.mxu0 0.0
    %1770 = vmatpush1.msra.mxu0 %v1739
    %1771 = vmatprep.subr.mxu0 0.0
    %1772 = vmatpush1.msra.mxu0 %v1740
    %1773 = vmatprep.subr.mxu0 0.0
    %1774 = vmatpush1.msra.mxu0 %v1741
    %1775 = vmatprep.subr.mxu0 0.0
    %1776 = vmatpush1.msra.mxu0 %v1742
    %1777 = vmatprep.subr.mxu0 0.0
    %1778 = vmatpush1.msra.mxu0 %v1743
    %1779 = vmatprep.subr.mxu0 0.0
    %1780 = vmatpush1.msra.mxu0 %v1744
    %1781 = vmatprep.subr.mxu0 0.0
    %1782 = vmatpush1.msra.mxu0 %v1745
    %1783 = vmatprep.subr.mxu0 0.0
    %1784 = vmatpush1.msra.mxu0 %v1746
    %1785 = vmatprep.subr.mxu0 0.0
    %1786 = vmatpush1.msra.mxu0 %v1747
    %1787 = vmatprep.subr.mxu0 0.0
    %1788 = vmatpush1.msra.mxu0 0.0
    %1789 = vmatprep.subr.mxu0 0.0
    %1790 = vmatpush1.msra.mxu0 0.0
    %1791 = vmatprep.subr.mxu0 0.0
    %1792 = vmatpush1.msra.mxu0 0.0
    %1793 = vmatprep.subr.mxu0 0.0
    %1794 = vmatpush1.msra.mxu0 0.0
    %1795 = vmatprep.subr.mxu0 0.0
    %1796 = vmatpush1.msra.mxu0 0.0
    %1797 = vmatprep.subr.mxu0 0.0
    %1798 = vmatpush1.msra.mxu0 0.0
    %1799 = vmatprep.subr.mxu0 0.0
    %1800 = vmatpush1.msra.mxu0 0.0
    %1801 = vmatprep.subr.mxu0 0.0
    %1802 = vmatpush1.msra.mxu0 0.0
    %1803 = vmatprep.subr.mxu0 0.0
    %1804 = vmatpush1.msra.mxu0 0.0
    %1805 = vmatprep.subr.mxu0 0.0
    %1806 = vmatpush1.msra.mxu0 0.0
    %1807 = vmatprep.subr.mxu0 0.0
    %1808 = vmatpush1.msra.mxu0 0.0
    %1809 = vmatprep.subr.mxu0 0.0
    %1810 = vmatpush1.msra.mxu0 0.0
    %1811 = vmatprep.subr.mxu0 0.0
    %1812 = vmatpush1.msra.mxu0 0.0
    %1813 = vmatprep.subr.mxu0 0.0
    %1814 = vmatpush1.msra.mxu0 0.0
    %1815 = vmatprep.subr.mxu0 0.0
    %1816 = vmatpush1.msra.mxu0 0.0
    %1817 = vmatprep.subr.mxu0 0.0
    %1818 = vmatpush1.msra.mxu0 0.0
    %1819 = vmatprep.mubr.f32.mxu0 0.0
    %1820 = vmatmul.mubr.f32.gmra.mrb[0].mxu0 %v1700
    %v1821 = vpop.f32.mrb[0].mxu0
    %v1822 = vadd.f32 %v1753, %v1821
    %v1823 = vpop.f32.mrb[0].mxu0
    %1824 = vmatprep.mubr.f32.mxu0 0.0
    %1825 = vmatmul.mubr.f32.gmra.mrb[0].mxu0 %v1701
    %v1826 = vpop.f32.mrb[0].mxu0
    %v1827 = vadd.f32 %v1753, %v1826
    %v1828 = vpop.f32.mrb[0].mxu0
    %1829 = vmatprep.mubr.f32.mxu0 0.0
    %1830 = vmatmul.mubr.f32.gmra.mrb[0].mxu0 %v1702
    %v1831 = vpop.f32.mrb[0].mxu0
    %v1832 = vadd.f32 %v1753, %v1831
    %v1833 = vpop.f32.mrb[0].mxu0
    %1834 = vmatprep.mubr.f32.mxu0 0.0
    %1835 = vmatmul.mubr.f32.gmra.mrb[0].mxu0 %v1703
    %v1836 = vpop.f32.mrb[0].mxu0
    %v1837 = vadd.f32 %v1753, %v1836
    %v1838 = vpop.f32.mrb[0].mxu0
    %1839 = vmatprep.mubr.f32.mxu0 0.0
    %1840 = vmatmul.mubr.f32.gmra.mrb[0].mxu0 %v1704
    %v1841 = vpop.f32.mrb[0].mxu0
    %v1842 = vadd.f32 %v1753, %v1841
    %v1843 = vpop.f32.mrb[0].mxu0
    %1844 = vmatprep.mubr.f32.mxu0 0.0
    %1845 = vmatmul.mubr.f32.gmra.mrb[0].mxu0 %v1705
    %v1846 = vpop.f32.mrb[0].mxu0
    %v1847 = vadd.f32 %v1753, %v1846
    %v1848 = vpop.f32.mrb[0].mxu0
    %1849 = vmatprep.mubr.f32.mxu0 0.0
    %1850 = vmatmul.mubr.f32.gmra.mrb[0].mxu0 %v1706
    %v1851 = vpop.f32.mrb[0].mxu0
    %v1852 = vadd.f32 %v1753, %v1851
    %v1853 = vpop.f32.mrb[0].mxu0
    %1854 = vmatprep.mubr.f32.mxu0 0.0
    %1855 = vmatmul.mubr.f32.gmra.mrb[0].mxu0 %v1707
    %v1856 = vpop.f32.mrb[0].mxu0
    %v1857 = vadd.f32 %v1753, %v1856
    %v1858 = vpop.f32.mrb[0].mxu0
    %1859 = vmatprep.mubr.f32.mxu0 0.0
    %1860 = vmatmul.mubr.f32.gmra.mrb[0].mxu0 %v1708
    %v1861 = vpop.f32.mrb[0].mxu0
    %v1862 = vadd.f32 %v1753, %v1861
    %v1863 = vpop.f32.mrb[0].mxu0
    %1864 = vmatprep.mubr.f32.mxu0 0.0
    %1865 = vmatmul.mubr.f32.gmra.mrb[0].mxu0 %v1709
    %v1866 = vpop.f32.mrb[0].mxu0
    %v1867 = vadd.f32 %v1753, %v1866
    %v1868 = vpop.f32.mrb[0].mxu0
    %1869 = vmatprep.mubr.f32.mxu0 0.0
    %1870 = vmatmul.mubr.f32.gmra.mrb[0].mxu0 %v1710
    %v1871 = vpop.f32.mrb[0].mxu0
    %v1872 = vadd.f32 %v1753, %v1871
    %v1873 = vpop.f32.mrb[0].mxu0
    %1874 = vmatprep.mubr.f32.mxu0 0.0
    %1875 = vmatmul.mubr.f32.gmra.mrb[0].mxu0 %v1711
    %v1876 = vpop.f32.mrb[0].mxu0
    %v1877 = vadd.f32 %v1753, %v1876
    %v1878 = vpop.f32.mrb[0].mxu0
    %1879 = vmatprep.mubr.f32.mxu0 0.0
    %1880 = vmatmul.mubr.f32.gmra.mrb[0].mxu0 %v1712
    %v1881 = vpop.f32.mrb[0].mxu0
    %v1882 = vadd.f32 %v1753, %v1881
    %v1883 = vpop.f32.mrb[0].mxu0
    %1884 = vmatprep.mubr.f32.mxu0 0.0
    %1885 = vmatmul.mubr.f32.gmra.mrb[0].mxu0 %v1713
    %v1886 = vpop.f32.mrb[0].mxu0
    %v1887 = vadd.f32 %v1753, %v1886
    %v1888 = vpop.f32.mrb[0].mxu0
    %1889 = vmatprep.mubr.f32.mxu0 0.0
    %1890 = vmatmul.mubr.f32.gmra.mrb[0].mxu0 %v1714
    %v1891 = vpop.f32.mrb[0].mxu0
    %v1892 = vadd.f32 %v1753, %v1891
    %v1893 = vpop.f32.mrb[0].mxu0
    %1894 = vmatprep.mubr.f32.mxu0 0.0
    %1895 = vmatmul.mubr.f32.gmra.mrb[0].mxu0 %v1715
    %v1896 = vpop.f32.mrb[0].mxu0
    %v1897 = vadd.f32 %v1753, %v1896
    %v1898 = vpop.f32.mrb[0].mxu0
    %1899 = vmatprep.mubr.f32.mxu0 0.0
    %1900 = vmatmul.mubr.f32.gmra.mrb[0].mxu0 %v1716
    %v1901 = vpop.f32.mrb[0].mxu0
    %v1902 = vadd.f32 %v1753, %v1901
    %v1903 = vpop.f32.mrb[0].mxu0
    %1904 = vmatprep.mubr.f32.mxu0 0.0
    %1905 = vmatmul.mubr.f32.gmra.mrb[0].mxu0 %v1717
    %v1906 = vpop.f32.mrb[0].mxu0
    %v1907 = vadd.f32 %v1753, %v1906
    %v1908 = vpop.f32.mrb[0].mxu0
    %1909 = vmatprep.mubr.f32.mxu0 0.0
    %1910 = vmatmul.mubr.f32.gmra.mrb[0].mxu0 %v1718
    %v1911 = vpop.f32.mrb[0].mxu0
    %v1912 = vadd.f32 %v1753, %v1911
    %v1913 = vpop.f32.mrb[0].mxu0
    %1914 = vmatprep.mubr.f32.mxu0 0.0
    %1915 = vmatmul.mubr.f32.gmra.mrb[0].mxu0 %v1719
    %v1916 = vpop.f32.mrb[0].mxu0
    %v1917 = vadd.f32 %v1753, %v1916
    %v1918 = vpop.f32.mrb[0].mxu0
    %1919 = vmatprep.mubr.f32.mxu0 0.0
    %1920 = vmatmul.mubr.f32.gmra.mrb[0].mxu0 %v1720
    %v1921 = vpop.f32.mrb[0].mxu0
    %v1922 = vadd.f32 %v1753, %v1921
    %v1923 = vpop.f32.mrb[0].mxu0
    %1924 = vmatprep.mubr.f32.mxu0 0.0
    %1925 = vmatmul.mubr.f32.gmra.mrb[0].mxu0 %v1721
    %v1926 = vpop.f32.mrb[0].mxu0
    %v1927 = vadd.f32 %v1753, %v1926
    %v1928 = vpop.f32.mrb[0].mxu0
    %1929 = vmatprep.mubr.f32.mxu0 0.0
    %1930 = vmatmul.mubr.f32.gmra.mrb[0].mxu0 %v1722
    %v1931 = vpop.f32.mrb[0].mxu0
    %v1932 = vadd.f32 %v1753, %v1931
    %v1933 = vpop.f32.mrb[0].mxu0
    %1934 = vmatprep.mubr.f32.mxu0 0.0
    %1935 = vmatmul.mubr.f32.gmra.mrb[0].mxu0 %v1723
    %v1936 = vpop.f32.mrb[0].mxu0
    %v1937 = vadd.f32 %v1753, %v1936
    %v1938 = vpop.f32.mrb[0].mxu0
    %1939 = vmatprep.mubr.f32.mxu0 0.0
    %1940 = vmatmul.mubr.f32.gmra.mrb[0].mxu0 %v1724
    %v1941 = vpop.f32.mrb[0].mxu0
    %v1942 = vadd.f32 %v1753, %v1941
    %v1943 = vpop.f32.mrb[0].mxu0
    %1944 = vmatprep.mubr.f32.mxu0 0.0
    %1945 = vmatmul.mubr.f32.gmra.mrb[0].mxu0 %v1725
    %v1946 = vpop.f32.mrb[0].mxu0
    %v1947 = vadd.f32 %v1753, %v1946
    %v1948 = vpop.f32.mrb[0].mxu0
    %1949 = vmatprep.mubr.f32.mxu0 0.0
    %1950 = vmatmul.mubr.f32.gmra.mrb[0].mxu0 %v1726
    %v1951 = vpop.f32.mrb[0].mxu0
    %v1952 = vadd.f32 %v1753, %v1951
    %v1953 = vpop.f32.mrb[0].mxu0
    %1954 = vmatprep.mubr.f32.mxu0 0.0
    %1955 = vmatmul.mubr.f32.gmra.mrb[0].mxu0 %v1727
    %v1956 = vpop.f32.mrb[0].mxu0
    %v1957 = vadd.f32 %v1753, %v1956
    %v1958 = vpop.f32.mrb[0].mxu0
    %1959 = vmatprep.mubr.f32.mxu0 0.0
    %1960 = vmatmul.mubr.f32.gmra.mrb[0].mxu0 %v1728
    %v1961 = vpop.f32.mrb[0].mxu0
    %v1962 = vadd.f32 %v1753, %v1961
    %v1963 = vpop.f32.mrb[0].mxu0
    %1964 = vmatprep.mubr.f32.mxu0 0.0
    %1965 = vmatmul.mubr.f32.gmra.mrb[0].mxu0 %v1729
    %v1966 = vpop.f32.mrb[0].mxu0
    %v1967 = vadd.f32 %v1753, %v1966
    %v1968 = vpop.f32.mrb[0].mxu0
    %1969 = vmatprep.mubr.f32.mxu0 0.0
    %1970 = vmatmul.mubr.f32.gmra.mrb[0].mxu0 %v1730
    %v1971 = vpop.f32.mrb[0].mxu0
    %v1972 = vadd.f32 %v1753, %v1971
    %v1973 = vpop.f32.mrb[0].mxu0
    %1974 = vmatprep.mubr.f32.mxu0 0.0
    %1975 = vmatmul.mubr.f32.gmra.mrb[0].mxu0 %v1731
    %v1976 = vpop.f32.mrb[0].mxu0
    %v1977 = vadd.f32 %v1753, %v1976
    %v1978 = vpop.f32.mrb[0].mxu0
    %1979 = vdwg.mxu0
    %vm1980 = vcmask 523264
    %v1981 = vsel %vm1980, %v1822, 0.0
    %1982 = vadd.xlane.f32.xlu0 %v1981
    %v1983 = vpop.xlane.xlu0 %1982
    %v1984 = vsel %vm1980, %v1827, 0.0
    %1985 = vadd.xlane.f32.xlu0 %v1984
    %v1986 = vpop.xlane.xlu0 %1985
    %v1987 = vsel %vm1980, %v1832, 0.0
    %1988 = vadd.xlane.f32.xlu0 %v1987
    %v1989 = vpop.xlane.xlu0 %1988
    %v1990 = vsel %vm1980, %v1837, 0.0
    %1991 = vadd.xlane.f32.xlu0 %v1990
    %v1992 = vpop.xlane.xlu0 %1991
    %v1993 = vsel %vm1980, %v1842, 0.0
    %1994 = vadd.xlane.f32.xlu0 %v1993
    %v1995 = vpop.xlane.xlu0 %1994
    %v1996 = vsel %vm1980, %v1847, 0.0
    %1997 = vadd.xlane.f32.xlu0 %v1996
    %v1998 = vpop.xlane.xlu0 %1997
    %v1999 = vsel %vm1980, %v1852, 0.0
    %2000 = vadd.xlane.f32.xlu0 %v1999
    %v2001 = vpop.xlane.xlu0 %2000
    %v2002 = vsel %vm1980, %v1857, 0.0
    %2003 = vadd.xlane.f32.xlu0 %v2002
    %v2004 = vpop.xlane.xlu0 %2003
    %v2005 = vsel %vm1980, %v1862, 0.0
    %2006 = vadd.xlane.f32.xlu0 %v2005
    %v2007 = vpop.xlane.xlu0 %2006
    %v2008 = vsel %vm1980, %v1867, 0.0
    %2009 = vadd.xlane.f32.xlu0 %v2008
    %v2010 = vpop.xlane.xlu0 %2009
    %v2011 = vsel %vm1980, %v1872, 0.0
    %2012 = vadd.xlane.f32.xlu0 %v2011
    %v2013 = vpop.xlane.xlu0 %2012
    %v2014 = vsel %vm1980, %v1877, 0.0
    %2015 = vadd.xlane.f32.xlu0 %v2014
    %v2016 = vpop.xlane.xlu0 %2015
    %v2017 = vsel %vm1980, %v1882, 0.0
    %2018 = vadd.xlane.f32.xlu0 %v2017
    %v2019 = vpop.xlane.xlu0 %2018
    %v2020 = vsel %vm1980, %v1887, 0.0
    %2021 = vadd.xlane.f32.xlu0 %v2020
    %v2022 = vpop.xlane.xlu0 %2021
    %v2023 = vsel %vm1980, %v1892, 0.0
    %2024 = vadd.xlane.f32.xlu0 %v2023
    %v2025 = vpop.xlane.xlu0 %2024
    %v2026 = vsel %vm1980, %v1897, 0.0
    %2027 = vadd.xlane.f32.xlu0 %v2026
    %v2028 = vpop.xlane.xlu0 %2027
    %v2029 = vsel %vm1980, %v1902, 0.0
    %2030 = vadd.xlane.f32.xlu0 %v2029
    %v2031 = vpop.xlane.xlu0 %2030
    %v2032 = vsel %vm1980, %v1907, 0.0
    %2033 = vadd.xlane.f32.xlu0 %v2032
    %v2034 = vpop.xlane.xlu0 %2033
    %v2035 = vsel %vm1980, %v1912, 0.0
    %2036 = vadd.xlane.f32.xlu0 %v2035
    %v2037 = vpop.xlane.xlu0 %2036
    %v2038 = vsel %vm1980, %v1917, 0.0
    %2039 = vadd.xlane.f32.xlu0 %v2038
    %v2040 = vpop.xlane.xlu0 %2039
    %v2041 = vsel %vm1980, %v1922, 0.0
    %2042 = vadd.xlane.f32.xlu0 %v2041
    %v2043 = vpop.xlane.xlu0 %2042
    %v2044 = vsel %vm1980, %v1927, 0.0
    %2045 = vadd.xlane.f32.xlu0 %v2044
    %v2046 = vpop.xlane.xlu0 %2045
    %v2047 = vsel %vm1980, %v1932, 0.0
    %2048 = vadd.xlane.f32.xlu0 %v2047
    %v2049 = vpop.xlane.xlu0 %2048
    %v2050 = vsel %vm1980, %v1937, 0.0
    %2051 = vadd.xlane.f32.xlu0 %v2050
    %v2052 = vpop.xlane.xlu0 %2051
    %v2053 = vsel %vm1980, %v1942, 0.0
    %2054 = vadd.xlane.f32.xlu0 %v2053
    %v2055 = vpop.xlane.xlu0 %2054
    %v2056 = vsel %vm1980, %v1947, 0.0
    %2057 = vadd.xlane.f32.xlu0 %v2056
    %v2058 = vpop.xlane.xlu0 %2057
    %v2059 = vsel %vm1980, %v1952, 0.0
    %2060 = vadd.xlane.f32.xlu0 %v2059
    %v2061 = vpop.xlane.xlu0 %2060
    %v2062 = vsel %vm1980, %v1957, 0.0
    %2063 = vadd.xlane.f32.xlu0 %v2062
    %v2064 = vpop.xlane.xlu0 %2063
    %v2065 = vsel %vm1980, %v1962, 0.0
    %2066 = vadd.xlane.f32.xlu0 %v2065
    %v2067 = vpop.xlane.xlu0 %2066
    %v2068 = vsel %vm1980, %v1967, 0.0
    %2069 = vadd.xlane.f32.xlu0 %v2068
    %v2070 = vpop.xlane.xlu0 %2069
    %v2071 = vsel %vm1980, %v1972, 0.0
    %2072 = vadd.xlane.f32.xlu0 %v2071
    %v2073 = vpop.xlane.xlu0 %2072
    %v2074 = vsel %vm1980, %v1977, 0.0
    %2075 = vadd.xlane.f32.xlu0 %v2074
    %v2076 = vpop.xlane.xlu0 %2075
    %v2077 = vrcp.pop 64.0
    %v2078 = vmul.f32 %v1983, %v2077
    %v2079 = vmul.f32 %v1986, %v2077
    %v2080 = vmul.f32 %v1989, %v2077
    %v2081 = vmul.f32 %v1992, %v2077
    %v2082 = vmul.f32 %v1995, %v2077
    %v2083 = vmul.f32 %v1998, %v2077
    %v2084 = vmul.f32 %v2001, %v2077
    %v2085 = vmul.f32 %v2004, %v2077
    %v2086 = vmul.f32 %v2007, %v2077
    %v2087 = vmul.f32 %v2010, %v2077
    %v2088 = vmul.f32 %v2013, %v2077
    %v2089 = vmul.f32 %v2016, %v2077
    %v2090 = vmul.f32 %v2019, %v2077
    %v2091 = vmul.f32 %v2022, %v2077
    %v2092 = vmul.f32 %v2025, %v2077
    %v2093 = vmul.f32 %v2028, %v2077
    %v2094 = vmul.f32 %v2031, %v2077
    %v2095 = vmul.f32 %v2034, %v2077
    %v2096 = vmul.f32 %v2037, %v2077
    %v2097 = vmul.f32 %v2040, %v2077
    %v2098 = vmul.f32 %v2043, %v2077
    %v2099 = vmul.f32 %v2046, %v2077
    %v2100 = vmul.f32 %v2049, %v2077
    %v2101 = vmul.f32 %v2052, %v2077
    %v2102 = vmul.f32 %v2055, %v2077
    %v2103 = vmul.f32 %v2058, %v2077
    %v2104 = vmul.f32 %v2061, %v2077
    %v2105 = vmul.f32 %v2064, %v2077
    %v2106 = vmul.f32 %v2067, %v2077
    %v2107 = vmul.f32 %v2070, %v2077
    %v2108 = vmul.f32 %v2073, %v2077
    %v2109 = vmul.f32 %v2076, %v2077
    %v2110 = vsub.f32 %v1822, %v2078
    %v2111 = vsub.f32 %v1827, %v2079
    %v2112 = vsub.f32 %v1832, %v2080
    %v2113 = vsub.f32 %v1837, %v2081
    %v2114 = vsub.f32 %v1842, %v2082
    %v2115 = vsub.f32 %v1847, %v2083
    %v2116 = vsub.f32 %v1852, %v2084
    %v2117 = vsub.f32 %v1857, %v2085
    %v2118 = vsub.f32 %v1862, %v2086
    %v2119 = vsub.f32 %v1867, %v2087
    %v2120 = vsub.f32 %v1872, %v2088
    %v2121 = vsub.f32 %v1877, %v2089
    %v2122 = vsub.f32 %v1882, %v2090
    %v2123 = vsub.f32 %v1887, %v2091
    %v2124 = vsub.f32 %v1892, %v2092
    %v2125 = vsub.f32 %v1897, %v2093
    %v2126 = vsub.f32 %v1902, %v2094
    %v2127 = vsub.f32 %v1907, %v2095
    %v2128 = vsub.f32 %v1912, %v2096
    %v2129 = vsub.f32 %v1917, %v2097
    %v2130 = vsub.f32 %v1922, %v2098
    %v2131 = vsub.f32 %v1927, %v2099
    %v2132 = vsub.f32 %v1932, %v2100
    %v2133 = vsub.f32 %v1937, %v2101
    %v2134 = vsub.f32 %v1942, %v2102
    %v2135 = vsub.f32 %v1947, %v2103
    %v2136 = vsub.f32 %v1952, %v2104
    %v2137 = vsub.f32 %v1957, %v2105
    %v2138 = vsub.f32 %v1962, %v2106
    %v2139 = vsub.f32 %v1967, %v2107
    %v2140 = vsub.f32 %v1972, %v2108
    %v2141 = vsub.f32 %v1977, %v2109
    %v2142 = vmul.f32 %v2110, %v2110
    %v2143 = vmul.f32 %v2111, %v2111
    %v2144 = vmul.f32 %v2112, %v2112
    %v2145 = vmul.f32 %v2113, %v2113
    %v2146 = vmul.f32 %v2114, %v2114
    %v2147 = vmul.f32 %v2115, %v2115
    %v2148 = vmul.f32 %v2116, %v2116
    %v2149 = vmul.f32 %v2117, %v2117
    %v2150 = vmul.f32 %v2118, %v2118
    %v2151 = vmul.f32 %v2119, %v2119
    %v2152 = vmul.f32 %v2120, %v2120
    %v2153 = vmul.f32 %v2121, %v2121
    %v2154 = vmul.f32 %v2122, %v2122
    %v2155 = vmul.f32 %v2123, %v2123
    %v2156 = vmul.f32 %v2124, %v2124
    %v2157 = vmul.f32 %v2125, %v2125
    %v2158 = vmul.f32 %v2126, %v2126
    %v2159 = vmul.f32 %v2127, %v2127
    %v2160 = vmul.f32 %v2128, %v2128
    %v2161 = vmul.f32 %v2129, %v2129
    %v2162 = vmul.f32 %v2130, %v2130
    %v2163 = vmul.f32 %v2131, %v2131
    %v2164 = vmul.f32 %v2132, %v2132
    %v2165 = vmul.f32 %v2133, %v2133
    %v2166 = vmul.f32 %v2134, %v2134
    %v2167 = vmul.f32 %v2135, %v2135
    %v2168 = vmul.f32 %v2136, %v2136
    %v2169 = vmul.f32 %v2137, %v2137
    %v2170 = vmul.f32 %v2138, %v2138
    %v2171 = vmul.f32 %v2139, %v2139
    %v2172 = vmul.f32 %v2140, %v2140
    %v2173 = vmul.f32 %v2141, %v2141
    %v2174 = vsel %vm1980, %v2142, 0.0
    %2175 = vadd.xlane.f32.xlu0 %v2174
    %v2176 = vpop.xlane.xlu0 %2175
    %v2177 = vsel %vm1980, %v2143, 0.0
    %2178 = vadd.xlane.f32.xlu0 %v2177
    %v2179 = vpop.xlane.xlu0 %2178
    %v2180 = vsel %vm1980, %v2144, 0.0
    %2181 = vadd.xlane.f32.xlu0 %v2180
    %v2182 = vpop.xlane.xlu0 %2181
    %v2183 = vsel %vm1980, %v2145, 0.0
    %2184 = vadd.xlane.f32.xlu0 %v2183
    %v2185 = vpop.xlane.xlu0 %2184
    %v2186 = vsel %vm1980, %v2146, 0.0
    %2187 = vadd.xlane.f32.xlu0 %v2186
    %v2188 = vpop.xlane.xlu0 %2187
    %v2189 = vsel %vm1980, %v2147, 0.0
    %2190 = vadd.xlane.f32.xlu0 %v2189
    %v2191 = vpop.xlane.xlu0 %2190
    %v2192 = vsel %vm1980, %v2148, 0.0
    %2193 = vadd.xlane.f32.xlu0 %v2192
    %v2194 = vpop.xlane.xlu0 %2193
    %v2195 = vsel %vm1980, %v2149, 0.0
    %2196 = vadd.xlane.f32.xlu0 %v2195
    %v2197 = vpop.xlane.xlu0 %2196
    %v2198 = vsel %vm1980, %v2150, 0.0
    %2199 = vadd.xlane.f32.xlu0 %v2198
    %v2200 = vpop.xlane.xlu0 %2199
    %v2201 = vsel %vm1980, %v2151, 0.0
    %2202 = vadd.xlane.f32.xlu0 %v2201
    %v2203 = vpop.xlane.xlu0 %2202
    %v2204 = vsel %vm1980, %v2152, 0.0
    %2205 = vadd.xlane.f32.xlu0 %v2204
    %v2206 = vpop.xlane.xlu0 %2205
    %v2207 = vsel %vm1980, %v2153, 0.0
    %2208 = vadd.xlane.f32.xlu0 %v2207
    %v2209 = vpop.xlane.xlu0 %2208
    %v2210 = vsel %vm1980, %v2154, 0.0
    %2211 = vadd.xlane.f32.xlu0 %v2210
    %v2212 = vpop.xlane.xlu0 %2211
    %v2213 = vsel %vm1980, %v2155, 0.0
    %2214 = vadd.xlane.f32.xlu0 %v2213
    %v2215 = vpop.xlane.xlu0 %2214
    %v2216 = vsel %vm1980, %v2156, 0.0
    %2217 = vadd.xlane.f32.xlu0 %v2216
    %v2218 = vpop.xlane.xlu0 %2217
    %v2219 = vsel %vm1980, %v2157, 0.0
    %2220 = vadd.xlane.f32.xlu0 %v2219
    %v2221 = vpop.xlane.xlu0 %2220
    %v2222 = vsel %vm1980, %v2158, 0.0
    %2223 = vadd.xlane.f32.xlu0 %v2222
    %v2224 = vpop.xlane.xlu0 %2223
    %v2225 = vsel %vm1980, %v2159, 0.0
    %2226 = vadd.xlane.f32.xlu0 %v2225
    %v2227 = vpop.xlane.xlu0 %2226
    %v2228 = vsel %vm1980, %v2160, 0.0
    %2229 = vadd.xlane.f32.xlu0 %v2228
    %v2230 = vpop.xlane.xlu0 %2229
    %v2231 = vsel %vm1980, %v2161, 0.0
    %2232 = vadd.xlane.f32.xlu0 %v2231
    %v2233 = vpop.xlane.xlu0 %2232
    %v2234 = vsel %vm1980, %v2162, 0.0
    %2235 = vadd.xlane.f32.xlu0 %v2234
    %v2236 = vpop.xlane.xlu0 %2235
    %v2237 = vsel %vm1980, %v2163, 0.0
    %2238 = vadd.xlane.f32.xlu0 %v2237
    %v2239 = vpop.xlane.xlu0 %2238
    %v2240 = vsel %vm1980, %v2164, 0.0
    %2241 = vadd.xlane.f32.xlu0 %v2240
    %v2242 = vpop.xlane.xlu0 %2241
    %v2243 = vsel %vm1980, %v2165, 0.0
    %2244 = vadd.xlane.f32.xlu0 %v2243
    %v2245 = vpop.xlane.xlu0 %2244
    %v2246 = vsel %vm1980, %v2166, 0.0
    %2247 = vadd.xlane.f32.xlu0 %v2246
    %v2248 = vpop.xlane.xlu0 %2247
    %v2249 = vsel %vm1980, %v2167, 0.0
    %2250 = vadd.xlane.f32.xlu0 %v2249
    %v2251 = vpop.xlane.xlu0 %2250
    %v2252 = vsel %vm1980, %v2168, 0.0
    %2253 = vadd.xlane.f32.xlu0 %v2252
    %v2254 = vpop.xlane.xlu0 %2253
    %v2255 = vsel %vm1980, %v2169, 0.0
    %2256 = vadd.xlane.f32.xlu0 %v2255
    %v2257 = vpop.xlane.xlu0 %2256
    %v2258 = vsel %vm1980, %v2170, 0.0
    %2259 = vadd.xlane.f32.xlu0 %v2258
    %v2260 = vpop.xlane.xlu0 %2259
    %v2261 = vsel %vm1980, %v2171, 0.0
    %2262 = vadd.xlane.f32.xlu0 %v2261
    %v2263 = vpop.xlane.xlu0 %2262
    %v2264 = vsel %vm1980, %v2172, 0.0
    %2265 = vadd.xlane.f32.xlu0 %v2264
    %v2266 = vpop.xlane.xlu0 %2265
    %v2267 = vsel %vm1980, %v2173, 0.0
    %2268 = vadd.xlane.f32.xlu0 %v2267
    %v2269 = vpop.xlane.xlu0 %2268
    %v2270 = vmul.f32 %v2176, %v2077
    %v2271 = vmul.f32 %v2179, %v2077
    %v2272 = vmul.f32 %v2182, %v2077
    %v2273 = vmul.f32 %v2185, %v2077
    %v2274 = vmul.f32 %v2188, %v2077
    %v2275 = vmul.f32 %v2191, %v2077
    %v2276 = vmul.f32 %v2194, %v2077
    %v2277 = vmul.f32 %v2197, %v2077
    %v2278 = vmul.f32 %v2200, %v2077
    %v2279 = vmul.f32 %v2203, %v2077
    %v2280 = vmul.f32 %v2206, %v2077
    %v2281 = vmul.f32 %v2209, %v2077
    %v2282 = vmul.f32 %v2212, %v2077
    %v2283 = vmul.f32 %v2215, %v2077
    %v2284 = vmul.f32 %v2218, %v2077
    %v2285 = vmul.f32 %v2221, %v2077
    %v2286 = vmul.f32 %v2224, %v2077
    %v2287 = vmul.f32 %v2227, %v2077
    %v2288 = vmul.f32 %v2230, %v2077
    %v2289 = vmul.f32 %v2233, %v2077
    %v2290 = vmul.f32 %v2236, %v2077
    %v2291 = vmul.f32 %v2239, %v2077
    %v2292 = vmul.f32 %v2242, %v2077
    %v2293 = vmul.f32 %v2245, %v2077
    %v2294 = vmul.f32 %v2248, %v2077
    %v2295 = vmul.f32 %v2251, %v2077
    %v2296 = vmul.f32 %v2254, %v2077
    %v2297 = vmul.f32 %v2257, %v2077
    %v2298 = vmul.f32 %v2260, %v2077
    %v2299 = vmul.f32 %v2263, %v2077
    %v2300 = vmul.f32 %v2266, %v2077
    %v2301 = vmul.f32 %v2269, %v2077
    %v2302 = vadd.f32 %v2270, 1e-05
    %v2303 = vadd.f32 %v2271, 1e-05
    %v2304 = vadd.f32 %v2272, 1e-05
    %v2305 = vadd.f32 %v2273, 1e-05
    %v2306 = vadd.f32 %v2274, 1e-05
    %v2307 = vadd.f32 %v2275, 1e-05
    %v2308 = vadd.f32 %v2276, 1e-05
    %v2309 = vadd.f32 %v2277, 1e-05
    %v2310 = vadd.f32 %v2278, 1e-05
    %v2311 = vadd.f32 %v2279, 1e-05
    %v2312 = vadd.f32 %v2280, 1e-05
    %v2313 = vadd.f32 %v2281, 1e-05
    %v2314 = vadd.f32 %v2282, 1e-05
    %v2315 = vadd.f32 %v2283, 1e-05
    %v2316 = vadd.f32 %v2284, 1e-05
    %v2317 = vadd.f32 %v2285, 1e-05
    %v2318 = vadd.f32 %v2286, 1e-05
    %v2319 = vadd.f32 %v2287, 1e-05
    %v2320 = vadd.f32 %v2288, 1e-05
    %v2321 = vadd.f32 %v2289, 1e-05
    %v2322 = vadd.f32 %v2290, 1e-05
    %v2323 = vadd.f32 %v2291, 1e-05
    %v2324 = vadd.f32 %v2292, 1e-05
    %v2325 = vadd.f32 %v2293, 1e-05
    %v2326 = vadd.f32 %v2294, 1e-05
    %v2327 = vadd.f32 %v2295, 1e-05
    %v2328 = vadd.f32 %v2296, 1e-05
    %v2329 = vadd.f32 %v2297, 1e-05
    %v2330 = vadd.f32 %v2298, 1e-05
    %v2331 = vadd.f32 %v2299, 1e-05
    %v2332 = vadd.f32 %v2300, 1e-05
    %v2333 = vadd.f32 %v2301, 1e-05
    %v2334 = vrsqrt.pop %v2302
    %v2335 = vrsqrt.pop %v2303
    %v2336 = vrsqrt.pop %v2304
    %v2337 = vrsqrt.pop %v2305
    %v2338 = vrsqrt.pop %v2306
    %v2339 = vrsqrt.pop %v2307
    %v2340 = vrsqrt.pop %v2308
    %v2341 = vrsqrt.pop %v2309
    %v2342 = vrsqrt.pop %v2310
    %v2343 = vrsqrt.pop %v2311
    %v2344 = vrsqrt.pop %v2312
    %v2345 = vrsqrt.pop %v2313
    %v2346 = vrsqrt.pop %v2314
    %v2347 = vrsqrt.pop %v2315
    %v2348 = vrsqrt.pop %v2316
    %v2349 = vrsqrt.pop %v2317
    %v2350 = vrsqrt.pop %v2318
    %v2351 = vrsqrt.pop %v2319
    %v2352 = vrsqrt.pop %v2320
    %v2353 = vrsqrt.pop %v2321
    %v2354 = vrsqrt.pop %v2322
    %v2355 = vrsqrt.pop %v2323
    %v2356 = vrsqrt.pop %v2324
    %v2357 = vrsqrt.pop %v2325
    %v2358 = vrsqrt.pop %v2326
    %v2359 = vrsqrt.pop %v2327
    %v2360 = vrsqrt.pop %v2328
    %v2361 = vrsqrt.pop %v2329
    %v2362 = vrsqrt.pop %v2330
    %v2363 = vrsqrt.pop %v2331
    %v2364 = vrsqrt.pop %v2332
    %v2365 = vrsqrt.pop %v2333
    %v2366 = vmul.f32 %v2110, %v2334
    %v2367 = vmul.f32 %v2111, %v2335
    %v2368 = vmul.f32 %v2112, %v2336
    %v2369 = vmul.f32 %v2113, %v2337
    %v2370 = vmul.f32 %v2114, %v2338
    %v2371 = vmul.f32 %v2115, %v2339
    %v2372 = vmul.f32 %v2116, %v2340
    %v2373 = vmul.f32 %v2117, %v2341
    %v2374 = vmul.f32 %v2118, %v2342
    %v2375 = vmul.f32 %v2119, %v2343
    %v2376 = vmul.f32 %v2120, %v2344
    %v2377 = vmul.f32 %v2121, %v2345
    %v2378 = vmul.f32 %v2122, %v2346
    %v2379 = vmul.f32 %v2123, %v2347
    %v2380 = vmul.f32 %v2124, %v2348
    %v2381 = vmul.f32 %v2125, %v2349
    %v2382 = vmul.f32 %v2126, %v2350
    %v2383 = vmul.f32 %v2127, %v2351
    %v2384 = vmul.f32 %v2128, %v2352
    %v2385 = vmul.f32 %v2129, %v2353
    %v2386 = vmul.f32 %v2130, %v2354
    %v2387 = vmul.f32 %v2131, %v2355
    %v2388 = vmul.f32 %v2132, %v2356
    %v2389 = vmul.f32 %v2133, %v2357
    %v2390 = vmul.f32 %v2134, %v2358
    %v2391 = vmul.f32 %v2135, %v2359
    %v2392 = vmul.f32 %v2136, %v2360
    %v2393 = vmul.f32 %v2137, %v2361
    %v2394 = vmul.f32 %v2138, %v2362
    %v2395 = vmul.f32 %v2139, %v2363
    %v2396 = vmul.f32 %v2140, %v2364
    %v2397 = vmul.f32 %v2141, %v2365
    %v2398 = vmul.f32 %v2366, 0.5
    %v2399 = vmul.f32 %v2367, 0.5
    %v2400 = vmul.f32 %v2368, 0.5
    %v2401 = vmul.f32 %v2369, 0.5
    %v2402 = vmul.f32 %v2370, 0.5
    %v2403 = vmul.f32 %v2371, 0.5
    %v2404 = vmul.f32 %v2372, 0.5
    %v2405 = vmul.f32 %v2373, 0.5
    %v2406 = vmul.f32 %v2374, 0.5
    %v2407 = vmul.f32 %v2375, 0.5
    %v2408 = vmul.f32 %v2376, 0.5
    %v2409 = vmul.f32 %v2377, 0.5
    %v2410 = vmul.f32 %v2378, 0.5
    %v2411 = vmul.f32 %v2379, 0.5
    %v2412 = vmul.f32 %v2380, 0.5
    %v2413 = vmul.f32 %v2381, 0.5
    %v2414 = vmul.f32 %v2382, 0.5
    %v2415 = vmul.f32 %v2383, 0.5
    %v2416 = vmul.f32 %v2384, 0.5
    %v2417 = vmul.f32 %v2385, 0.5
    %v2418 = vmul.f32 %v2386, 0.5
    %v2419 = vmul.f32 %v2387, 0.5
    %v2420 = vmul.f32 %v2388, 0.5
    %v2421 = vmul.f32 %v2389, 0.5
    %v2422 = vmul.f32 %v2390, 0.5
    %v2423 = vmul.f32 %v2391, 0.5
    %v2424 = vmul.f32 %v2392, 0.5
    %v2425 = vmul.f32 %v2393, 0.5
    %v2426 = vmul.f32 %v2394, 0.5
    %v2427 = vmul.f32 %v2395, 0.5
    %v2428 = vmul.f32 %v2396, 0.5
    %v2429 = vmul.f32 %v2397, 0.5
    %v2430 = vmul.f32 %v2366, 0.70710677
    %v2431 = vmul.f32 %v2367, 0.70710677
    %v2432 = vmul.f32 %v2368, 0.70710677
    %v2433 = vmul.f32 %v2369, 0.70710677
    %v2434 = vmul.f32 %v2370, 0.70710677
    %v2435 = vmul.f32 %v2371, 0.70710677
    %v2436 = vmul.f32 %v2372, 0.70710677
    %v2437 = vmul.f32 %v2373, 0.70710677
    %v2438 = vmul.f32 %v2374, 0.70710677
    %v2439 = vmul.f32 %v2375, 0.70710677
    %v2440 = vmul.f32 %v2376, 0.70710677
    %v2441 = vmul.f32 %v2377, 0.70710677
    %v2442 = vmul.f32 %v2378, 0.70710677
    %v2443 = vmul.f32 %v2379, 0.70710677
    %v2444 = vmul.f32 %v2380, 0.70710677
    %v2445 = vmul.f32 %v2381, 0.70710677
    %v2446 = vmul.f32 %v2382, 0.70710677
    %v2447 = vmul.f32 %v2383, 0.70710677
    %v2448 = vmul.f32 %v2384, 0.70710677
    %v2449 = vmul.f32 %v2385, 0.70710677
    %v2450 = vmul.f32 %v2386, 0.70710677
    %v2451 = vmul.f32 %v2387, 0.70710677
    %v2452 = vmul.f32 %v2388, 0.70710677
    %v2453 = vmul.f32 %v2389, 0.70710677
    %v2454 = vmul.f32 %v2390, 0.70710677
    %v2455 = vmul.f32 %v2391, 0.70710677
    %v2456 = vmul.f32 %v2392, 0.70710677
    %v2457 = vmul.f32 %v2393, 0.70710677
    %v2458 = vmul.f32 %v2394, 0.70710677
    %v2459 = vmul.f32 %v2395, 0.70710677
    %v2460 = vmul.f32 %v2396, 0.70710677
    %v2461 = vmul.f32 %v2397, 0.70710677
    %v2462 = verf.f32.pop %v2430
    %v2463 = verf.f32.pop %v2431
    %v2464 = verf.f32.pop %v2432
    %v2465 = verf.f32.pop %v2433
    %v2466 = verf.f32.pop %v2434
    %v2467 = verf.f32.pop %v2435
    %v2468 = verf.f32.pop %v2436
    %v2469 = verf.f32.pop %v2437
    %v2470 = verf.f32.pop %v2438
    %v2471 = verf.f32.pop %v2439
    %v2472 = verf.f32.pop %v2440
    %v2473 = verf.f32.pop %v2441
    %v2474 = verf.f32.pop %v2442
    %v2475 = verf.f32.pop %v2443
    %v2476 = verf.f32.pop %v2444
    %v2477 = verf.f32.pop %v2445
    %v2478 = verf.f32.pop %v2446
    %v2479 = verf.f32.pop %v2447
    %v2480 = verf.f32.pop %v2448
    %v2481 = verf.f32.pop %v2449
    %v2482 = verf.f32.pop %v2450
    %v2483 = verf.f32.pop %v2451
    %v2484 = verf.f32.pop %v2452
    %v2485 = verf.f32.pop %v2453
    %v2486 = verf.f32.pop %v2454
    %v2487 = verf.f32.pop %v2455
    %v2488 = verf.f32.pop %v2456
    %v2489 = verf.f32.pop %v2457
    %v2490 = verf.f32.pop %v2458
    %v2491 = verf.f32.pop %v2459
    %v2492 = verf.f32.pop %v2460
    %v2493 = verf.f32.pop %v2461
    %v2494 = vadd.f32 %v2462, 1.0
    %v2495 = vadd.f32 %v2463, 1.0
    %v2496 = vadd.f32 %v2464, 1.0
    %v2497 = vadd.f32 %v2465, 1.0
    %v2498 = vadd.f32 %v2466, 1.0
    %v2499 = vadd.f32 %v2467, 1.0
    %v2500 = vadd.f32 %v2468, 1.0
    %v2501 = vadd.f32 %v2469, 1.0
    %v2502 = vadd.f32 %v2470, 1.0
    %v2503 = vadd.f32 %v2471, 1.0
    %v2504 = vadd.f32 %v2472, 1.0
    %v2505 = vadd.f32 %v2473, 1.0
    %v2506 = vadd.f32 %v2474, 1.0
    %v2507 = vadd.f32 %v2475, 1.0
    %v2508 = vadd.f32 %v2476, 1.0
    %v2509 = vadd.f32 %v2477, 1.0
    %v2510 = vadd.f32 %v2478, 1.0
    %v2511 = vadd.f32 %v2479, 1.0
    %v2512 = vadd.f32 %v2480, 1.0
    %v2513 = vadd.f32 %v2481, 1.0
    %v2514 = vadd.f32 %v2482, 1.0
    %v2515 = vadd.f32 %v2483, 1.0
    %v2516 = vadd.f32 %v2484, 1.0
    %v2517 = vadd.f32 %v2485, 1.0
    %v2518 = vadd.f32 %v2486, 1.0
    %v2519 = vadd.f32 %v2487, 1.0
    %v2520 = vadd.f32 %v2488, 1.0
    %v2521 = vadd.f32 %v2489, 1.0
    %v2522 = vadd.f32 %v2490, 1.0
    %v2523 = vadd.f32 %v2491, 1.0
    %v2524 = vadd.f32 %v2492, 1.0
    %v2525 = vadd.f32 %v2493, 1.0
    %v2526 = vmul.f32 %v2398, %v2494
    %v2527 = vmul.f32 %v2399, %v2495
    %v2528 = vmul.f32 %v2400, %v2496
    %v2529 = vmul.f32 %v2401, %v2497
    %v2530 = vmul.f32 %v2402, %v2498
    %v2531 = vmul.f32 %v2403, %v2499
    %v2532 = vmul.f32 %v2404, %v2500
    %v2533 = vmul.f32 %v2405, %v2501
    %v2534 = vmul.f32 %v2406, %v2502
    %v2535 = vmul.f32 %v2407, %v2503
    %v2536 = vmul.f32 %v2408, %v2504
    %v2537 = vmul.f32 %v2409, %v2505
    %v2538 = vmul.f32 %v2410, %v2506
    %v2539 = vmul.f32 %v2411, %v2507
    %v2540 = vmul.f32 %v2412, %v2508
    %v2541 = vmul.f32 %v2413, %v2509
    %v2542 = vmul.f32 %v2414, %v2510
    %v2543 = vmul.f32 %v2415, %v2511
    %v2544 = vmul.f32 %v2416, %v2512
    %v2545 = vmul.f32 %v2417, %v2513
    %v2546 = vmul.f32 %v2418, %v2514
    %v2547 = vmul.f32 %v2419, %v2515
    %v2548 = vmul.f32 %v2420, %v2516
    %v2549 = vmul.f32 %v2421, %v2517
    %v2550 = vmul.f32 %v2422, %v2518
    %v2551 = vmul.f32 %v2423, %v2519
    %v2552 = vmul.f32 %v2424, %v2520
    %v2553 = vmul.f32 %v2425, %v2521
    %v2554 = vmul.f32 %v2426, %v2522
    %v2555 = vmul.f32 %v2427, %v2523
    %v2556 = vmul.f32 %v2428, %v2524
    %v2557 = vmul.f32 %v2429, %v2525
    %v2558 = vld [vmem:[%s7] sm:$0xff]
    %v2559 = vld [vmem:[%s7 + $0x8] sm:$0xff]
    %v2560 = vld [vmem:[%s7 + $0x10] sm:$0xff]
    %v2561 = vld [vmem:[%s7 + $0x18] sm:$0xff]
    %v2562 = vld [vmem:[%s7 + $0x20] sm:$0xff]
    %v2563 = vld [vmem:[%s7 + $0x28] sm:$0xff]
    %v2564 = vld [vmem:[%s7 + $0x30] sm:$0xff]
    %v2565 = vld [vmem:[%s7 + $0x38] sm:$0xff]
    %v2566 = vld [vmem:[%s8] sm:$0x1]
    %v2568 = vlaneseq
    %v2569 = vshrl.u32 %v2568, 7
    %v2570 = vsub.s32 0, %v2569
    %v2571 = vrot.slane %v2566, %v2570
    %v2574 = vsel %vm1980, %v2526, 0
    %v2577 = vsel %vm1980, %v2527, 0
    %v2580 = vsel %vm1980, %v2528, 0
    %v2583 = vsel %vm1980, %v2529, 0
    %v2586 = vsel %vm1980, %v2530, 0
    %v2589 = vsel %vm1980, %v2531, 0
    %v2592 = vsel %vm1980, %v2532, 0
    %v2595 = vsel %vm1980, %v2533, 0
    %v2598 = vsel %vm1980, %v2534, 0
    %v2601 = vsel %vm1980, %v2535, 0
    %v2604 = vsel %vm1980, %v2536, 0
    %v2607 = vsel %vm1980, %v2537, 0
    %v2610 = vsel %vm1980, %v2538, 0
    %v2613 = vsel %vm1980, %v2539, 0
    %v2616 = vsel %vm1980, %v2540, 0
    %v2619 = vsel %vm1980, %v2541, 0
    %v2622 = vsel %vm1980, %v2542, 0
    %v2625 = vsel %vm1980, %v2543, 0
    %v2628 = vsel %vm1980, %v2544, 0
    %v2631 = vsel %vm1980, %v2545, 0
    %v2634 = vsel %vm1980, %v2546, 0
    %v2637 = vsel %vm1980, %v2547, 0
    %v2640 = vsel %vm1980, %v2548, 0
    %v2643 = vsel %vm1980, %v2549, 0
    %v2646 = vsel %vm1980, %v2550, 0
    %v2649 = vsel %vm1980, %v2551, 0
    %v2652 = vsel %vm1980, %v2552, 0
    %v2655 = vsel %vm1980, %v2553, 0
    %v2658 = vsel %vm1980, %v2554, 0
    %v2661 = vsel %vm1980, %v2555, 0
    %v2664 = vsel %vm1980, %v2556, 0
    %v2667 = vsel %vm1980, %v2557, 0
    %2669 = vmatprep.subr.mxu0 0.0
    %2670 = vmatpush1.msra.mxu0 %v2558
    %2671 = vmatprep.subr.mxu0 0.0
    %2672 = vmatpush1.msra.mxu0 %v2559
    %2673 = vmatprep.subr.mxu0 0.0
    %2674 = vmatpush1.msra.mxu0 %v2560
    %2675 = vmatprep.subr.mxu0 0.0
    %2676 = vmatpush1.msra.mxu0 %v2561
    %2677 = vmatprep.subr.mxu0 0.0
    %2678 = vmatpush1.msra.mxu0 %v2562
    %2679 = vmatprep.subr.mxu0 0.0
    %2680 = vmatpush1.msra.mxu0 %v2563
    %2681 = vmatprep.subr.mxu0 0.0
    %2682 = vmatpush1.msra.mxu0 %v2564
    %2683 = vmatprep.subr.mxu0 0.0
    %2684 = vmatpush1.msra.mxu0 %v2565
    %2685 = vmatprep.subr.mxu0 0.0
    %2686 = vmatpush1.msra.mxu0 0.0
    %2687 = vmatprep.subr.mxu0 0.0
    %2688 = vmatpush1.msra.mxu0 0.0
    %2689 = vmatprep.subr.mxu0 0.0
    %2690 = vmatpush1.msra.mxu0 0.0
    %2691 = vmatprep.subr.mxu0 0.0
    %2692 = vmatpush1.msra.mxu0 0.0
    %2693 = vmatprep.subr.mxu0 0.0
    %2694 = vmatpush1.msra.mxu0 0.0
    %2695 = vmatprep.subr.mxu0 0.0
    %2696 = vmatpush1.msra.mxu0 0.0
    %2697 = vmatprep.subr.mxu0 0.0
    %2698 = vmatpush1.msra.mxu0 0.0
    %2699 = vmatprep.subr.mxu0 0.0
    %2700 = vmatpush1.msra.mxu0 0.0
    %2701 = vmatprep.subr.mxu0 0.0
    %2702 = vmatpush1.msra.mxu0 0.0
    %2703 = vmatprep.subr.mxu0 0.0
    %2704 = vmatpush1.msra.mxu0 0.0
    %2705 = vmatprep.subr.mxu0 0.0
    %2706 = vmatpush1.msra.mxu0 0.0
    %2707 = vmatprep.subr.mxu0 0.0
    %2708 = vmatpush1.msra.mxu0 0.0
    %2709 = vmatprep.subr.mxu0 0.0
    %2710 = vmatpush1.msra.mxu0 0.0
    %2711 = vmatprep.subr.mxu0 0.0
    %2712 = vmatpush1.msra.mxu0 0.0
    %2713 = vmatprep.subr.mxu0 0.0
    %2714 = vmatpush1.msra.mxu0 0.0
    %2715 = vmatprep.subr.mxu0 0.0
    %2716 = vmatpush1.msra.mxu0 0.0
    %2717 = vmatprep.subr.mxu0 0.0
    %2718 = vmatpush1.msra.mxu0 0.0
    %2719 = vmatprep.subr.mxu0 0.0
    %2720 = vmatpush1.msra.mxu0 0.0
    %2721 = vmatprep.subr.mxu0 0.0
    %2722 = vmatpush1.msra.mxu0 0.0
    %2723 = vmatprep.subr.mxu0 0.0
    %2724 = vmatpush1.msra.mxu0 0.0
    %2725 = vmatprep.subr.mxu0 0.0
    %2726 = vmatpush1.msra.mxu0 0.0
    %2727 = vmatprep.subr.mxu0 0.0
    %2728 = vmatpush1.msra.mxu0 0.0
    %2729 = vmatprep.subr.mxu0 0.0
    %2730 = vmatpush1.msra.mxu0 0.0
    %2731 = vmatprep.subr.mxu0 0.0
    %2732 = vmatpush1.msra.mxu0 0.0
    %2733 = vmatprep.mubr.f32.mxu0 0.0
    %2734 = vmatmul.mubr.f32.gmra.mrb[0].mxu0 %v2574
    %v2735 = vpop.f32.mrb[0].mxu0
    %v2736 = vadd.f32 %v2571, %v2735
    %v2737 = vpop.f32.mrb[0].mxu0
    %2738 = vmatprep.mubr.f32.mxu0 0.0
    %2739 = vmatmul.mubr.f32.gmra.mrb[0].mxu0 %v2577
    %v2740 = vpop.f32.mrb[0].mxu0
    %v2741 = vadd.f32 %v2571, %v2740
    %v2742 = vpop.f32.mrb[0].mxu0
    %2743 = vmatprep.mubr.f32.mxu0 0.0
    %2744 = vmatmul.mubr.f32.gmra.mrb[0].mxu0 %v2580
    %v2745 = vpop.f32.mrb[0].mxu0
    %v2746 = vadd.f32 %v2571, %v2745
    %v2747 = vpop.f32.mrb[0].mxu0
    %2748 = vmatprep.mubr.f32.mxu0 0.0
    %2749 = vmatmul.mubr.f32.gmra.mrb[0].mxu0 %v2583
    %v2750 = vpop.f32.mrb[0].mxu0
    %v2751 = vadd.f32 %v2571, %v2750
    %v2752 = vpop.f32.mrb[0].mxu0
    %2753 = vmatprep.mubr.f32.mxu0 0.0
    %2754 = vmatmul.mubr.f32.gmra.mrb[0].mxu0 %v2586
    %v2755 = vpop.f32.mrb[0].mxu0
    %v2756 = vadd.f32 %v2571, %v2755
    %v2757 = vpop.f32.mrb[0].mxu0
    %2758 = vmatprep.mubr.f32.mxu0 0.0
    %2759 = vmatmul.mubr.f32.gmra.mrb[0].mxu0 %v2589
    %v2760 = vpop.f32.mrb[0].mxu0
    %v2761 = vadd.f32 %v2571, %v2760
    %v2762 = vpop.f32.mrb[0].mxu0
    %2763 = vmatprep.mubr.f32.mxu0 0.0
    %2764 = vmatmul.mubr.f32.gmra.mrb[0].mxu0 %v2592
    %v2765 = vpop.f32.mrb[0].mxu0
    %v2766 = vadd.f32 %v2571, %v2765
    %v2767 = vpop.f32.mrb[0].mxu0
    %2768 = vmatprep.mubr.f32.mxu0 0.0
    %2769 = vmatmul.mubr.f32.gmra.mrb[0].mxu0 %v2595
    %v2770 = vpop.f32.mrb[0].mxu0
    %v2771 = vadd.f32 %v2571, %v2770
    %v2772 = vpop.f32.mrb[0].mxu0
    %2773 = vmatprep.mubr.f32.mxu0 0.0
    %2774 = vmatmul.mubr.f32.gmra.mrb[0].mxu0 %v2598
    %v2775 = vpop.f32.mrb[0].mxu0
    %v2776 = vadd.f32 %v2571, %v2775
    %v2777 = vpop.f32.mrb[0].mxu0
    %2778 = vmatprep.mubr.f32.mxu0 0.0
    %2779 = vmatmul.mubr.f32.gmra.mrb[0].mxu0 %v2601
    %v2780 = vpop.f32.mrb[0].mxu0
    %v2781 = vadd.f32 %v2571, %v2780
    %v2782 = vpop.f32.mrb[0].mxu0
    %2783 = vmatprep.mubr.f32.mxu0 0.0
    %2784 = vmatmul.mubr.f32.gmra.mrb[0].mxu0 %v2604
    %v2785 = vpop.f32.mrb[0].mxu0
    %v2786 = vadd.f32 %v2571, %v2785
    %v2787 = vpop.f32.mrb[0].mxu0
    %2788 = vmatprep.mubr.f32.mxu0 0.0
    %2789 = vmatmul.mubr.f32.gmra.mrb[0].mxu0 %v2607
    %v2790 = vpop.f32.mrb[0].mxu0
    %v2791 = vadd.f32 %v2571, %v2790
    %v2792 = vpop.f32.mrb[0].mxu0
    %2793 = vmatprep.mubr.f32.mxu0 0.0
    %2794 = vmatmul.mubr.f32.gmra.mrb[0].mxu0 %v2610
    %v2795 = vpop.f32.mrb[0].mxu0
    %v2796 = vadd.f32 %v2571, %v2795
    %v2797 = vpop.f32.mrb[0].mxu0
    %2798 = vmatprep.mubr.f32.mxu0 0.0
    %2799 = vmatmul.mubr.f32.gmra.mrb[0].mxu0 %v2613
    %v2800 = vpop.f32.mrb[0].mxu0
    %v2801 = vadd.f32 %v2571, %v2800
    %v2802 = vpop.f32.mrb[0].mxu0
    %2803 = vmatprep.mubr.f32.mxu0 0.0
    %2804 = vmatmul.mubr.f32.gmra.mrb[0].mxu0 %v2616
    %v2805 = vpop.f32.mrb[0].mxu0
    %v2806 = vadd.f32 %v2571, %v2805
    %v2807 = vpop.f32.mrb[0].mxu0
    %2808 = vmatprep.mubr.f32.mxu0 0.0
    %2809 = vmatmul.mubr.f32.gmra.mrb[0].mxu0 %v2619
    %v2810 = vpop.f32.mrb[0].mxu0
    %v2811 = vadd.f32 %v2571, %v2810
    %v2812 = vpop.f32.mrb[0].mxu0
    %2813 = vmatprep.mubr.f32.mxu0 0.0
    %2814 = vmatmul.mubr.f32.gmra.mrb[0].mxu0 %v2622
    %v2815 = vpop.f32.mrb[0].mxu0
    %v2816 = vadd.f32 %v2571, %v2815
    %v2817 = vpop.f32.mrb[0].mxu0
    %2818 = vmatprep.mubr.f32.mxu0 0.0
    %2819 = vmatmul.mubr.f32.gmra.mrb[0].mxu0 %v2625
    %v2820 = vpop.f32.mrb[0].mxu0
    %v2821 = vadd.f32 %v2571, %v2820
    %v2822 = vpop.f32.mrb[0].mxu0
    %2823 = vmatprep.mubr.f32.mxu0 0.0
    %2824 = vmatmul.mubr.f32.gmra.mrb[0].mxu0 %v2628
    %v2825 = vpop.f32.mrb[0].mxu0
    %v2826 = vadd.f32 %v2571, %v2825
    %v2827 = vpop.f32.mrb[0].mxu0
    %2828 = vmatprep.mubr.f32.mxu0 0.0
    %2829 = vmatmul.mubr.f32.gmra.mrb[0].mxu0 %v2631
    %v2830 = vpop.f32.mrb[0].mxu0
    %v2831 = vadd.f32 %v2571, %v2830
    %v2832 = vpop.f32.mrb[0].mxu0
    %2833 = vmatprep.mubr.f32.mxu0 0.0
    %2834 = vmatmul.mubr.f32.gmra.mrb[0].mxu0 %v2634
    %v2835 = vpop.f32.mrb[0].mxu0
    %v2836 = vadd.f32 %v2571, %v2835
    %v2837 = vpop.f32.mrb[0].mxu0
    %2838 = vmatprep.mubr.f32.mxu0 0.0
    %2839 = vmatmul.mubr.f32.gmra.mrb[0].mxu0 %v2637
    %v2840 = vpop.f32.mrb[0].mxu0
    %v2841 = vadd.f32 %v2571, %v2840
    %v2842 = vpop.f32.mrb[0].mxu0
    %2843 = vmatprep.mubr.f32.mxu0 0.0
    %2844 = vmatmul.mubr.f32.gmra.mrb[0].mxu0 %v2640
    %v2845 = vpop.f32.mrb[0].mxu0
    %v2846 = vadd.f32 %v2571, %v2845
    %v2847 = vpop.f32.mrb[0].mxu0
    %2848 = vmatprep.mubr.f32.mxu0 0.0
    %2849 = vmatmul.mubr.f32.gmra.mrb[0].mxu0 %v2643
    %v2850 = vpop.f32.mrb[0].mxu0
    %v2851 = vadd.f32 %v2571, %v2850
    %v2852 = vpop.f32.mrb[0].mxu0
    %2853 = vmatprep.mubr.f32.mxu0 0.0
    %2854 = vmatmul.mubr.f32.gmra.mrb[0].mxu0 %v2646
    %v2855 = vpop.f32.mrb[0].mxu0
    %v2856 = vadd.f32 %v2571, %v2855
    %v2857 = vpop.f32.mrb[0].mxu0
    %2858 = vmatprep.mubr.f32.mxu0 0.0
    %2859 = vmatmul.mubr.f32.gmra.mrb[0].mxu0 %v2649
    %v2860 = vpop.f32.mrb[0].mxu0
    %v2861 = vadd.f32 %v2571, %v2860
    %v2862 = vpop.f32.mrb[0].mxu0
    %2863 = vmatprep.mubr.f32.mxu0 0.0
    %2864 = vmatmul.mubr.f32.gmra.mrb[0].mxu0 %v2652
    %v2865 = vpop.f32.mrb[0].mxu0
    %v2866 = vadd.f32 %v2571, %v2865
    %v2867 = vpop.f32.mrb[0].mxu0
    %2868 = vmatprep.mubr.f32.mxu0 0.0
    %2869 = vmatmul.mubr.f32.gmra.mrb[0].mxu0 %v2655
    %v2870 = vpop.f32.mrb[0].mxu0
    %v2871 = vadd.f32 %v2571, %v2870
    %v2872 = vpop.f32.mrb[0].mxu0
    %2873 = vmatprep.mubr.f32.mxu0 0.0
    %2874 = vmatmul.mubr.f32.gmra.mrb[0].mxu0 %v2658
    %v2875 = vpop.f32.mrb[0].mxu0
    %v2876 = vadd.f32 %v2571, %v2875
    %v2877 = vpop.f32.mrb[0].mxu0
    %2878 = vmatprep.mubr.f32.mxu0 0.0
    %2879 = vmatmul.mubr.f32.gmra.mrb[0].mxu0 %v2661
    %v2880 = vpop.f32.mrb[0].mxu0
    %v2881 = vadd.f32 %v2571, %v2880
    %v2882 = vpop.f32.mrb[0].mxu0
    %2883 = vmatprep.mubr.f32.mxu0 0.0
    %2884 = vmatmul.mubr.f32.gmra.mrb[0].mxu0 %v2664
    %v2885 = vpop.f32.mrb[0].mxu0
    %v2886 = vadd.f32 %v2571, %v2885
    %v2887 = vpop.f32.mrb[0].mxu0
    %2888 = vmatprep.mubr.f32.mxu0 0.0
    %2889 = vmatmul.mubr.f32.gmra.mrb[0].mxu0 %v2667
    %v2890 = vpop.f32.mrb[0].mxu0
    %v2891 = vadd.f32 %v2571, %v2890
    %v2892 = vpop.f32.mrb[0].mxu0
    %2893 = vdwg.mxu0
    %v2894 = vmul.f32 %v2736, 0.5
    %v2895 = vmul.f32 %v2741, 0.5
    %v2896 = vmul.f32 %v2746, 0.5
    %v2897 = vmul.f32 %v2751, 0.5
    %v2898 = vmul.f32 %v2756, 0.5
    %v2899 = vmul.f32 %v2761, 0.5
    %v2900 = vmul.f32 %v2766, 0.5
    %v2901 = vmul.f32 %v2771, 0.5
    %v2902 = vmul.f32 %v2776, 0.5
    %v2903 = vmul.f32 %v2781, 0.5
    %v2904 = vmul.f32 %v2786, 0.5
    %v2905 = vmul.f32 %v2791, 0.5
    %v2906 = vmul.f32 %v2796, 0.5
    %v2907 = vmul.f32 %v2801, 0.5
    %v2908 = vmul.f32 %v2806, 0.5
    %v2909 = vmul.f32 %v2811, 0.5
    %v2910 = vmul.f32 %v2816, 0.5
    %v2911 = vmul.f32 %v2821, 0.5
    %v2912 = vmul.f32 %v2826, 0.5
    %v2913 = vmul.f32 %v2831, 0.5
    %v2914 = vmul.f32 %v2836, 0.5
    %v2915 = vmul.f32 %v2841, 0.5
    %v2916 = vmul.f32 %v2846, 0.5
    %v2917 = vmul.f32 %v2851, 0.5
    %v2918 = vmul.f32 %v2856, 0.5
    %v2919 = vmul.f32 %v2861, 0.5
    %v2920 = vmul.f32 %v2866, 0.5
    %v2921 = vmul.f32 %v2871, 0.5
    %v2922 = vmul.f32 %v2876, 0.5
    %v2923 = vmul.f32 %v2881, 0.5
    %v2924 = vmul.f32 %v2886, 0.5
    %v2925 = vmul.f32 %v2891, 0.5
    %v2926 = vmul.f32 %v2736, 0.70710677
    %v2927 = vmul.f32 %v2741, 0.70710677
    %v2928 = vmul.f32 %v2746, 0.70710677
    %v2929 = vmul.f32 %v2751, 0.70710677
    %v2930 = vmul.f32 %v2756, 0.70710677
    %v2931 = vmul.f32 %v2761, 0.70710677
    %v2932 = vmul.f32 %v2766, 0.70710677
    %v2933 = vmul.f32 %v2771, 0.70710677
    %v2934 = vmul.f32 %v2776, 0.70710677
    %v2935 = vmul.f32 %v2781, 0.70710677
    %v2936 = vmul.f32 %v2786, 0.70710677
    %v2937 = vmul.f32 %v2791, 0.70710677
    %v2938 = vmul.f32 %v2796, 0.70710677
    %v2939 = vmul.f32 %v2801, 0.70710677
    %v2940 = vmul.f32 %v2806, 0.70710677
    %v2941 = vmul.f32 %v2811, 0.70710677
    %v2942 = vmul.f32 %v2816, 0.70710677
    %v2943 = vmul.f32 %v2821, 0.70710677
    %v2944 = vmul.f32 %v2826, 0.70710677
    %v2945 = vmul.f32 %v2831, 0.70710677
    %v2946 = vmul.f32 %v2836, 0.70710677
    %v2947 = vmul.f32 %v2841, 0.70710677
    %v2948 = vmul.f32 %v2846, 0.70710677
    %v2949 = vmul.f32 %v2851, 0.70710677
    %v2950 = vmul.f32 %v2856, 0.70710677
    %v2951 = vmul.f32 %v2861, 0.70710677
    %v2952 = vmul.f32 %v2866, 0.70710677
    %v2953 = vmul.f32 %v2871, 0.70710677
    %v2954 = vmul.f32 %v2876, 0.70710677
    %v2955 = vmul.f32 %v2881, 0.70710677
    %v2956 = vmul.f32 %v2886, 0.70710677
    %v2957 = vmul.f32 %v2891, 0.70710677
    %v2958 = verf.f32.pop %v2926
    %v2959 = verf.f32.pop %v2927
    %v2960 = verf.f32.pop %v2928
    %v2961 = verf.f32.pop %v2929
    %v2962 = verf.f32.pop %v2930
    %v2963 = verf.f32.pop %v2931
    %v2964 = verf.f32.pop %v2932
    %v2965 = verf.f32.pop %v2933
    %v2966 = verf.f32.pop %v2934
    %v2967 = verf.f32.pop %v2935
    %v2968 = verf.f32.pop %v2936
    %v2969 = verf.f32.pop %v2937
    %v2970 = verf.f32.pop %v2938
    %v2971 = verf.f32.pop %v2939
    %v2972 = verf.f32.pop %v2940
    %v2973 = verf.f32.pop %v2941
    %v2974 = verf.f32.pop %v2942
    %v2975 = verf.f32.pop %v2943
    %v2976 = verf.f32.pop %v2944
    %v2977 = verf.f32.pop %v2945
    %v2978 = verf.f32.pop %v2946
    %v2979 = verf.f32.pop %v2947
    %v2980 = verf.f32.pop %v2948
    %v2981 = verf.f32.pop %v2949
    %v2982 = verf.f32.pop %v2950
    %v2983 = verf.f32.pop %v2951
    %v2984 = verf.f32.pop %v2952
    %v2985 = verf.f32.pop %v2953
    %v2986 = verf.f32.pop %v2954
    %v2987 = verf.f32.pop %v2955
    %v2988 = verf.f32.pop %v2956
    %v2989 = verf.f32.pop %v2957
    %v2990 = vadd.f32 %v2958, 1.0
    %v2991 = vadd.f32 %v2959, 1.0
    %v2992 = vadd.f32 %v2960, 1.0
    %v2993 = vadd.f32 %v2961, 1.0
    %v2994 = vadd.f32 %v2962, 1.0
    %v2995 = vadd.f32 %v2963, 1.0
    %v2996 = vadd.f32 %v2964, 1.0
    %v2997 = vadd.f32 %v2965, 1.0
    %v2998 = vadd.f32 %v2966, 1.0
    %v2999 = vadd.f32 %v2967, 1.0
    %v3000 = vadd.f32 %v2968, 1.0
    %v3001 = vadd.f32 %v2969, 1.0
    %v3002 = vadd.f32 %v2970, 1.0
    %v3003 = vadd.f32 %v2971, 1.0
    %v3004 = vadd.f32 %v2972, 1.0
    %v3005 = vadd.f32 %v2973, 1.0
    %v3006 = vadd.f32 %v2974, 1.0
    %v3007 = vadd.f32 %v2975, 1.0
    %v3008 = vadd.f32 %v2976, 1.0
    %v3009 = vadd.f32 %v2977, 1.0
    %v3010 = vadd.f32 %v2978, 1.0
    %v3011 = vadd.f32 %v2979, 1.0
    %v3012 = vadd.f32 %v2980, 1.0
    %v3013 = vadd.f32 %v2981, 1.0
    %v3014 = vadd.f32 %v2982, 1.0
    %v3015 = vadd.f32 %v2983, 1.0
    %v3016 = vadd.f32 %v2984, 1.0
    %v3017 = vadd.f32 %v2985, 1.0
    %v3018 = vadd.f32 %v2986, 1.0
    %v3019 = vadd.f32 %v2987, 1.0
    %v3020 = vadd.f32 %v2988, 1.0
    %v3021 = vadd.f32 %v2989, 1.0
    %v3022 = vmul.f32 %v2894, %v2990
    %v3023 = vmul.f32 %v2895, %v2991
    %v3024 = vmul.f32 %v2896, %v2992
    %v3025 = vmul.f32 %v2897, %v2993
    %v3026 = vmul.f32 %v2898, %v2994
    %v3027 = vmul.f32 %v2899, %v2995
    %v3028 = vmul.f32 %v2900, %v2996
    %v3029 = vmul.f32 %v2901, %v2997
    %v3030 = vmul.f32 %v2902, %v2998
    %v3031 = vmul.f32 %v2903, %v2999
    %v3032 = vmul.f32 %v2904, %v3000
    %v3033 = vmul.f32 %v2905, %v3001
    %v3034 = vmul.f32 %v2906, %v3002
    %v3035 = vmul.f32 %v2907, %v3003
    %v3036 = vmul.f32 %v2908, %v3004
    %v3037 = vmul.f32 %v2909, %v3005
    %v3038 = vmul.f32 %v2910, %v3006
    %v3039 = vmul.f32 %v2911, %v3007
    %v3040 = vmul.f32 %v2912, %v3008
    %v3041 = vmul.f32 %v2913, %v3009
    %v3042 = vmul.f32 %v2914, %v3010
    %v3043 = vmul.f32 %v2915, %v3011
    %v3044 = vmul.f32 %v2916, %v3012
    %v3045 = vmul.f32 %v2917, %v3013
    %v3046 = vmul.f32 %v2918, %v3014
    %v3047 = vmul.f32 %v2919, %v3015
    %v3048 = vmul.f32 %v2920, %v3016
    %v3049 = vmul.f32 %v2921, %v3017
    %v3050 = vmul.f32 %v2922, %v3018
    %v3051 = vmul.f32 %v2923, %v3019
    %v3052 = vmul.f32 %v2924, %v3020
    %v3053 = vmul.f32 %v2925, %v3021
    %3054 = vst [vmem:[#allocation2] sm:$0xff] %v3022
    %3055 = vst [vmem:[#allocation2 + $0x8] sm:$0xff] %v3023
    %3056 = vst [vmem:[#allocation2 + $0x10] sm:$0xff] %v3024
    %3057 = vst [vmem:[#allocation2 + $0x18] sm:$0xff] %v3025
    %3058 = vst [vmem:[#allocation2 + $0x20] sm:$0xff] %v3026
    %3059 = vst [vmem:[#allocation2 + $0x28] sm:$0xff] %v3027
    %3060 = vst [vmem:[#allocation2 + $0x30] sm:$0xff] %v3028
    %3061 = vst [vmem:[#allocation2 + $0x38] sm:$0xff] %v3029
    %3062 = vst [vmem:[#allocation2 + $0x40] sm:$0xff] %v3030
    %3063 = vst [vmem:[#allocation2 + $0x48] sm:$0xff] %v3031
    %3064 = vst [vmem:[#allocation2 + $0x50] sm:$0xff] %v3032
    %3065 = vst [vmem:[#allocation2 + $0x58] sm:$0xff] %v3033
    %3066 = vst [vmem:[#allocation2 + $0x60] sm:$0xff] %v3034
    %3067 = vst [vmem:[#allocation2 + $0x68] sm:$0xff] %v3035
    %3068 = vst [vmem:[#allocation2 + $0x70] sm:$0xff] %v3036
    %3069 = vst [vmem:[#allocation2 + $0x78] sm:$0xff] %v3037
    %3070 = vst [vmem:[#allocation2 + $0x80] sm:$0xff] %v3038
    %3071 = vst [vmem:[#allocation2 + $0x88] sm:$0xff] %v3039
    %3072 = vst [vmem:[#allocation2 + $0x90] sm:$0xff] %v3040
    %3073 = vst [vmem:[#allocation2 + $0x98] sm:$0xff] %v3041
    %3074 = vst [vmem:[#allocation2 + $0xa0] sm:$0xff] %v3042
    %3075 = vst [vmem:[#allocation2 + $0xa8] sm:$0xff] %v3043
    %3076 = vst [vmem:[#allocation2 + $0xb0] sm:$0xff] %v3044
    %3077 = vst [vmem:[#allocation2 + $0xb8] sm:$0xff] %v3045
    %3078 = vst [vmem:[#allocation2 + $0xc0] sm:$0xff] %v3046
    %3079 = vst [vmem:[#allocation2 + $0xc8] sm:$0xff] %v3047
    %3080 = vst [vmem:[#allocation2 + $0xd0] sm:$0xff] %v3048
    %3081 = vst [vmem:[#allocation2 + $0xd8] sm:$0xff] %v3049
    %3082 = vst [vmem:[#allocation2 + $0xe0] sm:$0xff] %v3050
    %3083 = vst [vmem:[#allocation2 + $0xe8] sm:$0xff] %v3051
    %3084 = vst [vmem:[#allocation2 + $0xf0] sm:$0xff] %v3052
    %3085 = vst [vmem:[#allocation2 + $0xf8] sm:$0xff] %v3053
    // Predicated region
    $region38: #{tpu_custom_call.1} parent=1 // pred_check
      _
    $region39: #{tpu_custom_call.1} parent=1 // pred_check_branch
      %3087 = sbr.rel (0) target = $region41
    $region40: #{tpu_custom_call.1} parent=1 // pred_region
      %s3089 = ssub.s32 4096, 4096
      %3090 = vsyncadd [#allocation3], %s3089
      %s3091 = sshll.u32 [#allocation2], 4
      %s3092 = int_to_ptr.vmem [resolvable:$true] %s3091
      %3097 = dma.vmem_to_hbm [thread:$0]  %s3092, 4096, %s9, [#allocation3], 128, 128, 8
    $region41: #{tpu_custom_call.1} parent=1 // pred_fallthru
      _
    // Predicated region
    $region42: #{tpu_custom_call.1} parent=1 // pred_check
      _
    $region43: #{tpu_custom_call.1} parent=1 // pred_check_branch
      %3099 = sbr.rel (0) target = $region45
    $region44: #{tpu_custom_call.1} parent=1 // pred_region
      %3100 = dma.done [#allocation3], 4096
    $region45: #{tpu_custom_call.1} parent=1 // pred_fallthru
      _
    %3101 = vsyncpa [#allocation3], 1

</llo_original>
